<compile_context>
chip_gen: v6e
topology: v6e:2x2x1
jax: 0.10.0
libtpu: 0.0.40
codegen_flags: <defaults>
</compile_context>

<pallas_src>
import jax
import jax.numpy as jnp
from jax.experimental import pallas as pl
from jax.experimental.pallas import tpu as pltpu


def realnvp_kernel(x_ref, w1_ref, b1_ref, w2_ref, b2_ref,
                   w3s_ref, b3s_ref, w3t_ref, b3t_ref, mask_ref,
                   z_ref, ldj_ref):
    B, C = x_ref.shape
    L = w1_ref.shape[0]
    d = C // 2

    z = x_ref[...]                                   # (B, C) f32, lives in vregs
    ldj = jnp.zeros((B, 1), jnp.float32)

    for l in range(L):                               # statically unrolled layers
        mask = mask_ref[l]                           # (1, C)
        inv = 1.0 - mask
        # '01' layers (even l) keep channels d..C-1; '10' layers keep 0..d-1.
        active = range(d, C) if l % 2 == 0 else range(0, d)

        # --- Function_s_t MLP ---------------------------------------------
        # First linear: K=C=2 is degenerate on the MXU and the mask zeroes
        # half the channels, so do a VPU rank-1 update over live channels.
        w1_l = w1_ref[l]                             # (C, H) f32
        h = b1_ref[l]                                # (1, H) f32
        for c in active:
            h = h + z[:, c:c + 1] * w1_l[c:c + 1, :]  # -> (B, H)
        h = jnp.where(h > 0, h, 0.01 * h)            # LeakyReLU(0.01)

        h = jnp.dot(h.astype(jnp.bfloat16), w2_ref[l],
                    preferred_element_type=jnp.float32) + b2_ref[l]
        h = jnp.where(h > 0, h, 0.01 * h)

        h16 = h.astype(jnp.bfloat16)
        s = jnp.dot(h16, w3s_ref[l], preferred_element_type=jnp.float32) + b3s_ref[l]
        t = jnp.dot(h16, w3t_ref[l], preferred_element_type=jnp.float32) + b3t_ref[l]
        s = jnp.tanh(s * inv)
        t = t * inv

        # --- coupling transform + log-det accumulation ----------------------
        x1 = z * mask
        z = x1 + inv * (z * jnp.exp(s) + t)
        ldj = ldj + jnp.sum(s, axis=1, keepdims=True)

    z_ref[...] = z                                   # single store at the end
    ldj_ref[...] = ldj


def make_realnvp_params(key, input_channel=2, hidden=256, num_layer_pairs=3):
    """Deterministic synthetic parameters, stacked over the L = 2*num_layer_pairs layers."""
    L = 2 * num_layer_pairs
    C, H = input_channel, hidden

    def linear_init(k, fan_in, shape):
        bound = 1.0 / jnp.sqrt(jnp.float32(fan_in))
        return jax.random.uniform(k, shape, jnp.float32, -bound, bound)

    keys = jax.random.split(key, 6)
    w1 = linear_init(keys[0], C, (L, C, H))
    b1 = linear_init(keys[1], C, (L, 1, H))
    w2 = linear_init(keys[2], H, (L, H, H))
    b2 = linear_init(keys[3], H, (L, 1, H))
    w3 = linear_init(keys[4], H, (L, H, 2 * C))
    b3 = linear_init(keys[5], H, (L, 1, 2 * C))

    # masks: even layers '01' -> [0]*d + [1]*(C-d);  odd layers '10' -> opposite
    d = C // 2
    m01 = jnp.concatenate([jnp.zeros((d,)), jnp.ones((C - d,))]).astype(jnp.float32)
    m10 = 1.0 - m01
    mask = jnp.stack([m01 if l % 2 == 0 else m10 for l in range(L)]).reshape(L, 1, C)

    return dict(
        w1=w1, b1=b1,
        w2=w2.astype(jnp.bfloat16), b2=b2,                      # dominant bytes -> bf16
        w3_s=w3[:, :, :C].astype(jnp.bfloat16), b3_s=b3[:, :, :C],
        w3_t=w3[:, :, C:].astype(jnp.bfloat16), b3_t=b3[:, :, C:],
        mask=mask,
    )


def realnvp_forward(x, params):
    """Forward pass: returns (z, sum_log_det_jacobians)."""
    B, C = x.shape
    L, _, H = params["w1"].shape

    inputs = (x, params["w1"], params["b1"], params["w2"], params["b2"],
              params["w3_s"], params["b3_s"], params["w3_t"], params["b3_t"],
              params["mask"])

    def full_block(a):
        return pl.BlockSpec(a.shape, lambda i, nd=a.ndim: (0,) * nd)

    in_specs = [full_block(a) for a in inputs]
    out_specs = [pl.BlockSpec((B, C), lambda i: (0, 0)),
                 pl.BlockSpec((B, 1), lambda i: (0, 0))]
    out_shape = (jax.ShapeDtypeStruct((B, C), jnp.float32),
                 jax.ShapeDtypeStruct((B, 1), jnp.float32))

    flops = int(L * (2 * B * H * H + 4 * B * H * C + 2 * B * H))
    bytes_accessed = int(sum(a.nbytes for a in inputs) + B * C * 4 + B * 4)
    cost = pl.CostEstimate(flops=flops,
                           transcendentals=int(2 * L * B * C),
                           bytes_accessed=bytes_accessed)

    z, ldj = pl.pallas_call(
        realnvp_kernel,
        out_shape=out_shape,
        grid_spec=pltpu.PrefetchScalarGridSpec(
            num_scalar_prefetch=0,
            grid=(1,),                       # single invocation: whole flow in one pass
            in_specs=in_specs,
            out_specs=out_specs),
        compiler_params=pltpu.CompilerParams(
            dimension_semantics=("arbitrary",)),
        cost_estimate=cost,
    )(*inputs)
    return z, ldj[:, 0]


def realnvp_forward_ref(x, params):
    """Pure-JAX reference of the PyTorch forward (matching kernel precision)."""
    L = params["w1"].shape[0]
    C = x.shape[1]
    z = x
    ldj = jnp.zeros((x.shape[0],), jnp.float32)
    for l in range(L):
        mask = params["mask"][l]
        inv = 1.0 - mask
        x1 = z * mask
        # x1 @ W1 written as a rank-1 sum (masked channels contribute exact zeros).
        h = params["b1"][l]
        for c in range(C):
            h = h + x1[:, c:c + 1] * params["w1"][l, c:c + 1, :]
        h = jnp.where(h > 0, h, 0.01 * h)
        h = jnp.dot(h.astype(jnp.bfloat16), params["w2"][l],
                    preferred_element_type=jnp.float32) + params["b2"][l]
        h = jnp.where(h > 0, h, 0.01 * h)
        h16 = h.astype(jnp.bfloat16)
        s = jnp.dot(h16, params["w3_s"][l],
                    preferred_element_type=jnp.float32) + params["b3_s"][l]
        t = jnp.dot(h16, params["w3_t"][l],
                    preferred_element_type=jnp.float32) + params["b3_t"][l]
        s = jnp.tanh(s * inv)
        t = t * inv
        z = x1 + inv * (z * jnp.exp(s) + t)
        ldj = ldj + jnp.sum(s, axis=1)
    return z, ldj


if __name__ == "__main__":
    key = jax.random.PRNGKey(0)
    k_param, k_x = jax.random.split(key)

    B, C = 8, 2          # input_channel=2 (module default), small batch
    params = make_realnvp_params(k_param, input_channel=C, hidden=256,
                                 num_layer_pairs=3)
    x = jax.random.normal(k_x, (B, C), jnp.float32)

    z, sum_ldj = realnvp_forward(x, params)
    jax.block_until_ready((z, sum_ldj))

    z_ref, ldj_ref = realnvp_forward_ref(x, params)
    assert jnp.allclose(z, z_ref, atol=1e-3, rtol=1e-3)
    assert jnp.allclose(sum_ldj, ldj_ref, atol=1e-3, rtol=1e-3)

    print("KERNEL_OK")
</pallas_src>

<mosaic_0001>
module attributes {stable_mosaic.version = 11 : i64} {
  func.func @realnvp_kernel(%arg0: i32, %arg1: memref<8x2xf32, #tpu.memory_space<vmem>>, %arg2: memref<6x2x256xf32, #tpu.memory_space<vmem>>, %arg3: memref<6x1x256xf32, #tpu.memory_space<vmem>>, %arg4: memref<6x256x256xbf16, #tpu.memory_space<vmem>>, %arg5: memref<6x1x256xf32, #tpu.memory_space<vmem>>, %arg6: memref<6x256x2xbf16, #tpu.memory_space<vmem>>, %arg7: memref<6x1x2xf32, #tpu.memory_space<vmem>>, %arg8: memref<6x256x2xbf16, #tpu.memory_space<vmem>>, %arg9: memref<6x1x2xf32, #tpu.memory_space<vmem>>, %arg10: memref<6x1x2xf32, #tpu.memory_space<vmem>>, %arg11: memref<8x2xf32, #tpu.memory_space<vmem>>, %arg12: memref<8x1xf32, #tpu.memory_space<vmem>>) attributes {dimension_semantics = [#tpu.dimension_semantics<arbitrary>], iteration_bounds = array<i64: 1>, scalar_prefetch = 0 : i64, scratch_operands = 0 : i64, tpu.core_type = #tpu.core_type<tc>, window_params = [{pipeline_mode = #tpu.pipeline_mode<synchronous>, transform_indices = @transform_0, window_bounds = array<i64: 8, 2>}, {pipeline_mode = #tpu.pipeline_mode<synchronous>, transform_indices = @transform_1, window_bounds = array<i64: 6, 2, 256>}, {pipeline_mode = #tpu.pipeline_mode<synchronous>, transform_indices = @transform_2, window_bounds = array<i64: 6, 1, 256>}, {pipeline_mode = #tpu.pipeline_mode<synchronous>, transform_indices = @transform_3, window_bounds = array<i64: 6, 256, 256>}, {pipeline_mode = #tpu.pipeline_mode<synchronous>, transform_indices = @transform_4, window_bounds = array<i64: 6, 1, 256>}, {pipeline_mode = #tpu.pipeline_mode<synchronous>, transform_indices = @transform_5, window_bounds = array<i64: 6, 256, 2>}, {pipeline_mode = #tpu.pipeline_mode<synchronous>, transform_indices = @transform_6, window_bounds = array<i64: 6, 1, 2>}, {pipeline_mode = #tpu.pipeline_mode<synchronous>, transform_indices = @transform_7, window_bounds = array<i64: 6, 256, 2>}, {pipeline_mode = #tpu.pipeline_mode<synchronous>, transform_indices = @transform_8, window_bounds = array<i64: 6, 1, 2>}, {pipeline_mode = #tpu.pipeline_mode<synchronous>, transform_indices = @transform_9, window_bounds = array<i64: 6, 1, 2>}, {pipeline_mode = #tpu.pipeline_mode<synchronous>, transform_indices = @transform_10, window_bounds = array<i64: 8, 2>}, {pipeline_mode = #tpu.pipeline_mode<synchronous>, transform_indices = @transform_11, window_bounds = array<i64: 8, 1>}]} {
    %c0 = arith.constant 0 : index
    %c0_0 = arith.constant 0 : index
    %0 = vector.load %arg1[%c0, %c0_0] : memref<8x2xf32, #tpu.memory_space<vmem>>, vector<8x2xf32>
    %cst = arith.constant 0.000000e+00 : f32
    %1 = vector.broadcast %cst : f32 to vector<8x1xf32>
    %c0_1 = arith.constant 0 : index
    %c0_2 = arith.constant 0 : index
    %c0_3 = arith.constant 0 : index
    %2 = vector.load %arg10[%c0_1, %c0_2, %c0_3] : memref<6x1x2xf32, #tpu.memory_space<vmem>>, vector<1x1x2xf32>
    %3 = vector.shape_cast %2 : vector<1x1x2xf32> to vector<1x2xf32>
    %cst_4 = arith.constant 1.000000e+00 : f32
    %4 = vector.broadcast %cst_4 : f32 to vector<1x2xf32>
    %5 = arith.subf %4, %3 : vector<1x2xf32>
    %c0_5 = arith.constant 0 : index
    %c0_6 = arith.constant 0 : index
    %c0_7 = arith.constant 0 : index
    %6 = vector.load %arg2[%c0_5, %c0_6, %c0_7] : memref<6x2x256xf32, #tpu.memory_space<vmem>>, vector<1x2x256xf32>
    %7 = vector.shape_cast %6 : vector<1x2x256xf32> to vector<2x256xf32>
    %c0_8 = arith.constant 0 : index
    %c0_9 = arith.constant 0 : index
    %c0_10 = arith.constant 0 : index
    %8 = vector.load %arg3[%c0_8, %c0_9, %c0_10] : memref<6x1x256xf32, #tpu.memory_space<vmem>>, vector<1x1x256xf32>
    %9 = vector.shape_cast %8 : vector<1x1x256xf32> to vector<1x256xf32>
    %10 = vector.extract_strided_slice %0 {offsets = [0, 1], sizes = [8, 1], strides = [1, 1]} : vector<8x2xf32> to vector<8x1xf32>
    %11 = vector.extract_strided_slice %7 {offsets = [1, 0], sizes = [1, 256], strides = [1, 1]} : vector<2x256xf32> to vector<1x256xf32>
    %12 = vector.broadcast %10 : vector<8x1xf32> to vector<8x256xf32>
    %13 = vector.broadcast %11 : vector<1x256xf32> to vector<8x256xf32>
    %14 = arith.mulf %12, %13 : vector<8x256xf32>
    %15 = vector.broadcast %9 : vector<1x256xf32> to vector<8x256xf32>
    %16 = arith.addf %15, %14 : vector<8x256xf32>
    %cst_11 = arith.constant 0.000000e+00 : f32
    %17 = vector.broadcast %cst_11 : f32 to vector<8x256xf32>
    %18 = arith.cmpf ogt, %16, %17 : vector<8x256xf32>
    %cst_12 = arith.constant 0.00999999977 : f32
    %19 = vector.broadcast %cst_12 : f32 to vector<8x256xf32>
    %20 = arith.mulf %19, %16 : vector<8x256xf32>
    %21 = arith.select %18, %16, %20 : vector<8x256xi1>, vector<8x256xf32>
    %22 = arith.truncf %21 : vector<8x256xf32> to vector<8x256xbf16>
    %c0_13 = arith.constant 0 : index
    %c0_14 = arith.constant 0 : index
    %c0_15 = arith.constant 0 : index
    %23 = vector.load %arg4[%c0_13, %c0_14, %c0_15] : memref<6x256x256xbf16, #tpu.memory_space<vmem>>, vector<1x256x256xbf16>
    %24 = vector.shape_cast %23 : vector<1x256x256xbf16> to vector<256x256xbf16>
    %cst_16 = arith.constant dense<0.000000e+00> : vector<8x256xf32>
    %25 = tpu.matmul %22, %24, %cst_16 {dimension_numbers = #tpu.dot_dimension_numbers<[1], [0], [0], [1], [0, 0, 1, 1], [], []>} : vector<8x256xbf16>, vector<256x256xbf16>, vector<8x256xf32> -> vector<8x256xf32>
    %c0_17 = arith.constant 0 : index
    %c0_18 = arith.constant 0 : index
    %c0_19 = arith.constant 0 : index
    %26 = vector.load %arg5[%c0_17, %c0_18, %c0_19] : memref<6x1x256xf32, #tpu.memory_space<vmem>>, vector<1x1x256xf32>
    %27 = vector.shape_cast %26 : vector<1x1x256xf32> to vector<1x256xf32>
    %28 = vector.broadcast %27 : vector<1x256xf32> to vector<8x256xf32>
    %29 = arith.addf %25, %28 : vector<8x256xf32>
    %cst_20 = arith.constant 0.000000e+00 : f32
    %30 = vector.broadcast %cst_20 : f32 to vector<8x256xf32>
    %31 = arith.cmpf ogt, %29, %30 : vector<8x256xf32>
    %cst_21 = arith.constant 0.00999999977 : f32
    %32 = vector.broadcast %cst_21 : f32 to vector<8x256xf32>
    %33 = arith.mulf %32, %29 : vector<8x256xf32>
    %34 = arith.select %31, %29, %33 : vector<8x256xi1>, vector<8x256xf32>
    %35 = arith.truncf %34 : vector<8x256xf32> to vector<8x256xbf16>
    %c0_22 = arith.constant 0 : index
    %c0_23 = arith.constant 0 : index
    %c0_24 = arith.constant 0 : index
    %36 = vector.load %arg6[%c0_22, %c0_23, %c0_24] : memref<6x256x2xbf16, #tpu.memory_space<vmem>>, vector<1x256x2xbf16>
    %37 = vector.shape_cast %36 : vector<1x256x2xbf16> to vector<256x2xbf16>
    %cst_25 = arith.constant dense<0.000000e+00> : vector<8x2xf32>
    %38 = tpu.matmul %35, %37, %cst_25 {dimension_numbers = #tpu.dot_dimension_numbers<[1], [0], [0], [1], [0, 0, 1, 1], [], []>} : vector<8x256xbf16>, vector<256x2xbf16>, vector<8x2xf32> -> vector<8x2xf32>
    %c0_26 = arith.constant 0 : index
    %c0_27 = arith.constant 0 : index
    %c0_28 = arith.constant 0 : index
    %39 = vector.load %arg7[%c0_26, %c0_27, %c0_28] : memref<6x1x2xf32, #tpu.memory_space<vmem>>, vector<1x1x2xf32>
    %40 = vector.shape_cast %39 : vector<1x1x2xf32> to vector<1x2xf32>
    %41 = vector.broadcast %40 : vector<1x2xf32> to vector<8x2xf32>
    %42 = arith.addf %38, %41 : vector<8x2xf32>
    %c0_29 = arith.constant 0 : index
    %c0_30 = arith.constant 0 : index
    %c0_31 = arith.constant 0 : index
    %43 = vector.load %arg8[%c0_29, %c0_30, %c0_31] : memref<6x256x2xbf16, #tpu.memory_space<vmem>>, vector<1x256x2xbf16>
    %44 = vector.shape_cast %43 : vector<1x256x2xbf16> to vector<256x2xbf16>
    %cst_32 = arith.constant dense<0.000000e+00> : vector<8x2xf32>
    %45 = tpu.matmul %35, %44, %cst_32 {dimension_numbers = #tpu.dot_dimension_numbers<[1], [0], [0], [1], [0, 0, 1, 1], [], []>} : vector<8x256xbf16>, vector<256x2xbf16>, vector<8x2xf32> -> vector<8x2xf32>
    %c0_33 = arith.constant 0 : index
    %c0_34 = arith.constant 0 : index
    %c0_35 = arith.constant 0 : index
    %46 = vector.load %arg9[%c0_33, %c0_34, %c0_35] : memref<6x1x2xf32, #tpu.memory_space<vmem>>, vector<1x1x2xf32>
    %47 = vector.shape_cast %46 : vector<1x1x2xf32> to vector<1x2xf32>
    %48 = vector.broadcast %47 : vector<1x2xf32> to vector<8x2xf32>
    %49 = arith.addf %45, %48 : vector<8x2xf32>
    %50 = vector.broadcast %5 : vector<1x2xf32> to vector<8x2xf32>
    %51 = arith.mulf %42, %50 : vector<8x2xf32>
    %52 = math.tanh %51 : vector<8x2xf32>
    %53 = vector.broadcast %5 : vector<1x2xf32> to vector<8x2xf32>
    %54 = arith.mulf %49, %53 : vector<8x2xf32>
    %55 = vector.broadcast %3 : vector<1x2xf32> to vector<8x2xf32>
    %56 = arith.mulf %0, %55 : vector<8x2xf32>
    %57 = math.exp %52 : vector<8x2xf32>
    %58 = arith.mulf %0, %57 : vector<8x2xf32>
    %59 = arith.addf %58, %54 : vector<8x2xf32>
    %60 = vector.broadcast %5 : vector<1x2xf32> to vector<8x2xf32>
    %61 = arith.mulf %60, %59 : vector<8x2xf32>
    %62 = arith.addf %56, %61 : vector<8x2xf32>
    %cst_36 = arith.constant dense<0.000000e+00> : vector<8xf32>
    %63 = vector.multi_reduction <add>, %52, %cst_36 [1] : vector<8x2xf32> to vector<8xf32>
    %64 = vector.shape_cast %63 : vector<8xf32> to vector<8x1xf32>
    %65 = arith.addf %1, %64 : vector<8x1xf32>
    %c1 = arith.constant 1 : index
    %c0_37 = arith.constant 0 : index
    %c0_38 = arith.constant 0 : index
    %66 = vector.load %arg10[%c1, %c0_37, %c0_38] : memref<6x1x2xf32, #tpu.memory_space<vmem>>, vector<1x1x2xf32>
    %67 = vector.shape_cast %66 : vector<1x1x2xf32> to vector<1x2xf32>
    %cst_39 = arith.constant 1.000000e+00 : f32
    %68 = vector.broadcast %cst_39 : f32 to vector<1x2xf32>
    %69 = arith.subf %68, %67 : vector<1x2xf32>
    %c1_40 = arith.constant 1 : index
    %c0_41 = arith.constant 0 : index
    %c0_42 = arith.constant 0 : index
    %70 = vector.load %arg2[%c1_40, %c0_41, %c0_42] : memref<6x2x256xf32, #tpu.memory_space<vmem>>, vector<1x2x256xf32>
    %71 = vector.shape_cast %70 : vector<1x2x256xf32> to vector<2x256xf32>
    %c1_43 = arith.constant 1 : index
    %c0_44 = arith.constant 0 : index
    %c0_45 = arith.constant 0 : index
    %72 = vector.load %arg3[%c1_43, %c0_44, %c0_45] : memref<6x1x256xf32, #tpu.memory_space<vmem>>, vector<1x1x256xf32>
    %73 = vector.shape_cast %72 : vector<1x1x256xf32> to vector<1x256xf32>
    %74 = vector.extract_strided_slice %62 {offsets = [0, 0], sizes = [8, 1], strides = [1, 1]} : vector<8x2xf32> to vector<8x1xf32>
    %75 = vector.extract_strided_slice %71 {offsets = [0, 0], sizes = [1, 256], strides = [1, 1]} : vector<2x256xf32> to vector<1x256xf32>
    %76 = vector.broadcast %74 : vector<8x1xf32> to vector<8x256xf32>
    %77 = vector.broadcast %75 : vector<1x256xf32> to vector<8x256xf32>
    %78 = arith.mulf %76, %77 : vector<8x256xf32>
    %79 = vector.broadcast %73 : vector<1x256xf32> to vector<8x256xf32>
    %80 = arith.addf %79, %78 : vector<8x256xf32>
    %cst_46 = arith.constant 0.000000e+00 : f32
    %81 = vector.broadcast %cst_46 : f32 to vector<8x256xf32>
    %82 = arith.cmpf ogt, %80, %81 : vector<8x256xf32>
    %cst_47 = arith.constant 0.00999999977 : f32
    %83 = vector.broadcast %cst_47 : f32 to vector<8x256xf32>
    %84 = arith.mulf %83, %80 : vector<8x256xf32>
    %85 = arith.select %82, %80, %84 : vector<8x256xi1>, vector<8x256xf32>
    %86 = arith.truncf %85 : vector<8x256xf32> to vector<8x256xbf16>
    %c1_48 = arith.constant 1 : index
    %c0_49 = arith.constant 0 : index
    %c0_50 = arith.constant 0 : index
    %87 = vector.load %arg4[%c1_48, %c0_49, %c0_50] : memref<6x256x256xbf16, #tpu.memory_space<vmem>>, vector<1x256x256xbf16>
    %88 = vector.shape_cast %87 : vector<1x256x256xbf16> to vector<256x256xbf16>
    %cst_51 = arith.constant dense<0.000000e+00> : vector<8x256xf32>
    %89 = tpu.matmul %86, %88, %cst_51 {dimension_numbers = #tpu.dot_dimension_numbers<[1], [0], [0], [1], [0, 0, 1, 1], [], []>} : vector<8x256xbf16>, vector<256x256xbf16>, vector<8x256xf32> -> vector<8x256xf32>
    %c1_52 = arith.constant 1 : index
    %c0_53 = arith.constant 0 : index
    %c0_54 = arith.constant 0 : index
    %90 = vector.load %arg5[%c1_52, %c0_53, %c0_54] : memref<6x1x256xf32, #tpu.memory_space<vmem>>, vector<1x1x256xf32>
    %91 = vector.shape_cast %90 : vector<1x1x256xf32> to vector<1x256xf32>
    %92 = vector.broadcast %91 : vector<1x256xf32> to vector<8x256xf32>
    %93 = arith.addf %89, %92 : vector<8x256xf32>
    %cst_55 = arith.constant 0.000000e+00 : f32
    %94 = vector.broadcast %cst_55 : f32 to vector<8x256xf32>
    %95 = arith.cmpf ogt, %93, %94 : vector<8x256xf32>
    %cst_56 = arith.constant 0.00999999977 : f32
    %96 = vector.broadcast %cst_56 : f32 to vector<8x256xf32>
    %97 = arith.mulf %96, %93 : vector<8x256xf32>
    %98 = arith.select %95, %93, %97 : vector<8x256xi1>, vector<8x256xf32>
    %99 = arith.truncf %98 : vector<8x256xf32> to vector<8x256xbf16>
    %c1_57 = arith.constant 1 : index
    %c0_58 = arith.constant 0 : index
    %c0_59 = arith.constant 0 : index
    %100 = vector.load %arg6[%c1_57, %c0_58, %c0_59] : memref<6x256x2xbf16, #tpu.memory_space<vmem>>, vector<1x256x2xbf16>
    %101 = vector.shape_cast %100 : vector<1x256x2xbf16> to vector<256x2xbf16>
    %cst_60 = arith.constant dense<0.000000e+00> : vector<8x2xf32>
    %102 = tpu.matmul %99, %101, %cst_60 {dimension_numbers = #tpu.dot_dimension_numbers<[1], [0], [0], [1], [0, 0, 1, 1], [], []>} : vector<8x256xbf16>, vector<256x2xbf16>, vector<8x2xf32> -> vector<8x2xf32>
    %c1_61 = arith.constant 1 : index
    %c0_62 = arith.constant 0 : index
    %c0_63 = arith.constant 0 : index
    %103 = vector.load %arg7[%c1_61, %c0_62, %c0_63] : memref<6x1x2xf32, #tpu.memory_space<vmem>>, vector<1x1x2xf32>
    %104 = vector.shape_cast %103 : vector<1x1x2xf32> to vector<1x2xf32>
    %105 = vector.broadcast %104 : vector<1x2xf32> to vector<8x2xf32>
    %106 = arith.addf %102, %105 : vector<8x2xf32>
    %c1_64 = arith.constant 1 : index
    %c0_65 = arith.constant 0 : index
    %c0_66 = arith.constant 0 : index
    %107 = vector.load %arg8[%c1_64, %c0_65, %c0_66] : memref<6x256x2xbf16, #tpu.memory_space<vmem>>, vector<1x256x2xbf16>
    %108 = vector.shape_cast %107 : vector<1x256x2xbf16> to vector<256x2xbf16>
    %cst_67 = arith.constant dense<0.000000e+00> : vector<8x2xf32>
    %109 = tpu.matmul %99, %108, %cst_67 {dimension_numbers = #tpu.dot_dimension_numbers<[1], [0], [0], [1], [0, 0, 1, 1], [], []>} : vector<8x256xbf16>, vector<256x2xbf16>, vector<8x2xf32> -> vector<8x2xf32>
    %c1_68 = arith.constant 1 : index
    %c0_69 = arith.constant 0 : index
    %c0_70 = arith.constant 0 : index
    %110 = vector.load %arg9[%c1_68, %c0_69, %c0_70] : memref<6x1x2xf32, #tpu.memory_space<vmem>>, vector<1x1x2xf32>
    %111 = vector.shape_cast %110 : vector<1x1x2xf32> to vector<1x2xf32>
    %112 = vector.broadcast %111 : vector<1x2xf32> to vector<8x2xf32>
    %113 = arith.addf %109, %112 : vector<8x2xf32>
    %114 = vector.broadcast %69 : vector<1x2xf32> to vector<8x2xf32>
    %115 = arith.mulf %106, %114 : vector<8x2xf32>
    %116 = math.tanh %115 : vector<8x2xf32>
    %117 = vector.broadcast %69 : vector<1x2xf32> to vector<8x2xf32>
    %118 = arith.mulf %113, %117 : vector<8x2xf32>
    %119 = vector.broadcast %67 : vector<1x2xf32> to vector<8x2xf32>
    %120 = arith.mulf %62, %119 : vector<8x2xf32>
    %121 = math.exp %116 : vector<8x2xf32>
    %122 = arith.mulf %62, %121 : vector<8x2xf32>
    %123 = arith.addf %122, %118 : vector<8x2xf32>
    %124 = vector.broadcast %69 : vector<1x2xf32> to vector<8x2xf32>
    %125 = arith.mulf %124, %123 : vector<8x2xf32>
    %126 = arith.addf %120, %125 : vector<8x2xf32>
    %cst_71 = arith.constant dense<0.000000e+00> : vector<8xf32>
    %127 = vector.multi_reduction <add>, %116, %cst_71 [1] : vector<8x2xf32> to vector<8xf32>
    %128 = vector.shape_cast %127 : vector<8xf32> to vector<8x1xf32>
    %129 = arith.addf %65, %128 : vector<8x1xf32>
    %c2 = arith.constant 2 : index
    %c0_72 = arith.constant 0 : index
    %c0_73 = arith.constant 0 : index
    %130 = vector.load %arg10[%c2, %c0_72, %c0_73] : memref<6x1x2xf32, #tpu.memory_space<vmem>>, vector<1x1x2xf32>
    %131 = vector.shape_cast %130 : vector<1x1x2xf32> to vector<1x2xf32>
    %cst_74 = arith.constant 1.000000e+00 : f32
    %132 = vector.broadcast %cst_74 : f32 to vector<1x2xf32>
    %133 = arith.subf %132, %131 : vector<1x2xf32>
    %c2_75 = arith.constant 2 : index
    %c0_76 = arith.constant 0 : index
    %c0_77 = arith.constant 0 : index
    %134 = vector.load %arg2[%c2_75, %c0_76, %c0_77] : memref<6x2x256xf32, #tpu.memory_space<vmem>>, vector<1x2x256xf32>
    %135 = vector.shape_cast %134 : vector<1x2x256xf32> to vector<2x256xf32>
    %c2_78 = arith.constant 2 : index
    %c0_79 = arith.constant 0 : index
    %c0_80 = arith.constant 0 : index
    %136 = vector.load %arg3[%c2_78, %c0_79, %c0_80] : memref<6x1x256xf32, #tpu.memory_space<vmem>>, vector<1x1x256xf32>
    %137 = vector.shape_cast %136 : vector<1x1x256xf32> to vector<1x256xf32>
    %138 = vector.extract_strided_slice %126 {offsets = [0, 1], sizes = [8, 1], strides = [1, 1]} : vector<8x2xf32> to vector<8x1xf32>
    %139 = vector.extract_strided_slice %135 {offsets = [1, 0], sizes = [1, 256], strides = [1, 1]} : vector<2x256xf32> to vector<1x256xf32>
    %140 = vector.broadcast %138 : vector<8x1xf32> to vector<8x256xf32>
    %141 = vector.broadcast %139 : vector<1x256xf32> to vector<8x256xf32>
    %142 = arith.mulf %140, %141 : vector<8x256xf32>
    %143 = vector.broadcast %137 : vector<1x256xf32> to vector<8x256xf32>
    %144 = arith.addf %143, %142 : vector<8x256xf32>
    %cst_81 = arith.constant 0.000000e+00 : f32
    %145 = vector.broadcast %cst_81 : f32 to vector<8x256xf32>
    %146 = arith.cmpf ogt, %144, %145 : vector<8x256xf32>
    %cst_82 = arith.constant 0.00999999977 : f32
    %147 = vector.broadcast %cst_82 : f32 to vector<8x256xf32>
    %148 = arith.mulf %147, %144 : vector<8x256xf32>
    %149 = arith.select %146, %144, %148 : vector<8x256xi1>, vector<8x256xf32>
    %150 = arith.truncf %149 : vector<8x256xf32> to vector<8x256xbf16>
    %c2_83 = arith.constant 2 : index
    %c0_84 = arith.constant 0 : index
    %c0_85 = arith.constant 0 : index
    %151 = vector.load %arg4[%c2_83, %c0_84, %c0_85] : memref<6x256x256xbf16, #tpu.memory_space<vmem>>, vector<1x256x256xbf16>
    %152 = vector.shape_cast %151 : vector<1x256x256xbf16> to vector<256x256xbf16>
    %cst_86 = arith.constant dense<0.000000e+00> : vector<8x256xf32>
    %153 = tpu.matmul %150, %152, %cst_86 {dimension_numbers = #tpu.dot_dimension_numbers<[1], [0], [0], [1], [0, 0, 1, 1], [], []>} : vector<8x256xbf16>, vector<256x256xbf16>, vector<8x256xf32> -> vector<8x256xf32>
    %c2_87 = arith.constant 2 : index
    %c0_88 = arith.constant 0 : index
    %c0_89 = arith.constant 0 : index
    %154 = vector.load %arg5[%c2_87, %c0_88, %c0_89] : memref<6x1x256xf32, #tpu.memory_space<vmem>>, vector<1x1x256xf32>
    %155 = vector.shape_cast %154 : vector<1x1x256xf32> to vector<1x256xf32>
    %156 = vector.broadcast %155 : vector<1x256xf32> to vector<8x256xf32>
    %157 = arith.addf %153, %156 : vector<8x256xf32>
    %cst_90 = arith.constant 0.000000e+00 : f32
    %158 = vector.broadcast %cst_90 : f32 to vector<8x256xf32>
    %159 = arith.cmpf ogt, %157, %158 : vector<8x256xf32>
    %cst_91 = arith.constant 0.00999999977 : f32
    %160 = vector.broadcast %cst_91 : f32 to vector<8x256xf32>
    %161 = arith.mulf %160, %157 : vector<8x256xf32>
    %162 = arith.select %159, %157, %161 : vector<8x256xi1>, vector<8x256xf32>
    %163 = arith.truncf %162 : vector<8x256xf32> to vector<8x256xbf16>
    %c2_92 = arith.constant 2 : index
    %c0_93 = arith.constant 0 : index
    %c0_94 = arith.constant 0 : index
    %164 = vector.load %arg6[%c2_92, %c0_93, %c0_94] : memref<6x256x2xbf16, #tpu.memory_space<vmem>>, vector<1x256x2xbf16>
    %165 = vector.shape_cast %164 : vector<1x256x2xbf16> to vector<256x2xbf16>
    %cst_95 = arith.constant dense<0.000000e+00> : vector<8x2xf32>
    %166 = tpu.matmul %163, %165, %cst_95 {dimension_numbers = #tpu.dot_dimension_numbers<[1], [0], [0], [1], [0, 0, 1, 1], [], []>} : vector<8x256xbf16>, vector<256x2xbf16>, vector<8x2xf32> -> vector<8x2xf32>
    %c2_96 = arith.constant 2 : index
    %c0_97 = arith.constant 0 : index
    %c0_98 = arith.constant 0 : index
    %167 = vector.load %arg7[%c2_96, %c0_97, %c0_98] : memref<6x1x2xf32, #tpu.memory_space<vmem>>, vector<1x1x2xf32>
    %168 = vector.shape_cast %167 : vector<1x1x2xf32> to vector<1x2xf32>
    %169 = vector.broadcast %168 : vector<1x2xf32> to vector<8x2xf32>
    %170 = arith.addf %166, %169 : vector<8x2xf32>
    %c2_99 = arith.constant 2 : index
    %c0_100 = arith.constant 0 : index
    %c0_101 = arith.constant 0 : index
    %171 = vector.load %arg8[%c2_99, %c0_100, %c0_101] : memref<6x256x2xbf16, #tpu.memory_space<vmem>>, vector<1x256x2xbf16>
    %172 = vector.shape_cast %171 : vector<1x256x2xbf16> to vector<256x2xbf16>
    %cst_102 = arith.constant dense<0.000000e+00> : vector<8x2xf32>
    %173 = tpu.matmul %163, %172, %cst_102 {dimension_numbers = #tpu.dot_dimension_numbers<[1], [0], [0], [1], [0, 0, 1, 1], [], []>} : vector<8x256xbf16>, vector<256x2xbf16>, vector<8x2xf32> -> vector<8x2xf32>
    %c2_103 = arith.constant 2 : index
    %c0_104 = arith.constant 0 : index
    %c0_105 = arith.constant 0 : index
    %174 = vector.load %arg9[%c2_103, %c0_104, %c0_105] : memref<6x1x2xf32, #tpu.memory_space<vmem>>, vector<1x1x2xf32>
    %175 = vector.shape_cast %174 : vector<1x1x2xf32> to vector<1x2xf32>
    %176 = vector.broadcast %175 : vector<1x2xf32> to vector<8x2xf32>
    %177 = arith.addf %173, %176 : vector<8x2xf32>
    %178 = vector.broadcast %133 : vector<1x2xf32> to vector<8x2xf32>
    %179 = arith.mulf %170, %178 : vector<8x2xf32>
    %180 = math.tanh %179 : vector<8x2xf32>
    %181 = vector.broadcast %133 : vector<1x2xf32> to vector<8x2xf32>
    %182 = arith.mulf %177, %181 : vector<8x2xf32>
    %183 = vector.broadcast %131 : vector<1x2xf32> to vector<8x2xf32>
    %184 = arith.mulf %126, %183 : vector<8x2xf32>
    %185 = math.exp %180 : vector<8x2xf32>
    %186 = arith.mulf %126, %185 : vector<8x2xf32>
    %187 = arith.addf %186, %182 : vector<8x2xf32>
    %188 = vector.broadcast %133 : vector<1x2xf32> to vector<8x2xf32>
    %189 = arith.mulf %188, %187 : vector<8x2xf32>
    %190 = arith.addf %184, %189 : vector<8x2xf32>
    %cst_106 = arith.constant dense<0.000000e+00> : vector<8xf32>
    %191 = vector.multi_reduction <add>, %180, %cst_106 [1] : vector<8x2xf32> to vector<8xf32>
    %192 = vector.shape_cast %191 : vector<8xf32> to vector<8x1xf32>
    %193 = arith.addf %129, %192 : vector<8x1xf32>
    %c3 = arith.constant 3 : index
    %c0_107 = arith.constant 0 : index
    %c0_108 = arith.constant 0 : index
    %194 = vector.load %arg10[%c3, %c0_107, %c0_108] : memref<6x1x2xf32, #tpu.memory_space<vmem>>, vector<1x1x2xf32>
    %195 = vector.shape_cast %194 : vector<1x1x2xf32> to vector<1x2xf32>
    %cst_109 = arith.constant 1.000000e+00 : f32
    %196 = vector.broadcast %cst_109 : f32 to vector<1x2xf32>
    %197 = arith.subf %196, %195 : vector<1x2xf32>
    %c3_110 = arith.constant 3 : index
    %c0_111 = arith.constant 0 : index
    %c0_112 = arith.constant 0 : index
    %198 = vector.load %arg2[%c3_110, %c0_111, %c0_112] : memref<6x2x256xf32, #tpu.memory_space<vmem>>, vector<1x2x256xf32>
    %199 = vector.shape_cast %198 : vector<1x2x256xf32> to vector<2x256xf32>
    %c3_113 = arith.constant 3 : index
    %c0_114 = arith.constant 0 : index
    %c0_115 = arith.constant 0 : index
    %200 = vector.load %arg3[%c3_113, %c0_114, %c0_115] : memref<6x1x256xf32, #tpu.memory_space<vmem>>, vector<1x1x256xf32>
    %201 = vector.shape_cast %200 : vector<1x1x256xf32> to vector<1x256xf32>
    %202 = vector.extract_strided_slice %190 {offsets = [0, 0], sizes = [8, 1], strides = [1, 1]} : vector<8x2xf32> to vector<8x1xf32>
    %203 = vector.extract_strided_slice %199 {offsets = [0, 0], sizes = [1, 256], strides = [1, 1]} : vector<2x256xf32> to vector<1x256xf32>
    %204 = vector.broadcast %202 : vector<8x1xf32> to vector<8x256xf32>
    %205 = vector.broadcast %203 : vector<1x256xf32> to vector<8x256xf32>
    %206 = arith.mulf %204, %205 : vector<8x256xf32>
    %207 = vector.broadcast %201 : vector<1x256xf32> to vector<8x256xf32>
    %208 = arith.addf %207, %206 : vector<8x256xf32>
    %cst_116 = arith.constant 0.000000e+00 : f32
    %209 = vector.broadcast %cst_116 : f32 to vector<8x256xf32>
    %210 = arith.cmpf ogt, %208, %209 : vector<8x256xf32>
    %cst_117 = arith.constant 0.00999999977 : f32
    %211 = vector.broadcast %cst_117 : f32 to vector<8x256xf32>
    %212 = arith.mulf %211, %208 : vector<8x256xf32>
    %213 = arith.select %210, %208, %212 : vector<8x256xi1>, vector<8x256xf32>
    %214 = arith.truncf %213 : vector<8x256xf32> to vector<8x256xbf16>
    %c3_118 = arith.constant 3 : index
    %c0_119 = arith.constant 0 : index
    %c0_120 = arith.constant 0 : index
    %215 = vector.load %arg4[%c3_118, %c0_119, %c0_120] : memref<6x256x256xbf16, #tpu.memory_space<vmem>>, vector<1x256x256xbf16>
    %216 = vector.shape_cast %215 : vector<1x256x256xbf16> to vector<256x256xbf16>
    %cst_121 = arith.constant dense<0.000000e+00> : vector<8x256xf32>
    %217 = tpu.matmul %214, %216, %cst_121 {dimension_numbers = #tpu.dot_dimension_numbers<[1], [0], [0], [1], [0, 0, 1, 1], [], []>} : vector<8x256xbf16>, vector<256x256xbf16>, vector<8x256xf32> -> vector<8x256xf32>
    %c3_122 = arith.constant 3 : index
    %c0_123 = arith.constant 0 : index
    %c0_124 = arith.constant 0 : index
    %218 = vector.load %arg5[%c3_122, %c0_123, %c0_124] : memref<6x1x256xf32, #tpu.memory_space<vmem>>, vector<1x1x256xf32>
    %219 = vector.shape_cast %218 : vector<1x1x256xf32> to vector<1x256xf32>
    %220 = vector.broadcast %219 : vector<1x256xf32> to vector<8x256xf32>
    %221 = arith.addf %217, %220 : vector<8x256xf32>
    %cst_125 = arith.constant 0.000000e+00 : f32
    %222 = vector.broadcast %cst_125 : f32 to vector<8x256xf32>
    %223 = arith.cmpf ogt, %221, %222 : vector<8x256xf32>
    %cst_126 = arith.constant 0.00999999977 : f32
    %224 = vector.broadcast %cst_126 : f32 to vector<8x256xf32>
    %225 = arith.mulf %224, %221 : vector<8x256xf32>
    %226 = arith.select %223, %221, %225 : vector<8x256xi1>, vector<8x256xf32>
    %227 = arith.truncf %226 : vector<8x256xf32> to vector<8x256xbf16>
    %c3_127 = arith.constant 3 : index
    %c0_128 = arith.constant 0 : index
    %c0_129 = arith.constant 0 : index
    %228 = vector.load %arg6[%c3_127, %c0_128, %c0_129] : memref<6x256x2xbf16, #tpu.memory_space<vmem>>, vector<1x256x2xbf16>
    %229 = vector.shape_cast %228 : vector<1x256x2xbf16> to vector<256x2xbf16>
    %cst_130 = arith.constant dense<0.000000e+00> : vector<8x2xf32>
    %230 = tpu.matmul %227, %229, %cst_130 {dimension_numbers = #tpu.dot_dimension_numbers<[1], [0], [0], [1], [0, 0, 1, 1], [], []>} : vector<8x256xbf16>, vector<256x2xbf16>, vector<8x2xf32> -> vector<8x2xf32>
    %c3_131 = arith.constant 3 : index
    %c0_132 = arith.constant 0 : index
    %c0_133 = arith.constant 0 : index
    %231 = vector.load %arg7[%c3_131, %c0_132, %c0_133] : memref<6x1x2xf32, #tpu.memory_space<vmem>>, vector<1x1x2xf32>
    %232 = vector.shape_cast %231 : vector<1x1x2xf32> to vector<1x2xf32>
    %233 = vector.broadcast %232 : vector<1x2xf32> to vector<8x2xf32>
    %234 = arith.addf %230, %233 : vector<8x2xf32>
    %c3_134 = arith.constant 3 : index
    %c0_135 = arith.constant 0 : index
    %c0_136 = arith.constant 0 : index
    %235 = vector.load %arg8[%c3_134, %c0_135, %c0_136] : memref<6x256x2xbf16, #tpu.memory_space<vmem>>, vector<1x256x2xbf16>
    %236 = vector.shape_cast %235 : vector<1x256x2xbf16> to vector<256x2xbf16>
    %cst_137 = arith.constant dense<0.000000e+00> : vector<8x2xf32>
    %237 = tpu.matmul %227, %236, %cst_137 {dimension_numbers = #tpu.dot_dimension_numbers<[1], [0], [0], [1], [0, 0, 1, 1], [], []>} : vector<8x256xbf16>, vector<256x2xbf16>, vector<8x2xf32> -> vector<8x2xf32>
    %c3_138 = arith.constant 3 : index
    %c0_139 = arith.constant 0 : index
    %c0_140 = arith.constant 0 : index
    %238 = vector.load %arg9[%c3_138, %c0_139, %c0_140] : memref<6x1x2xf32, #tpu.memory_space<vmem>>, vector<1x1x2xf32>
    %239 = vector.shape_cast %238 : vector<1x1x2xf32> to vector<1x2xf32>
    %240 = vector.broadcast %239 : vector<1x2xf32> to vector<8x2xf32>
    %241 = arith.addf %237, %240 : vector<8x2xf32>
    %242 = vector.broadcast %197 : vector<1x2xf32> to vector<8x2xf32>
    %243 = arith.mulf %234, %242 : vector<8x2xf32>
    %244 = math.tanh %243 : vector<8x2xf32>
    %245 = vector.broadcast %197 : vector<1x2xf32> to vector<8x2xf32>
    %246 = arith.mulf %241, %245 : vector<8x2xf32>
    %247 = vector.broadcast %195 : vector<1x2xf32> to vector<8x2xf32>
    %248 = arith.mulf %190, %247 : vector<8x2xf32>
    %249 = math.exp %244 : vector<8x2xf32>
    %250 = arith.mulf %190, %249 : vector<8x2xf32>
    %251 = arith.addf %250, %246 : vector<8x2xf32>
    %252 = vector.broadcast %197 : vector<1x2xf32> to vector<8x2xf32>
    %253 = arith.mulf %252, %251 : vector<8x2xf32>
    %254 = arith.addf %248, %253 : vector<8x2xf32>
    %cst_141 = arith.constant dense<0.000000e+00> : vector<8xf32>
    %255 = vector.multi_reduction <add>, %244, %cst_141 [1] : vector<8x2xf32> to vector<8xf32>
    %256 = vector.shape_cast %255 : vector<8xf32> to vector<8x1xf32>
    %257 = arith.addf %193, %256 : vector<8x1xf32>
    %c4 = arith.constant 4 : index
    %c0_142 = arith.constant 0 : index
    %c0_143 = arith.constant 0 : index
    %258 = vector.load %arg10[%c4, %c0_142, %c0_143] : memref<6x1x2xf32, #tpu.memory_space<vmem>>, vector<1x1x2xf32>
    %259 = vector.shape_cast %258 : vector<1x1x2xf32> to vector<1x2xf32>
    %cst_144 = arith.constant 1.000000e+00 : f32
    %260 = vector.broadcast %cst_144 : f32 to vector<1x2xf32>
    %261 = arith.subf %260, %259 : vector<1x2xf32>
    %c4_145 = arith.constant 4 : index
    %c0_146 = arith.constant 0 : index
    %c0_147 = arith.constant 0 : index
    %262 = vector.load %arg2[%c4_145, %c0_146, %c0_147] : memref<6x2x256xf32, #tpu.memory_space<vmem>>, vector<1x2x256xf32>
    %263 = vector.shape_cast %262 : vector<1x2x256xf32> to vector<2x256xf32>
    %c4_148 = arith.constant 4 : index
    %c0_149 = arith.constant 0 : index
    %c0_150 = arith.constant 0 : index
    %264 = vector.load %arg3[%c4_148, %c0_149, %c0_150] : memref<6x1x256xf32, #tpu.memory_space<vmem>>, vector<1x1x256xf32>
    %265 = vector.shape_cast %264 : vector<1x1x256xf32> to vector<1x256xf32>
    %266 = vector.extract_strided_slice %254 {offsets = [0, 1], sizes = [8, 1], strides = [1, 1]} : vector<8x2xf32> to vector<8x1xf32>
    %267 = vector.extract_strided_slice %263 {offsets = [1, 0], sizes = [1, 256], strides = [1, 1]} : vector<2x256xf32> to vector<1x256xf32>
    %268 = vector.broadcast %266 : vector<8x1xf32> to vector<8x256xf32>
    %269 = vector.broadcast %267 : vector<1x256xf32> to vector<8x256xf32>
    %270 = arith.mulf %268, %269 : vector<8x256xf32>
    %271 = vector.broadcast %265 : vector<1x256xf32> to vector<8x256xf32>
    %272 = arith.addf %271, %270 : vector<8x256xf32>
    %cst_151 = arith.constant 0.000000e+00 : f32
    %273 = vector.broadcast %cst_151 : f32 to vector<8x256xf32>
    %274 = arith.cmpf ogt, %272, %273 : vector<8x256xf32>
    %cst_152 = arith.constant 0.00999999977 : f32
    %275 = vector.broadcast %cst_152 : f32 to vector<8x256xf32>
    %276 = arith.mulf %275, %272 : vector<8x256xf32>
    %277 = arith.select %274, %272, %276 : vector<8x256xi1>, vector<8x256xf32>
    %278 = arith.truncf %277 : vector<8x256xf32> to vector<8x256xbf16>
    %c4_153 = arith.constant 4 : index
    %c0_154 = arith.constant 0 : index
    %c0_155 = arith.constant 0 : index
    %279 = vector.load %arg4[%c4_153, %c0_154, %c0_155] : memref<6x256x256xbf16, #tpu.memory_space<vmem>>, vector<1x256x256xbf16>
    %280 = vector.shape_cast %279 : vector<1x256x256xbf16> to vector<256x256xbf16>
    %cst_156 = arith.constant dense<0.000000e+00> : vector<8x256xf32>
    %281 = tpu.matmul %278, %280, %cst_156 {dimension_numbers = #tpu.dot_dimension_numbers<[1], [0], [0], [1], [0, 0, 1, 1], [], []>} : vector<8x256xbf16>, vector<256x256xbf16>, vector<8x256xf32> -> vector<8x256xf32>
    %c4_157 = arith.constant 4 : index
    %c0_158 = arith.constant 0 : index
    %c0_159 = arith.constant 0 : index
    %282 = vector.load %arg5[%c4_157, %c0_158, %c0_159] : memref<6x1x256xf32, #tpu.memory_space<vmem>>, vector<1x1x256xf32>
    %283 = vector.shape_cast %282 : vector<1x1x256xf32> to vector<1x256xf32>
    %284 = vector.broadcast %283 : vector<1x256xf32> to vector<8x256xf32>
    %285 = arith.addf %281, %284 : vector<8x256xf32>
    %cst_160 = arith.constant 0.000000e+00 : f32
    %286 = vector.broadcast %cst_160 : f32 to vector<8x256xf32>
    %287 = arith.cmpf ogt, %285, %286 : vector<8x256xf32>
    %cst_161 = arith.constant 0.00999999977 : f32
    %288 = vector.broadcast %cst_161 : f32 to vector<8x256xf32>
    %289 = arith.mulf %288, %285 : vector<8x256xf32>
    %290 = arith.select %287, %285, %289 : vector<8x256xi1>, vector<8x256xf32>
    %291 = arith.truncf %290 : vector<8x256xf32> to vector<8x256xbf16>
    %c4_162 = arith.constant 4 : index
    %c0_163 = arith.constant 0 : index
    %c0_164 = arith.constant 0 : index
    %292 = vector.load %arg6[%c4_162, %c0_163, %c0_164] : memref<6x256x2xbf16, #tpu.memory_space<vmem>>, vector<1x256x2xbf16>
    %293 = vector.shape_cast %292 : vector<1x256x2xbf16> to vector<256x2xbf16>
    %cst_165 = arith.constant dense<0.000000e+00> : vector<8x2xf32>
    %294 = tpu.matmul %291, %293, %cst_165 {dimension_numbers = #tpu.dot_dimension_numbers<[1], [0], [0], [1], [0, 0, 1, 1], [], []>} : vector<8x256xbf16>, vector<256x2xbf16>, vector<8x2xf32> -> vector<8x2xf32>
    %c4_166 = arith.constant 4 : index
    %c0_167 = arith.constant 0 : index
    %c0_168 = arith.constant 0 : index
    %295 = vector.load %arg7[%c4_166, %c0_167, %c0_168] : memref<6x1x2xf32, #tpu.memory_space<vmem>>, vector<1x1x2xf32>
    %296 = vector.shape_cast %295 : vector<1x1x2xf32> to vector<1x2xf32>
    %297 = vector.broadcast %296 : vector<1x2xf32> to vector<8x2xf32>
    %298 = arith.addf %294, %297 : vector<8x2xf32>
    %c4_169 = arith.constant 4 : index
    %c0_170 = arith.constant 0 : index
    %c0_171 = arith.constant 0 : index
    %299 = vector.load %arg8[%c4_169, %c0_170, %c0_171] : memref<6x256x2xbf16, #tpu.memory_space<vmem>>, vector<1x256x2xbf16>
    %300 = vector.shape_cast %299 : vector<1x256x2xbf16> to vector<256x2xbf16>
    %cst_172 = arith.constant dense<0.000000e+00> : vector<8x2xf32>
    %301 = tpu.matmul %291, %300, %cst_172 {dimension_numbers = #tpu.dot_dimension_numbers<[1], [0], [0], [1], [0, 0, 1, 1], [], []>} : vector<8x256xbf16>, vector<256x2xbf16>, vector<8x2xf32> -> vector<8x2xf32>
    %c4_173 = arith.constant 4 : index
    %c0_174 = arith.constant 0 : index
    %c0_175 = arith.constant 0 : index
    %302 = vector.load %arg9[%c4_173, %c0_174, %c0_175] : memref<6x1x2xf32, #tpu.memory_space<vmem>>, vector<1x1x2xf32>
    %303 = vector.shape_cast %302 : vector<1x1x2xf32> to vector<1x2xf32>
    %304 = vector.broadcast %303 : vector<1x2xf32> to vector<8x2xf32>
    %305 = arith.addf %301, %304 : vector<8x2xf32>
    %306 = vector.broadcast %261 : vector<1x2xf32> to vector<8x2xf32>
    %307 = arith.mulf %298, %306 : vector<8x2xf32>
    %308 = math.tanh %307 : vector<8x2xf32>
    %309 = vector.broadcast %261 : vector<1x2xf32> to vector<8x2xf32>
    %310 = arith.mulf %305, %309 : vector<8x2xf32>
    %311 = vector.broadcast %259 : vector<1x2xf32> to vector<8x2xf32>
    %312 = arith.mulf %254, %311 : vector<8x2xf32>
    %313 = math.exp %308 : vector<8x2xf32>
    %314 = arith.mulf %254, %313 : vector<8x2xf32>
    %315 = arith.addf %314, %310 : vector<8x2xf32>
    %316 = vector.broadcast %261 : vector<1x2xf32> to vector<8x2xf32>
    %317 = arith.mulf %316, %315 : vector<8x2xf32>
    %318 = arith.addf %312, %317 : vector<8x2xf32>
    %cst_176 = arith.constant dense<0.000000e+00> : vector<8xf32>
    %319 = vector.multi_reduction <add>, %308, %cst_176 [1] : vector<8x2xf32> to vector<8xf32>
    %320 = vector.shape_cast %319 : vector<8xf32> to vector<8x1xf32>
    %321 = arith.addf %257, %320 : vector<8x1xf32>
    %c5 = arith.constant 5 : index
    %c0_177 = arith.constant 0 : index
    %c0_178 = arith.constant 0 : index
    %322 = vector.load %arg10[%c5, %c0_177, %c0_178] : memref<6x1x2xf32, #tpu.memory_space<vmem>>, vector<1x1x2xf32>
    %323 = vector.shape_cast %322 : vector<1x1x2xf32> to vector<1x2xf32>
    %cst_179 = arith.constant 1.000000e+00 : f32
    %324 = vector.broadcast %cst_179 : f32 to vector<1x2xf32>
    %325 = arith.subf %324, %323 : vector<1x2xf32>
    %c5_180 = arith.constant 5 : index
    %c0_181 = arith.constant 0 : index
    %c0_182 = arith.constant 0 : index
    %326 = vector.load %arg2[%c5_180, %c0_181, %c0_182] : memref<6x2x256xf32, #tpu.memory_space<vmem>>, vector<1x2x256xf32>
    %327 = vector.shape_cast %326 : vector<1x2x256xf32> to vector<2x256xf32>
    %c5_183 = arith.constant 5 : index
    %c0_184 = arith.constant 0 : index
    %c0_185 = arith.constant 0 : index
    %328 = vector.load %arg3[%c5_183, %c0_184, %c0_185] : memref<6x1x256xf32, #tpu.memory_space<vmem>>, vector<1x1x256xf32>
    %329 = vector.shape_cast %328 : vector<1x1x256xf32> to vector<1x256xf32>
    %330 = vector.extract_strided_slice %318 {offsets = [0, 0], sizes = [8, 1], strides = [1, 1]} : vector<8x2xf32> to vector<8x1xf32>
    %331 = vector.extract_strided_slice %327 {offsets = [0, 0], sizes = [1, 256], strides = [1, 1]} : vector<2x256xf32> to vector<1x256xf32>
    %332 = vector.broadcast %330 : vector<8x1xf32> to vector<8x256xf32>
    %333 = vector.broadcast %331 : vector<1x256xf32> to vector<8x256xf32>
    %334 = arith.mulf %332, %333 : vector<8x256xf32>
    %335 = vector.broadcast %329 : vector<1x256xf32> to vector<8x256xf32>
    %336 = arith.addf %335, %334 : vector<8x256xf32>
    %cst_186 = arith.constant 0.000000e+00 : f32
    %337 = vector.broadcast %cst_186 : f32 to vector<8x256xf32>
    %338 = arith.cmpf ogt, %336, %337 : vector<8x256xf32>
    %cst_187 = arith.constant 0.00999999977 : f32
    %339 = vector.broadcast %cst_187 : f32 to vector<8x256xf32>
    %340 = arith.mulf %339, %336 : vector<8x256xf32>
    %341 = arith.select %338, %336, %340 : vector<8x256xi1>, vector<8x256xf32>
    %342 = arith.truncf %341 : vector<8x256xf32> to vector<8x256xbf16>
    %c5_188 = arith.constant 5 : index
    %c0_189 = arith.constant 0 : index
    %c0_190 = arith.constant 0 : index
    %343 = vector.load %arg4[%c5_188, %c0_189, %c0_190] : memref<6x256x256xbf16, #tpu.memory_space<vmem>>, vector<1x256x256xbf16>
    %344 = vector.shape_cast %343 : vector<1x256x256xbf16> to vector<256x256xbf16>
    %cst_191 = arith.constant dense<0.000000e+00> : vector<8x256xf32>
    %345 = tpu.matmul %342, %344, %cst_191 {dimension_numbers = #tpu.dot_dimension_numbers<[1], [0], [0], [1], [0, 0, 1, 1], [], []>} : vector<8x256xbf16>, vector<256x256xbf16>, vector<8x256xf32> -> vector<8x256xf32>
    %c5_192 = arith.constant 5 : index
    %c0_193 = arith.constant 0 : index
    %c0_194 = arith.constant 0 : index
    %346 = vector.load %arg5[%c5_192, %c0_193, %c0_194] : memref<6x1x256xf32, #tpu.memory_space<vmem>>, vector<1x1x256xf32>
    %347 = vector.shape_cast %346 : vector<1x1x256xf32> to vector<1x256xf32>
    %348 = vector.broadcast %347 : vector<1x256xf32> to vector<8x256xf32>
    %349 = arith.addf %345, %348 : vector<8x256xf32>
    %cst_195 = arith.constant 0.000000e+00 : f32
    %350 = vector.broadcast %cst_195 : f32 to vector<8x256xf32>
    %351 = arith.cmpf ogt, %349, %350 : vector<8x256xf32>
    %cst_196 = arith.constant 0.00999999977 : f32
    %352 = vector.broadcast %cst_196 : f32 to vector<8x256xf32>
    %353 = arith.mulf %352, %349 : vector<8x256xf32>
    %354 = arith.select %351, %349, %353 : vector<8x256xi1>, vector<8x256xf32>
    %355 = arith.truncf %354 : vector<8x256xf32> to vector<8x256xbf16>
    %c5_197 = arith.constant 5 : index
    %c0_198 = arith.constant 0 : index
    %c0_199 = arith.constant 0 : index
    %356 = vector.load %arg6[%c5_197, %c0_198, %c0_199] : memref<6x256x2xbf16, #tpu.memory_space<vmem>>, vector<1x256x2xbf16>
    %357 = vector.shape_cast %356 : vector<1x256x2xbf16> to vector<256x2xbf16>
    %cst_200 = arith.constant dense<0.000000e+00> : vector<8x2xf32>
    %358 = tpu.matmul %355, %357, %cst_200 {dimension_numbers = #tpu.dot_dimension_numbers<[1], [0], [0], [1], [0, 0, 1, 1], [], []>} : vector<8x256xbf16>, vector<256x2xbf16>, vector<8x2xf32> -> vector<8x2xf32>
    %c5_201 = arith.constant 5 : index
    %c0_202 = arith.constant 0 : index
    %c0_203 = arith.constant 0 : index
    %359 = vector.load %arg7[%c5_201, %c0_202, %c0_203] : memref<6x1x2xf32, #tpu.memory_space<vmem>>, vector<1x1x2xf32>
    %360 = vector.shape_cast %359 : vector<1x1x2xf32> to vector<1x2xf32>
    %361 = vector.broadcast %360 : vector<1x2xf32> to vector<8x2xf32>
    %362 = arith.addf %358, %361 : vector<8x2xf32>
    %c5_204 = arith.constant 5 : index
    %c0_205 = arith.constant 0 : index
    %c0_206 = arith.constant 0 : index
    %363 = vector.load %arg8[%c5_204, %c0_205, %c0_206] : memref<6x256x2xbf16, #tpu.memory_space<vmem>>, vector<1x256x2xbf16>
    %364 = vector.shape_cast %363 : vector<1x256x2xbf16> to vector<256x2xbf16>
    %cst_207 = arith.constant dense<0.000000e+00> : vector<8x2xf32>
    %365 = tpu.matmul %355, %364, %cst_207 {dimension_numbers = #tpu.dot_dimension_numbers<[1], [0], [0], [1], [0, 0, 1, 1], [], []>} : vector<8x256xbf16>, vector<256x2xbf16>, vector<8x2xf32> -> vector<8x2xf32>
    %c5_208 = arith.constant 5 : index
    %c0_209 = arith.constant 0 : index
    %c0_210 = arith.constant 0 : index
    %366 = vector.load %arg9[%c5_208, %c0_209, %c0_210] : memref<6x1x2xf32, #tpu.memory_space<vmem>>, vector<1x1x2xf32>
    %367 = vector.shape_cast %366 : vector<1x1x2xf32> to vector<1x2xf32>
    %368 = vector.broadcast %367 : vector<1x2xf32> to vector<8x2xf32>
    %369 = arith.addf %365, %368 : vector<8x2xf32>
    %370 = vector.broadcast %325 : vector<1x2xf32> to vector<8x2xf32>
    %371 = arith.mulf %362, %370 : vector<8x2xf32>
    %372 = math.tanh %371 : vector<8x2xf32>
    %373 = vector.broadcast %325 : vector<1x2xf32> to vector<8x2xf32>
    %374 = arith.mulf %369, %373 : vector<8x2xf32>
    %375 = vector.broadcast %323 : vector<1x2xf32> to vector<8x2xf32>
    %376 = arith.mulf %318, %375 : vector<8x2xf32>
    %377 = math.exp %372 : vector<8x2xf32>
    %378 = arith.mulf %318, %377 : vector<8x2xf32>
    %379 = arith.addf %378, %374 : vector<8x2xf32>
    %380 = vector.broadcast %325 : vector<1x2xf32> to vector<8x2xf32>
    %381 = arith.mulf %380, %379 : vector<8x2xf32>
    %382 = arith.addf %376, %381 : vector<8x2xf32>
    %cst_211 = arith.constant dense<0.000000e+00> : vector<8xf32>
    %383 = vector.multi_reduction <add>, %372, %cst_211 [1] : vector<8x2xf32> to vector<8xf32>
    %384 = vector.shape_cast %383 : vector<8xf32> to vector<8x1xf32>
    %385 = arith.addf %321, %384 : vector<8x1xf32>
    %c0_212 = arith.constant 0 : index
    %c0_213 = arith.constant 0 : index
    %386 = vector.load %arg11[%c0_212, %c0_213] : memref<8x2xf32, #tpu.memory_space<vmem>>, vector<8x2xf32>
    tpu.vector_store %arg11[%c0_212, %c0_213], %382 {strides = array<i32>} : memref<8x2xf32, #tpu.memory_space<vmem>>, vector<8x2xf32>,
    %c0_214 = arith.constant 0 : index
    %c0_215 = arith.constant 0 : index
    %387 = vector.load %arg12[%c0_214, %c0_215] : memref<8x1xf32, #tpu.memory_space<vmem>>, vector<8x1xf32>
    tpu.vector_store %arg12[%c0_214, %c0_215], %385 {strides = array<i32>} : memref<8x1xf32, #tpu.memory_space<vmem>>, vector<8x1xf32>,
    return
  }
  func.func @transform_0(%arg0: i32) -> (i32, i32) {
    %c0_i32 = arith.constant 0 : i32
    %c0_i32_0 = arith.constant 0 : i32
    %c0_i32_1 = arith.constant 0 : i32
    return %c0_i32, %c0_i32_0 : i32, i32
  }
  func.func @transform_1(%arg0: i32) -> (i32, i32, i32) {
    %c0_i32 = arith.constant 0 : i32
    %c0_i32_0 = arith.constant 0 : i32
    %c0_i32_1 = arith.constant 0 : i32
    %c0_i32_2 = arith.constant 0 : i32
    return %c0_i32, %c0_i32_0, %c0_i32_1 : i32, i32, i32
  }
  func.func @transform_2(%arg0: i32) -> (i32, i32, i32) {
    %c0_i32 = arith.constant 0 : i32
    %c0_i32_0 = arith.constant 0 : i32
    %c0_i32_1 = arith.constant 0 : i32
    %c0_i32_2 = arith.constant 0 : i32
    return %c0_i32, %c0_i32_0, %c0_i32_1 : i32, i32, i32
  }
  func.func @transform_3(%arg0: i32) -> (i32, i32, i32) {
    %c0_i32 = arith.constant 0 : i32
    %c0_i32_0 = arith.constant 0 : i32
    %c0_i32_1 = arith.constant 0 : i32
    %c0_i32_2 = arith.constant 0 : i32
    return %c0_i32, %c0_i32_0, %c0_i32_1 : i32, i32, i32
  }
  func.func @transform_4(%arg0: i32) -> (i32, i32, i32) {
    %c0_i32 = arith.constant 0 : i32
    %c0_i32_0 = arith.constant 0 : i32
    %c0_i32_1 = arith.constant 0 : i32
    %c0_i32_2 = arith.constant 0 : i32
    return %c0_i32, %c0_i32_0, %c0_i32_1 : i32, i32, i32
  }
  func.func @transform_5(%arg0: i32) -> (i32, i32, i32) {
    %c0_i32 = arith.constant 0 : i32
    %c0_i32_0 = arith.constant 0 : i32
    %c0_i32_1 = arith.constant 0 : i32
    %c0_i32_2 = arith.constant 0 : i32
    return %c0_i32, %c0_i32_0, %c0_i32_1 : i32, i32, i32
  }
  func.func @transform_6(%arg0: i32) -> (i32, i32, i32) {
    %c0_i32 = arith.constant 0 : i32
    %c0_i32_0 = arith.constant 0 : i32
    %c0_i32_1 = arith.constant 0 : i32
    %c0_i32_2 = arith.constant 0 : i32
    return %c0_i32, %c0_i32_0, %c0_i32_1 : i32, i32, i32
  }
  func.func @transform_7(%arg0: i32) -> (i32, i32, i32) {
    %c0_i32 = arith.constant 0 : i32
    %c0_i32_0 = arith.constant 0 : i32
    %c0_i32_1 = arith.constant 0 : i32
    %c0_i32_2 = arith.constant 0 : i32
    return %c0_i32, %c0_i32_0, %c0_i32_1 : i32, i32, i32
  }
  func.func @transform_8(%arg0: i32) -> (i32, i32, i32) {
    %c0_i32 = arith.constant 0 : i32
    %c0_i32_0 = arith.constant 0 : i32
    %c0_i32_1 = arith.constant 0 : i32
    %c0_i32_2 = arith.constant 0 : i32
    return %c0_i32, %c0_i32_0, %c0_i32_1 : i32, i32, i32
  }
  func.func @transform_9(%arg0: i32) -> (i32, i32, i32) {
    %c0_i32 = arith.constant 0 : i32
    %c0_i32_0 = arith.constant 0 : i32
    %c0_i32_1 = arith.constant 0 : i32
    %c0_i32_2 = arith.constant 0 : i32
    return %c0_i32, %c0_i32_0, %c0_i32_1 : i32, i32, i32
  }
  func.func @transform_10(%arg0: i32) -> (i32, i32) {
    %c0_i32 = arith.constant 0 : i32
    %c0_i32_0 = arith.constant 0 : i32
    %c0_i32_1 = arith.constant 0 : i32
    return %c0_i32, %c0_i32_0 : i32, i32
  }
  func.func @transform_11(%arg0: i32) -> (i32, i32) {
    %c0_i32 = arith.constant 0 : i32
    %c0_i32_0 = arith.constant 0 : i32
    %c0_i32_1 = arith.constant 0 : i32
    return %c0_i32, %c0_i32_0 : i32, i32
  }
}

</mosaic_0001>

<llo_original>
// kernel: tpu_custom_call.1
$region0: #{tpu_custom_call.1}
  #allocation0 [shape = 'u32[]', space=smem, size = 0x4, offset = 0x4, fixed_abs, tag = 'smem constant byte address 0x4 - core index']
  #allocation1 [shape = 'u32[144,128]{1,0:T(1,128)}', space=vmem, size = 0x12000, scoped, tag = 'internal scratch']
  %s0 = inlined_call_operand.vmem [shape: f32[8,2], index: 0, kind: input, shape index: {}]
  %s1 = inlined_call_operand.vmem [shape: f32[6,2,256], index: 1, kind: input, shape index: {}]
  %s2 = inlined_call_operand.vmem [shape: f32[6,1,256], index: 2, kind: input, shape index: {}]
  %s3 = inlined_call_operand.vmem [shape: bf16[6,256,256], index: 3, kind: input, shape index: {}]
  %s4 = inlined_call_operand.vmem [shape: f32[6,1,256], index: 4, kind: input, shape index: {}]
  %s5 = inlined_call_operand.vmem [shape: bf16[6,256,2], index: 5, kind: input, shape index: {}]
  %s6 = inlined_call_operand.vmem [shape: f32[6,1,2], index: 6, kind: input, shape index: {}]
  %s7 = inlined_call_operand.vmem [shape: bf16[6,256,2], index: 7, kind: input, shape index: {}]
  %s8 = inlined_call_operand.vmem [shape: f32[6,1,2], index: 8, kind: input, shape index: {}]
  %s9 = inlined_call_operand.vmem [shape: f32[6,1,2], index: 9, kind: input, shape index: {}]
  %s10 = inlined_call_operand.vmem [shape: f32[8,2], index: 10, kind: output, shape index: {0}]
  %s11 = inlined_call_operand.vmem [shape: f32[8,1], index: 11, kind: output, shape index: {1}]
  %12 = xla_tuple %s10, %s11
  %s13 = sld [smem:[#allocation0]]
  $region58: #{tpu_custom_call.1} parent=0
    _
  %s15 = ssub.s32 1, %s13
  %s16 = scalar_select 0, %s15, %s13
  // Predicated region
  $region2: #{tpu_custom_call.1} parent=0 // pred_check
    _
  $region3: #{tpu_custom_call.1} parent=0 // pred_check_branch
    %18 = sbr.rel (0) target = $region5
  $region4: #{tpu_custom_call.1} parent=0 // pred_region
    _
  $region5: #{tpu_custom_call.1} parent=0 // pred_fallthru
    _
  // Predicated region
  $region6: #{tpu_custom_call.1} parent=0 // pred_check
    _
  $region7: #{tpu_custom_call.1} parent=0 // pred_check_branch
    %20 = sbr.rel (0) target = $region9
  $region8: #{tpu_custom_call.1} parent=0 // pred_region
    _
  $region9: #{tpu_custom_call.1} parent=0 // pred_fallthru
    _
  // Predicated region
  $region10: #{tpu_custom_call.1} parent=0 // pred_check
    _
  $region11: #{tpu_custom_call.1} parent=0 // pred_check_branch
    %22 = sbr.rel (0) target = $region13
  $region12: #{tpu_custom_call.1} parent=0 // pred_region
    _
  $region13: #{tpu_custom_call.1} parent=0 // pred_fallthru
    _
  // Predicated region
  $region14: #{tpu_custom_call.1} parent=0 // pred_check
    _
  $region15: #{tpu_custom_call.1} parent=0 // pred_check_branch
    %24 = sbr.rel (0) target = $region17
  $region16: #{tpu_custom_call.1} parent=0 // pred_region
    _
  $region17: #{tpu_custom_call.1} parent=0 // pred_fallthru
    _
  // Predicated region
  $region18: #{tpu_custom_call.1} parent=0 // pred_check
    _
  $region19: #{tpu_custom_call.1} parent=0 // pred_check_branch
    %26 = sbr.rel (0) target = $region21
  $region20: #{tpu_custom_call.1} parent=0 // pred_region
    _
  $region21: #{tpu_custom_call.1} parent=0 // pred_fallthru
    _
  // Predicated region
  $region22: #{tpu_custom_call.1} parent=0 // pred_check
    _
  $region23: #{tpu_custom_call.1} parent=0 // pred_check_branch
    %28 = sbr.rel (0) target = $region25
  $region24: #{tpu_custom_call.1} parent=0 // pred_region
    _
  $region25: #{tpu_custom_call.1} parent=0 // pred_fallthru
    _
  // Predicated region
  $region26: #{tpu_custom_call.1} parent=0 // pred_check
    _
  $region27: #{tpu_custom_call.1} parent=0 // pred_check_branch
    %30 = sbr.rel (0) target = $region29
  $region28: #{tpu_custom_call.1} parent=0 // pred_region
    _
  $region29: #{tpu_custom_call.1} parent=0 // pred_fallthru
    _
  // Predicated region
  $region30: #{tpu_custom_call.1} parent=0 // pred_check
    _
  $region31: #{tpu_custom_call.1} parent=0 // pred_check_branch
    %32 = sbr.rel (0) target = $region33
  $region32: #{tpu_custom_call.1} parent=0 // pred_region
    _
  $region33: #{tpu_custom_call.1} parent=0 // pred_fallthru
    _
  // Predicated region
  $region34: #{tpu_custom_call.1} parent=0 // pred_check
    _
  $region35: #{tpu_custom_call.1} parent=0 // pred_check_branch
    %34 = sbr.rel (0) target = $region37
  $region36: #{tpu_custom_call.1} parent=0 // pred_region
    _
  $region37: #{tpu_custom_call.1} parent=0 // pred_fallthru
    _
  // Predicated region
  $region38: #{tpu_custom_call.1} parent=0 // pred_check
    _
  $region39: #{tpu_custom_call.1} parent=0 // pred_check_branch
    %36 = sbr.rel (0) target = $region41
  $region40: #{tpu_custom_call.1} parent=0 // pred_region
    _
  $region41: #{tpu_custom_call.1} parent=0 // pred_fallthru
    _
  %v38 = vld [vmem:[%s0] sm:$0xff]
  %v39 = vld [vmem:[%s9] sm:$0x1]
  %v40 = vsub.f32 1.0, %v39
  %v41 = vld [vmem:[%s1] sm:$0xf]
  %v42 = vld [vmem:[%s2] sm:$0x3]
  %44 = vset.pattern.permute.xlu0 1
  %45 = vperm.xlu0 %44, %v38
  %v46 = vpop.permute.xlu0 %45
  %v49 = vlaneseq
  %v50 = vshrl.u32 %v49, 7
  %v51 = vsub.s32 1, %v50
  %v52 = vrot.slane %v41, %v51
  %v53 = vlaneseq
  %v54 = vshrl.u32 %v53, 7
  %v55 = vsub.s32 3, %v54
  %v56 = vrot.slane %v41, %v55
  %v59 = vlaneseq
  %v60 = vshrl.u32 %v59, 7
  %v61 = vsub.s32 1, %v60
  %v62 = vrot.slane %v52, %v61
  %v63 = vlaneseq
  %v64 = vshrl.u32 %v63, 7
  %v65 = vsub.s32 1, %v64
  %v66 = vrot.slane %v56, %v65
  %v67 = vmul.f32 %v46, %v62
  %v68 = vmul.f32 %v46, %v66
  %v70 = vlaneseq
  %v71 = vshrl.u32 %v70, 7
  %v72 = vsub.s32 0, %v71
  %v73 = vrot.slane %v42, %v72
  %v74 = vlaneseq
  %v75 = vshrl.u32 %v74, 7
  %v76 = vsub.s32 1, %v75
  %v77 = vrot.slane %v42, %v76
  %v80 = vadd.f32 %v73, %v67
  %v81 = vadd.f32 %v77, %v68
  %vm82 = vcmp.gt.f32.partialorder %v80, 0.0
  %vm83 = vcmp.gt.f32.partialorder %v81, 0.0
  %v84 = vmul.f32 %v80, 0.01
  %v85 = vmul.f32 %v81, 0.01
  %v86 = vsel %vm82, %v80, %v84
  %v87 = vsel %vm83, %v81, %v85
  %v88 = vpack.c.bf16 %v86, %v86
  %v89 = vpack.c.bf16 %v87, %v87
  %v90 = vld [vmem:[%s3] sm:$0xff]
  %v91 = vld [vmem:[%s3 + $0x8] sm:$0xff]
  %v92 = vld [vmem:[%s3 + $0x10] sm:$0xff]
  %v93 = vld [vmem:[%s3 + $0x18] sm:$0xff]
  %v94 = vld [vmem:[%s3 + $0x20] sm:$0xff]
  %v95 = vld [vmem:[%s3 + $0x28] sm:$0xff]
  %v96 = vld [vmem:[%s3 + $0x30] sm:$0xff]
  %v97 = vld [vmem:[%s3 + $0x38] sm:$0xff]
  %v98 = vld [vmem:[%s3 + $0x40] sm:$0xff]
  %v99 = vld [vmem:[%s3 + $0x48] sm:$0xff]
  %v100 = vld [vmem:[%s3 + $0x50] sm:$0xff]
  %v101 = vld [vmem:[%s3 + $0x58] sm:$0xff]
  %v102 = vld [vmem:[%s3 + $0x60] sm:$0xff]
  %v103 = vld [vmem:[%s3 + $0x68] sm:$0xff]
  %v104 = vld [vmem:[%s3 + $0x70] sm:$0xff]
  %v105 = vld [vmem:[%s3 + $0x78] sm:$0xff]
  %v106 = vld [vmem:[%s3 + $0x80] sm:$0xff]
  %v107 = vld [vmem:[%s3 + $0x88] sm:$0xff]
  %v108 = vld [vmem:[%s3 + $0x90] sm:$0xff]
  %v109 = vld [vmem:[%s3 + $0x98] sm:$0xff]
  %v110 = vld [vmem:[%s3 + $0xa0] sm:$0xff]
  %v111 = vld [vmem:[%s3 + $0xa8] sm:$0xff]
  %v112 = vld [vmem:[%s3 + $0xb0] sm:$0xff]
  %v113 = vld [vmem:[%s3 + $0xb8] sm:$0xff]
  %v114 = vld [vmem:[%s3 + $0xc0] sm:$0xff]
  %v115 = vld [vmem:[%s3 + $0xc8] sm:$0xff]
  %v116 = vld [vmem:[%s3 + $0xd0] sm:$0xff]
  %v117 = vld [vmem:[%s3 + $0xd8] sm:$0xff]
  %v118 = vld [vmem:[%s3 + $0xe0] sm:$0xff]
  %v119 = vld [vmem:[%s3 + $0xe8] sm:$0xff]
  %v120 = vld [vmem:[%s3 + $0xf0] sm:$0xff]
  %v121 = vld [vmem:[%s3 + $0xf8] sm:$0xff]
  %v122 = vld [vmem:[%s4] sm:$0x3]
  %v124 = vlaneseq
  %v125 = vshrl.u32 %v124, 7
  %v126 = vsub.s32 0, %v125
  %v127 = vrot.slane %v122, %v126
  %v128 = vlaneseq
  %v129 = vshrl.u32 %v128, 7
  %v130 = vsub.s32 1, %v129
  %v131 = vrot.slane %v122, %v130
  %v166 = vunpack.c.l.b16 %v90
  %v167 = vunpack.c.h.b16 %v90
  %v168 = vunpack.c.l.b16 %v91
  %v169 = vunpack.c.h.b16 %v91
  %v170 = vunpack.c.l.b16 %v92
  %v171 = vunpack.c.h.b16 %v92
  %v172 = vunpack.c.l.b16 %v93
  %v173 = vunpack.c.h.b16 %v93
  %v174 = vunpack.c.l.b16 %v94
  %v175 = vunpack.c.h.b16 %v94
  %v176 = vunpack.c.l.b16 %v95
  %v177 = vunpack.c.h.b16 %v95
  %v178 = vunpack.c.l.b16 %v96
  %v179 = vunpack.c.h.b16 %v96
  %v180 = vunpack.c.l.b16 %v97
  %v181 = vunpack.c.h.b16 %v97
  %v182 = vunpack.c.l.b16 %v98
  %v183 = vunpack.c.h.b16 %v98
  %v184 = vunpack.c.l.b16 %v99
  %v185 = vunpack.c.h.b16 %v99
  %v186 = vunpack.c.l.b16 %v100
  %v187 = vunpack.c.h.b16 %v100
  %v188 = vunpack.c.l.b16 %v101
  %v189 = vunpack.c.h.b16 %v101
  %v190 = vunpack.c.l.b16 %v102
  %v191 = vunpack.c.h.b16 %v102
  %v192 = vunpack.c.l.b16 %v103
  %v193 = vunpack.c.h.b16 %v103
  %v194 = vunpack.c.l.b16 %v104
  %v195 = vunpack.c.h.b16 %v104
  %v196 = vunpack.c.l.b16 %v105
  %v197 = vunpack.c.h.b16 %v105
  %v198 = vunpack.c.l.b16 %v106
  %v199 = vunpack.c.h.b16 %v106
  %v200 = vunpack.c.l.b16 %v107
  %v201 = vunpack.c.h.b16 %v107
  %v202 = vunpack.c.l.b16 %v108
  %v203 = vunpack.c.h.b16 %v108
  %v204 = vunpack.c.l.b16 %v109
  %v205 = vunpack.c.h.b16 %v109
  %v206 = vunpack.c.l.b16 %v110
  %v207 = vunpack.c.h.b16 %v110
  %v208 = vunpack.c.l.b16 %v111
  %v209 = vunpack.c.h.b16 %v111
  %v210 = vunpack.c.l.b16 %v112
  %v211 = vunpack.c.h.b16 %v112
  %v212 = vunpack.c.l.b16 %v113
  %v213 = vunpack.c.h.b16 %v113
  %v214 = vunpack.c.l.b16 %v114
  %v215 = vunpack.c.h.b16 %v114
  %v216 = vunpack.c.l.b16 %v115
  %v217 = vunpack.c.h.b16 %v115
  %v218 = vunpack.c.l.b16 %v116
  %v219 = vunpack.c.h.b16 %v116
  %v220 = vunpack.c.l.b16 %v117
  %v221 = vunpack.c.h.b16 %v117
  %v222 = vunpack.c.l.b16 %v118
  %v223 = vunpack.c.h.b16 %v118
  %v224 = vunpack.c.l.b16 %v119
  %v225 = vunpack.c.h.b16 %v119
  %v226 = vunpack.c.l.b16 %v120
  %v227 = vunpack.c.h.b16 %v120
  %v228 = vunpack.c.l.b16 %v121
  %v229 = vunpack.c.h.b16 %v121
  %v230 = vpack.c.b16 %v168, %v166
  %v231 = vpack.c.b16 %v169, %v167
  %v232 = vpack.c.b16 %v172, %v170
  %v233 = vpack.c.b16 %v173, %v171
  %v234 = vpack.c.b16 %v176, %v174
  %v235 = vpack.c.b16 %v177, %v175
  %v236 = vpack.c.b16 %v180, %v178
  %v237 = vpack.c.b16 %v181, %v179
  %v238 = vpack.c.b16 %v184, %v182
  %v239 = vpack.c.b16 %v185, %v183
  %v240 = vpack.c.b16 %v188, %v186
  %v241 = vpack.c.b16 %v189, %v187
  %v242 = vpack.c.b16 %v192, %v190
  %v243 = vpack.c.b16 %v193, %v191
  %v244 = vpack.c.b16 %v196, %v194
  %v245 = vpack.c.b16 %v197, %v195
  %v246 = vpack.c.b16 %v200, %v198
  %v247 = vpack.c.b16 %v201, %v199
  %v248 = vpack.c.b16 %v204, %v202
  %v249 = vpack.c.b16 %v205, %v203
  %v250 = vpack.c.b16 %v208, %v206
  %v251 = vpack.c.b16 %v209, %v207
  %v252 = vpack.c.b16 %v212, %v210
  %v253 = vpack.c.b16 %v213, %v211
  %v254 = vpack.c.b16 %v216, %v214
  %v255 = vpack.c.b16 %v217, %v215
  %v256 = vpack.c.b16 %v220, %v218
  %v257 = vpack.c.b16 %v221, %v219
  %v258 = vpack.c.b16 %v224, %v222
  %v259 = vpack.c.b16 %v225, %v223
  %v260 = vpack.c.b16 %v228, %v226
  %v261 = vpack.c.b16 %v229, %v227
  %294 = vmatprep.subr.bf16.mxu0 %v245
  %295 = vmatpush1.bf16.msra.mxu0 %v244
  %296 = vmatprep.subr.bf16.mxu0 %v243
  %297 = vmatpush1.bf16.msra.mxu0 %v242
  %298 = vmatprep.subr.bf16.mxu0 %v241
  %299 = vmatpush1.bf16.msra.mxu0 %v240
  %300 = vmatprep.subr.bf16.mxu0 %v239
  %301 = vmatpush1.bf16.msra.mxu0 %v238
  %302 = vmatprep.subr.bf16.mxu0 %v237
  %303 = vmatpush1.bf16.msra.mxu0 %v236
  %304 = vmatprep.subr.bf16.mxu0 %v235
  %305 = vmatpush1.bf16.msra.mxu0 %v234
  %306 = vmatprep.subr.bf16.mxu0 %v233
  %307 = vmatpush1.bf16.msra.mxu0 %v232
  %308 = vmatprep.subr.bf16.mxu0 %v231
  %309 = vmatpush1.bf16.msra.mxu0 %v230
  %310 = vmatprep.subr.bf16.mxu0 %v261
  %311 = vmatpush2.bf16.msra.mxu0 %v260
  %312 = vmatprep.subr.bf16.mxu0 %v259
  %313 = vmatpush2.bf16.msra.mxu0 %v258
  %314 = vmatprep.subr.bf16.mxu0 %v257
  %315 = vmatpush2.bf16.msra.mxu0 %v256
  %316 = vmatprep.subr.bf16.mxu0 %v255
  %317 = vmatpush2.bf16.msra.mxu0 %v254
  %318 = vmatprep.subr.bf16.mxu0 %v253
  %319 = vmatpush2.bf16.msra.mxu0 %v252
  %320 = vmatprep.subr.bf16.mxu0 %v251
  %321 = vmatpush2.bf16.msra.mxu0 %v250
  %322 = vmatprep.subr.bf16.mxu0 %v249
  %323 = vmatpush2.bf16.msra.mxu0 %v248
  %324 = vmatprep.subr.bf16.mxu0 %v247
  %325 = vmatpush2.bf16.msra.mxu0 %v246
  %326 = vmatprep.mubr.bf16.mxu0 %v89
  %327 = vmatmul.mubr.bf16.gmra.mxu0 %v88
  %v328 = vpop.f32.mrf.mxu0
  %v329 = vadd.f32 %v127, %v328
  %v330 = vpop.f32.mrf.mxu0
  %v331 = vadd.f32 %v131, %v330
  %v332 = vpop.f32.mrf.mxu0
  %v333 = vpop.f32.mrf.mxu0
  %334 = vdwg.mxu0
  %vm335 = vcmp.gt.f32.partialorder %v329, 0.0
  %vm336 = vcmp.gt.f32.partialorder %v331, 0.0
  %v337 = vmul.f32 %v329, 0.01
  %v338 = vmul.f32 %v331, 0.01
  %v339 = vsel %vm335, %v329, %v337
  %v340 = vsel %vm336, %v331, %v338
  %v341 = vpack.c.bf16 %v339, %v339
  %v342 = vpack.c.bf16 %v340, %v340
  %v343 = vld [vmem:[%s5] sm:$0xf]
  %v344 = vld [vmem:[%s5 + $0x4] sm:$0xf]
  %v345 = vld [vmem:[%s5 + $0x8] sm:$0xf]
  %v346 = vld [vmem:[%s5 + $0xc] sm:$0xf]
  %v347 = vld [vmem:[%s5 + $0x10] sm:$0xf]
  %v348 = vld [vmem:[%s5 + $0x14] sm:$0xf]
  %v349 = vld [vmem:[%s5 + $0x18] sm:$0xf]
  %v350 = vld [vmem:[%s5 + $0x1c] sm:$0xf]
  %v351 = vld [vmem:[%s5 + $0x20] sm:$0xf]
  %v352 = vld [vmem:[%s5 + $0x24] sm:$0xf]
  %v353 = vld [vmem:[%s5 + $0x28] sm:$0xf]
  %v354 = vld [vmem:[%s5 + $0x2c] sm:$0xf]
  %v355 = vld [vmem:[%s5 + $0x30] sm:$0xf]
  %v356 = vld [vmem:[%s5 + $0x34] sm:$0xf]
  %v357 = vld [vmem:[%s5 + $0x38] sm:$0xf]
  %v358 = vld [vmem:[%s5 + $0x3c] sm:$0xf]
  %v359 = vld [vmem:[%s5 + $0x40] sm:$0xf]
  %v360 = vld [vmem:[%s5 + $0x44] sm:$0xf]
  %v361 = vld [vmem:[%s5 + $0x48] sm:$0xf]
  %v362 = vld [vmem:[%s5 + $0x4c] sm:$0xf]
  %v363 = vld [vmem:[%s5 + $0x50] sm:$0xf]
  %v364 = vld [vmem:[%s5 + $0x54] sm:$0xf]
  %v365 = vld [vmem:[%s5 + $0x58] sm:$0xf]
  %v366 = vld [vmem:[%s5 + $0x5c] sm:$0xf]
  %v367 = vld [vmem:[%s5 + $0x60] sm:$0xf]
  %v368 = vld [vmem:[%s5 + $0x64] sm:$0xf]
  %v369 = vld [vmem:[%s5 + $0x68] sm:$0xf]
  %v370 = vld [vmem:[%s5 + $0x6c] sm:$0xf]
  %v371 = vld [vmem:[%s5 + $0x70] sm:$0xf]
  %v372 = vld [vmem:[%s5 + $0x74] sm:$0xf]
  %v373 = vld [vmem:[%s5 + $0x78] sm:$0xf]
  %v374 = vld [vmem:[%s5 + $0x7c] sm:$0xf]
  %v375 = vld [vmem:[%s6] sm:$0x1]
  %v377 = vlaneseq
  %v378 = vshrl.u32 %v377, 7
  %v379 = vsub.s32 0, %v378
  %v380 = vrot.slane %v375, %v379
  %v414 = vunpack.c.l.b16 %v343
  %v415 = vunpack.c.l.b16 %v344
  %v416 = vunpack.c.l.b16 %v345
  %v417 = vunpack.c.l.b16 %v346
  %v418 = vunpack.c.l.b16 %v347
  %v419 = vunpack.c.l.b16 %v348
  %v420 = vunpack.c.l.b16 %v349
  %v421 = vunpack.c.l.b16 %v350
  %v422 = vunpack.c.l.b16 %v351
  %v423 = vunpack.c.l.b16 %v352
  %v424 = vunpack.c.l.b16 %v353
  %v425 = vunpack.c.l.b16 %v354
  %v426 = vunpack.c.l.b16 %v355
  %v427 = vunpack.c.l.b16 %v356
  %v428 = vunpack.c.l.b16 %v357
  %v429 = vunpack.c.l.b16 %v358
  %v430 = vunpack.c.l.b16 %v359
  %v431 = vunpack.c.l.b16 %v360
  %v432 = vunpack.c.l.b16 %v361
  %v433 = vunpack.c.l.b16 %v362
  %v434 = vunpack.c.l.b16 %v363
  %v435 = vunpack.c.l.b16 %v364
  %v436 = vunpack.c.l.b16 %v365
  %v437 = vunpack.c.l.b16 %v366
  %v438 = vunpack.c.l.b16 %v367
  %v439 = vunpack.c.l.b16 %v368
  %v440 = vunpack.c.l.b16 %v369
  %v441 = vunpack.c.l.b16 %v370
  %v442 = vunpack.c.l.b16 %v371
  %v443 = vunpack.c.l.b16 %v372
  %v444 = vunpack.c.l.b16 %v373
  %v445 = vunpack.c.l.b16 %v374
  %v446 = vpack.c.b16 %v415, %v414
  %v447 = vpack.c.b16 %v417, %v416
  %v448 = vpack.c.b16 %v419, %v418
  %v449 = vpack.c.b16 %v421, %v420
  %v450 = vpack.c.b16 %v423, %v422
  %v451 = vpack.c.b16 %v425, %v424
  %v452 = vpack.c.b16 %v427, %v426
  %v453 = vpack.c.b16 %v429, %v428
  %v454 = vpack.c.b16 %v431, %v430
  %v455 = vpack.c.b16 %v433, %v432
  %v456 = vpack.c.b16 %v435, %v434
  %v457 = vpack.c.b16 %v437, %v436
  %v458 = vpack.c.b16 %v439, %v438
  %v459 = vpack.c.b16 %v441, %v440
  %v460 = vpack.c.b16 %v443, %v442
  %v461 = vpack.c.b16 %v445, %v444
  %478 = vmatprep.subr.bf16.mxu0 0
  %479 = vmatpush1.bf16.msra.mxu0 %v453
  %480 = vmatprep.subr.bf16.mxu0 0
  %481 = vmatpush1.bf16.msra.mxu0 %v452
  %482 = vmatprep.subr.bf16.mxu0 0
  %483 = vmatpush1.bf16.msra.mxu0 %v451
  %484 = vmatprep.subr.bf16.mxu0 0
  %485 = vmatpush1.bf16.msra.mxu0 %v450
  %486 = vmatprep.subr.bf16.mxu0 0
  %487 = vmatpush1.bf16.msra.mxu0 %v449
  %488 = vmatprep.subr.bf16.mxu0 0
  %489 = vmatpush1.bf16.msra.mxu0 %v448
  %490 = vmatprep.subr.bf16.mxu0 0
  %491 = vmatpush1.bf16.msra.mxu0 %v447
  %492 = vmatprep.subr.bf16.mxu0 0
  %493 = vmatpush1.bf16.msra.mxu0 %v446
  %494 = vmatprep.subr.bf16.mxu0 0
  %495 = vmatpush2.bf16.msra.mxu0 %v461
  %496 = vmatprep.subr.bf16.mxu0 0
  %497 = vmatpush2.bf16.msra.mxu0 %v460
  %498 = vmatprep.subr.bf16.mxu0 0
  %499 = vmatpush2.bf16.msra.mxu0 %v459
  %500 = vmatprep.subr.bf16.mxu0 0
  %501 = vmatpush2.bf16.msra.mxu0 %v458
  %502 = vmatprep.subr.bf16.mxu0 0
  %503 = vmatpush2.bf16.msra.mxu0 %v457
  %504 = vmatprep.subr.bf16.mxu0 0
  %505 = vmatpush2.bf16.msra.mxu0 %v456
  %506 = vmatprep.subr.bf16.mxu0 0
  %507 = vmatpush2.bf16.msra.mxu0 %v455
  %508 = vmatprep.subr.bf16.mxu0 0
  %509 = vmatpush2.bf16.msra.mxu0 %v454
  %510 = vmatprep.mubr.bf16.mxu0 %v342
  %511 = vmatmul.mubr.bf16.gmra.mxu0 %v341
  %v512 = vpop.f32.mrf.mxu0
  %v513 = vadd.f32 %v380, %v512
  %v514 = vpop.f32.mrf.mxu0
  %v515 = vpop.f32.mrf.mxu0
  %v516 = vpop.f32.mrf.mxu0
  %517 = vdwg.mxu0
  %v518 = vld [vmem:[%s7] sm:$0xf]
  %v519 = vld [vmem:[%s7 + $0x4] sm:$0xf]
  %v520 = vld [vmem:[%s7 + $0x8] sm:$0xf]
  %v521 = vld [vmem:[%s7 + $0xc] sm:$0xf]
  %v522 = vld [vmem:[%s7 + $0x10] sm:$0xf]
  %v523 = vld [vmem:[%s7 + $0x14] sm:$0xf]
  %v524 = vld [vmem:[%s7 + $0x18] sm:$0xf]
  %v525 = vld [vmem:[%s7 + $0x1c] sm:$0xf]
  %v526 = vld [vmem:[%s7 + $0x20] sm:$0xf]
  %v527 = vld [vmem:[%s7 + $0x24] sm:$0xf]
  %v528 = vld [vmem:[%s7 + $0x28] sm:$0xf]
  %v529 = vld [vmem:[%s7 + $0x2c] sm:$0xf]
  %v530 = vld [vmem:[%s7 + $0x30] sm:$0xf]
  %v531 = vld [vmem:[%s7 + $0x34] sm:$0xf]
  %v532 = vld [vmem:[%s7 + $0x38] sm:$0xf]
  %v533 = vld [vmem:[%s7 + $0x3c] sm:$0xf]
  %v534 = vld [vmem:[%s7 + $0x40] sm:$0xf]
  %v535 = vld [vmem:[%s7 + $0x44] sm:$0xf]
  %v536 = vld [vmem:[%s7 + $0x48] sm:$0xf]
  %v537 = vld [vmem:[%s7 + $0x4c] sm:$0xf]
  %v538 = vld [vmem:[%s7 + $0x50] sm:$0xf]
  %v539 = vld [vmem:[%s7 + $0x54] sm:$0xf]
  %v540 = vld [vmem:[%s7 + $0x58] sm:$0xf]
  %v541 = vld [vmem:[%s7 + $0x5c] sm:$0xf]
  %v542 = vld [vmem:[%s7 + $0x60] sm:$0xf]
  %v543 = vld [vmem:[%s7 + $0x64] sm:$0xf]
  %v544 = vld [vmem:[%s7 + $0x68] sm:$0xf]
  %v545 = vld [vmem:[%s7 + $0x6c] sm:$0xf]
  %v546 = vld [vmem:[%s7 + $0x70] sm:$0xf]
  %v547 = vld [vmem:[%s7 + $0x74] sm:$0xf]
  %v548 = vld [vmem:[%s7 + $0x78] sm:$0xf]
  %v549 = vld [vmem:[%s7 + $0x7c] sm:$0xf]
  %v550 = vld [vmem:[%s8] sm:$0x1]
  %v552 = vlaneseq
  %v553 = vshrl.u32 %v552, 7
  %v554 = vsub.s32 0, %v553
  %v555 = vrot.slane %v550, %v554
  %v589 = vunpack.c.l.b16 %v518
  %v590 = vunpack.c.l.b16 %v519
  %v591 = vunpack.c.l.b16 %v520
  %v592 = vunpack.c.l.b16 %v521
  %v593 = vunpack.c.l.b16 %v522
  %v594 = vunpack.c.l.b16 %v523
  %v595 = vunpack.c.l.b16 %v524
  %v596 = vunpack.c.l.b16 %v525
  %v597 = vunpack.c.l.b16 %v526
  %v598 = vunpack.c.l.b16 %v527
  %v599 = vunpack.c.l.b16 %v528
  %v600 = vunpack.c.l.b16 %v529
  %v601 = vunpack.c.l.b16 %v530
  %v602 = vunpack.c.l.b16 %v531
  %v603 = vunpack.c.l.b16 %v532
  %v604 = vunpack.c.l.b16 %v533
  %v605 = vunpack.c.l.b16 %v534
  %v606 = vunpack.c.l.b16 %v535
  %v607 = vunpack.c.l.b16 %v536
  %v608 = vunpack.c.l.b16 %v537
  %v609 = vunpack.c.l.b16 %v538
  %v610 = vunpack.c.l.b16 %v539
  %v611 = vunpack.c.l.b16 %v540
  %v612 = vunpack.c.l.b16 %v541
  %v613 = vunpack.c.l.b16 %v542
  %v614 = vunpack.c.l.b16 %v543
  %v615 = vunpack.c.l.b16 %v544
  %v616 = vunpack.c.l.b16 %v545
  %v617 = vunpack.c.l.b16 %v546
  %v618 = vunpack.c.l.b16 %v547
  %v619 = vunpack.c.l.b16 %v548
  %v620 = vunpack.c.l.b16 %v549
  %v621 = vpack.c.b16 %v590, %v589
  %v622 = vpack.c.b16 %v592, %v591
  %v623 = vpack.c.b16 %v594, %v593
  %v624 = vpack.c.b16 %v596, %v595
  %v625 = vpack.c.b16 %v598, %v597
  %v626 = vpack.c.b16 %v600, %v599
  %v627 = vpack.c.b16 %v602, %v601
  %v628 = vpack.c.b16 %v604, %v603
  %v629 = vpack.c.b16 %v606, %v605
  %v630 = vpack.c.b16 %v608, %v607
  %v631 = vpack.c.b16 %v610, %v609
  %v632 = vpack.c.b16 %v612, %v611
  %v633 = vpack.c.b16 %v614, %v613
  %v634 = vpack.c.b16 %v616, %v615
  %v635 = vpack.c.b16 %v618, %v617
  %v636 = vpack.c.b16 %v620, %v619
  %653 = vmatprep.subr.bf16.mxu0 0
  %654 = vmatpush1.bf16.msra.mxu0 %v628
  %655 = vmatprep.subr.bf16.mxu0 0
  %656 = vmatpush1.bf16.msra.mxu0 %v627
  %657 = vmatprep.subr.bf16.mxu0 0
  %658 = vmatpush1.bf16.msra.mxu0 %v626
  %659 = vmatprep.subr.bf16.mxu0 0
  %660 = vmatpush1.bf16.msra.mxu0 %v625
  %661 = vmatprep.subr.bf16.mxu0 0
  %662 = vmatpush1.bf16.msra.mxu0 %v624
  %663 = vmatprep.subr.bf16.mxu0 0
  %664 = vmatpush1.bf16.msra.mxu0 %v623
  %665 = vmatprep.subr.bf16.mxu0 0
  %666 = vmatpush1.bf16.msra.mxu0 %v622
  %667 = vmatprep.subr.bf16.mxu0 0
  %668 = vmatpush1.bf16.msra.mxu0 %v621
  %669 = vmatprep.subr.bf16.mxu0 0
  %670 = vmatpush2.bf16.msra.mxu0 %v636
  %671 = vmatprep.subr.bf16.mxu0 0
  %672 = vmatpush2.bf16.msra.mxu0 %v635
  %673 = vmatprep.subr.bf16.mxu0 0
  %674 = vmatpush2.bf16.msra.mxu0 %v634
  %675 = vmatprep.subr.bf16.mxu0 0
  %676 = vmatpush2.bf16.msra.mxu0 %v633
  %677 = vmatprep.subr.bf16.mxu0 0
  %678 = vmatpush2.bf16.msra.mxu0 %v632
  %679 = vmatprep.subr.bf16.mxu0 0
  %680 = vmatpush2.bf16.msra.mxu0 %v631
  %681 = vmatprep.subr.bf16.mxu0 0
  %682 = vmatpush2.bf16.msra.mxu0 %v630
  %683 = vmatprep.subr.bf16.mxu0 0
  %684 = vmatpush2.bf16.msra.mxu0 %v629
  %685 = vmatprep.mubr.bf16.mxu0 %v342
  %686 = vmatmul.mubr.bf16.gmra.mxu0 %v341
  %v687 = vpop.f32.mrf.mxu0
  %v688 = vadd.f32 %v555, %v687
  %v689 = vpop.f32.mrf.mxu0
  %v690 = vpop.f32.mrf.mxu0
  %v691 = vpop.f32.mrf.mxu0
  %692 = vdwg.mxu0
  %v694 = vlaneseq
  %v695 = vshrl.u32 %v694, 7
  %v696 = vsub.s32 0, %v695
  %v697 = vrot.slane %v40, %v696
  %v699 = vmul.f32 %v513, %v697
  %v700 = vtanh.pop %v699
  %v701 = vmul.f32 %v688, %v697
  %v703 = vlaneseq
  %v704 = vshrl.u32 %v703, 7
  %v705 = vsub.s32 0, %v704
  %v706 = vrot.slane %v39, %v705
  %v708 = vmul.f32 %v38, %v706
  %v709 = vmul.f32 %v700, 1.442695
  %v710 = vpow.pop %v709
  %v711 = vmul.f32 %v38, %v710
  %v712 = vadd.f32 %v711, %v701
  %v713 = vmul.f32 %v697, %v712
  %v714 = vadd.f32 %v708, %v713
  %vm715 = vcmask 15360
  %v716 = vsel %vm715, %v700, 0.0
  %717 = vadd.xlane.f32.xlu0 %v716
  %v718 = vpop.xlane.xlu0 %717
  %v719 = vadd.f32 %v718, 0.0
  %s720 = scalar_lea.vmem %s9, 1
  %v721 = vld [vmem:[%s720] sm:$0x1]
  %v722 = vsub.f32 1.0, %v721
  %s723 = scalar_lea.vmem %s1, 4
  %v724 = vld [vmem:[%s723] sm:$0xf]
  %s725 = scalar_lea.vmem %s2, 2
  %v726 = vld [vmem:[%s725] sm:$0x3]
  %728 = vset.pattern.permute.xlu0 0
  %729 = vperm.xlu0 %728, %v714
  %v730 = vpop.permute.xlu0 %729
  %v733 = vlaneseq
  %v734 = vshrl.u32 %v733, 7
  %v735 = vsub.s32 0, %v734
  %v736 = vrot.slane %v724, %v735
  %v737 = vlaneseq
  %v738 = vshrl.u32 %v737, 7
  %v739 = vsub.s32 2, %v738
  %v740 = vrot.slane %v724, %v739
  %v743 = vlaneseq
  %v744 = vshrl.u32 %v743, 7
  %v745 = vsub.s32 0, %v744
  %v746 = vrot.slane %v736, %v745
  %v747 = vlaneseq
  %v748 = vshrl.u32 %v747, 7
  %v749 = vsub.s32 0, %v748
  %v750 = vrot.slane %v740, %v749
  %v751 = vmul.f32 %v730, %v746
  %v752 = vmul.f32 %v730, %v750
  %v754 = vlaneseq
  %v755 = vshrl.u32 %v754, 7
  %v756 = vsub.s32 0, %v755
  %v757 = vrot.slane %v726, %v756
  %v758 = vlaneseq
  %v759 = vshrl.u32 %v758, 7
  %v760 = vsub.s32 1, %v759
  %v761 = vrot.slane %v726, %v760
  %v764 = vadd.f32 %v757, %v751
  %v765 = vadd.f32 %v761, %v752
  %vm766 = vcmp.gt.f32.partialorder %v764, 0.0
  %vm767 = vcmp.gt.f32.partialorder %v765, 0.0
  %v768 = vmul.f32 %v764, 0.01
  %v769 = vmul.f32 %v765, 0.01
  %v770 = vsel %vm766, %v764, %v768
  %v771 = vsel %vm767, %v765, %v769
  %v772 = vpack.c.bf16 %v770, %v770
  %v773 = vpack.c.bf16 %v771, %v771
  %s774 = scalar_lea.vmem %s3, 256
  %v775 = vld [vmem:[%s774] sm:$0xff]
  %v776 = vld [vmem:[%s774 + $0x8] sm:$0xff]
  %v777 = vld [vmem:[%s774 + $0x10] sm:$0xff]
  %v778 = vld [vmem:[%s774 + $0x18] sm:$0xff]
  %v779 = vld [vmem:[%s774 + $0x20] sm:$0xff]
  %v780 = vld [vmem:[%s774 + $0x28] sm:$0xff]
  %v781 = vld [vmem:[%s774 + $0x30] sm:$0xff]
  %v782 = vld [vmem:[%s774 + $0x38] sm:$0xff]
  %v783 = vld [vmem:[%s774 + $0x40] sm:$0xff]
  %v784 = vld [vmem:[%s774 + $0x48] sm:$0xff]
  %v785 = vld [vmem:[%s774 + $0x50] sm:$0xff]
  %v786 = vld [vmem:[%s774 + $0x58] sm:$0xff]
  %v787 = vld [vmem:[%s774 + $0x60] sm:$0xff]
  %v788 = vld [vmem:[%s774 + $0x68] sm:$0xff]
  %v789 = vld [vmem:[%s774 + $0x70] sm:$0xff]
  %v790 = vld [vmem:[%s774 + $0x78] sm:$0xff]
  %v791 = vld [vmem:[%s774 + $0x80] sm:$0xff]
  %v792 = vld [vmem:[%s774 + $0x88] sm:$0xff]
  %v793 = vld [vmem:[%s774 + $0x90] sm:$0xff]
  %v794 = vld [vmem:[%s774 + $0x98] sm:$0xff]
  %v795 = vld [vmem:[%s774 + $0xa0] sm:$0xff]
  %v796 = vld [vmem:[%s774 + $0xa8] sm:$0xff]
  %v797 = vld [vmem:[%s774 + $0xb0] sm:$0xff]
  %v798 = vld [vmem:[%s774 + $0xb8] sm:$0xff]
  %v799 = vld [vmem:[%s774 + $0xc0] sm:$0xff]
  %v800 = vld [vmem:[%s774 + $0xc8] sm:$0xff]
  %v801 = vld [vmem:[%s774 + $0xd0] sm:$0xff]
  %v802 = vld [vmem:[%s774 + $0xd8] sm:$0xff]
  %v803 = vld [vmem:[%s774 + $0xe0] sm:$0xff]
  %v804 = vld [vmem:[%s774 + $0xe8] sm:$0xff]
  %v805 = vld [vmem:[%s774 + $0xf0] sm:$0xff]
  %v806 = vld [vmem:[%s774 + $0xf8] sm:$0xff]
  %s807 = scalar_lea.vmem %s4, 2
  %v808 = vld [vmem:[%s807] sm:$0x3]
  %v810 = vlaneseq
  %v811 = vshrl.u32 %v810, 7
  %v812 = vsub.s32 0, %v811
  %v813 = vrot.slane %v808, %v812
  %v814 = vlaneseq
  %v815 = vshrl.u32 %v814, 7
  %v816 = vsub.s32 1, %v815
  %v817 = vrot.slane %v808, %v816
  %v852 = vunpack.c.l.b16 %v775
  %v853 = vunpack.c.h.b16 %v775
  %v854 = vunpack.c.l.b16 %v776
  %v855 = vunpack.c.h.b16 %v776
  %v856 = vunpack.c.l.b16 %v777
  %v857 = vunpack.c.h.b16 %v777
  %v858 = vunpack.c.l.b16 %v778
  %v859 = vunpack.c.h.b16 %v778
  %v860 = vunpack.c.l.b16 %v779
  %v861 = vunpack.c.h.b16 %v779
  %v862 = vunpack.c.l.b16 %v780
  %v863 = vunpack.c.h.b16 %v780
  %v864 = vunpack.c.l.b16 %v781
  %v865 = vunpack.c.h.b16 %v781
  %v866 = vunpack.c.l.b16 %v782
  %v867 = vunpack.c.h.b16 %v782
  %v868 = vunpack.c.l.b16 %v783
  %v869 = vunpack.c.h.b16 %v783
  %v870 = vunpack.c.l.b16 %v784
  %v871 = vunpack.c.h.b16 %v784
  %v872 = vunpack.c.l.b16 %v785
  %v873 = vunpack.c.h.b16 %v785
  %v874 = vunpack.c.l.b16 %v786
  %v875 = vunpack.c.h.b16 %v786
  %v876 = vunpack.c.l.b16 %v787
  %v877 = vunpack.c.h.b16 %v787
  %v878 = vunpack.c.l.b16 %v788
  %v879 = vunpack.c.h.b16 %v788
  %v880 = vunpack.c.l.b16 %v789
  %v881 = vunpack.c.h.b16 %v789
  %v882 = vunpack.c.l.b16 %v790
  %v883 = vunpack.c.h.b16 %v790
  %v884 = vunpack.c.l.b16 %v791
  %v885 = vunpack.c.h.b16 %v791
  %v886 = vunpack.c.l.b16 %v792
  %v887 = vunpack.c.h.b16 %v792
  %v888 = vunpack.c.l.b16 %v793
  %v889 = vunpack.c.h.b16 %v793
  %v890 = vunpack.c.l.b16 %v794
  %v891 = vunpack.c.h.b16 %v794
  %v892 = vunpack.c.l.b16 %v795
  %v893 = vunpack.c.h.b16 %v795
  %v894 = vunpack.c.l.b16 %v796
  %v895 = vunpack.c.h.b16 %v796
  %v896 = vunpack.c.l.b16 %v797
  %v897 = vunpack.c.h.b16 %v797
  %v898 = vunpack.c.l.b16 %v798
  %v899 = vunpack.c.h.b16 %v798
  %v900 = vunpack.c.l.b16 %v799
  %v901 = vunpack.c.h.b16 %v799
  %v902 = vunpack.c.l.b16 %v800
  %v903 = vunpack.c.h.b16 %v800
  %v904 = vunpack.c.l.b16 %v801
  %v905 = vunpack.c.h.b16 %v801
  %v906 = vunpack.c.l.b16 %v802
  %v907 = vunpack.c.h.b16 %v802
  %v908 = vunpack.c.l.b16 %v803
  %v909 = vunpack.c.h.b16 %v803
  %v910 = vunpack.c.l.b16 %v804
  %v911 = vunpack.c.h.b16 %v804
  %v912 = vunpack.c.l.b16 %v805
  %v913 = vunpack.c.h.b16 %v805
  %v914 = vunpack.c.l.b16 %v806
  %v915 = vunpack.c.h.b16 %v806
  %v916 = vpack.c.b16 %v854, %v852
  %v917 = vpack.c.b16 %v855, %v853
  %v918 = vpack.c.b16 %v858, %v856
  %v919 = vpack.c.b16 %v859, %v857
  %v920 = vpack.c.b16 %v862, %v860
  %v921 = vpack.c.b16 %v863, %v861
  %v922 = vpack.c.b16 %v866, %v864
  %v923 = vpack.c.b16 %v867, %v865
  %v924 = vpack.c.b16 %v870, %v868
  %v925 = vpack.c.b16 %v871, %v869
  %v926 = vpack.c.b16 %v874, %v872
  %v927 = vpack.c.b16 %v875, %v873
  %v928 = vpack.c.b16 %v878, %v876
  %v929 = vpack.c.b16 %v879, %v877
  %v930 = vpack.c.b16 %v882, %v880
  %v931 = vpack.c.b16 %v883, %v881
  %v932 = vpack.c.b16 %v886, %v884
  %v933 = vpack.c.b16 %v887, %v885
  %v934 = vpack.c.b16 %v890, %v888
  %v935 = vpack.c.b16 %v891, %v889
  %v936 = vpack.c.b16 %v894, %v892
  %v937 = vpack.c.b16 %v895, %v893
  %v938 = vpack.c.b16 %v898, %v896
  %v939 = vpack.c.b16 %v899, %v897
  %v940 = vpack.c.b16 %v902, %v900
  %v941 = vpack.c.b16 %v903, %v901
  %v942 = vpack.c.b16 %v906, %v904
  %v943 = vpack.c.b16 %v907, %v905
  %v944 = vpack.c.b16 %v910, %v908
  %v945 = vpack.c.b16 %v911, %v909
  %v946 = vpack.c.b16 %v914, %v912
  %v947 = vpack.c.b16 %v915, %v913
  %980 = vmatprep.subr.bf16.mxu0 %v931
  %981 = vmatpush1.bf16.msra.mxu0 %v930
  %982 = vmatprep.subr.bf16.mxu0 %v929
  %983 = vmatpush1.bf16.msra.mxu0 %v928
  %984 = vmatprep.subr.bf16.mxu0 %v927
  %985 = vmatpush1.bf16.msra.mxu0 %v926
  %986 = vmatprep.subr.bf16.mxu0 %v925
  %987 = vmatpush1.bf16.msra.mxu0 %v924
  %988 = vmatprep.subr.bf16.mxu0 %v923
  %989 = vmatpush1.bf16.msra.mxu0 %v922
  %990 = vmatprep.subr.bf16.mxu0 %v921
  %991 = vmatpush1.bf16.msra.mxu0 %v920
  %992 = vmatprep.subr.bf16.mxu0 %v919
  %993 = vmatpush1.bf16.msra.mxu0 %v918
  %994 = vmatprep.subr.bf16.mxu0 %v917
  %995 = vmatpush1.bf16.msra.mxu0 %v916
  %996 = vmatprep.subr.bf16.mxu0 %v947
  %997 = vmatpush2.bf16.msra.mxu0 %v946
  %998 = vmatprep.subr.bf16.mxu0 %v945
  %999 = vmatpush2.bf16.msra.mxu0 %v944
  %1000 = vmatprep.subr.bf16.mxu0 %v943
  %1001 = vmatpush2.bf16.msra.mxu0 %v942
  %1002 = vmatprep.subr.bf16.mxu0 %v941
  %1003 = vmatpush2.bf16.msra.mxu0 %v940
  %1004 = vmatprep.subr.bf16.mxu0 %v939
  %1005 = vmatpush2.bf16.msra.mxu0 %v938
  %1006 = vmatprep.subr.bf16.mxu0 %v937
  %1007 = vmatpush2.bf16.msra.mxu0 %v936
  %1008 = vmatprep.subr.bf16.mxu0 %v935
  %1009 = vmatpush2.bf16.msra.mxu0 %v934
  %1010 = vmatprep.subr.bf16.mxu0 %v933
  %1011 = vmatpush2.bf16.msra.mxu0 %v932
  %1012 = vmatprep.mubr.bf16.mxu0 %v773
  %1013 = vmatmul.mubr.bf16.gmra.mxu0 %v772
  %v1014 = vpop.f32.mrf.mxu0
  %v1015 = vadd.f32 %v813, %v1014
  %v1016 = vpop.f32.mrf.mxu0
  %v1017 = vadd.f32 %v817, %v1016
  %v1018 = vpop.f32.mrf.mxu0
  %v1019 = vpop.f32.mrf.mxu0
  %1020 = vdwg.mxu0
  %vm1021 = vcmp.gt.f32.partialorder %v1015, 0.0
  %vm1022 = vcmp.gt.f32.partialorder %v1017, 0.0
  %v1023 = vmul.f32 %v1015, 0.01
  %v1024 = vmul.f32 %v1017, 0.01
  %v1025 = vsel %vm1021, %v1015, %v1023
  %v1026 = vsel %vm1022, %v1017, %v1024
  %v1027 = vpack.c.bf16 %v1025, %v1025
  %v1028 = vpack.c.bf16 %v1026, %v1026
  %s1029 = scalar_lea.vmem %s5, 128
  %v1030 = vld [vmem:[%s1029] sm:$0xf]
  %v1031 = vld [vmem:[%s1029 + $0x4] sm:$0xf]
  %v1032 = vld [vmem:[%s1029 + $0x8] sm:$0xf]
  %v1033 = vld [vmem:[%s1029 + $0xc] sm:$0xf]
  %v1034 = vld [vmem:[%s1029 + $0x10] sm:$0xf]
  %v1035 = vld [vmem:[%s1029 + $0x14] sm:$0xf]
  %v1036 = vld [vmem:[%s1029 + $0x18] sm:$0xf]
  %v1037 = vld [vmem:[%s1029 + $0x1c] sm:$0xf]
  %v1038 = vld [vmem:[%s1029 + $0x20] sm:$0xf]
  %v1039 = vld [vmem:[%s1029 + $0x24] sm:$0xf]
  %v1040 = vld [vmem:[%s1029 + $0x28] sm:$0xf]
  %v1041 = vld [vmem:[%s1029 + $0x2c] sm:$0xf]
  %v1042 = vld [vmem:[%s1029 + $0x30] sm:$0xf]
  %v1043 = vld [vmem:[%s1029 + $0x34] sm:$0xf]
  %v1044 = vld [vmem:[%s1029 + $0x38] sm:$0xf]
  %v1045 = vld [vmem:[%s1029 + $0x3c] sm:$0xf]
  %v1046 = vld [vmem:[%s1029 + $0x40] sm:$0xf]
  %v1047 = vld [vmem:[%s1029 + $0x44] sm:$0xf]
  %v1048 = vld [vmem:[%s1029 + $0x48] sm:$0xf]
  %v1049 = vld [vmem:[%s1029 + $0x4c] sm:$0xf]
  %v1050 = vld [vmem:[%s1029 + $0x50] sm:$0xf]
  %v1051 = vld [vmem:[%s1029 + $0x54] sm:$0xf]
  %v1052 = vld [vmem:[%s1029 + $0x58] sm:$0xf]
  %v1053 = vld [vmem:[%s1029 + $0x5c] sm:$0xf]
  %v1054 = vld [vmem:[%s1029 + $0x60] sm:$0xf]
  %v1055 = vld [vmem:[%s1029 + $0x64] sm:$0xf]
  %v1056 = vld [vmem:[%s1029 + $0x68] sm:$0xf]
  %v1057 = vld [vmem:[%s1029 + $0x6c] sm:$0xf]
  %v1058 = vld [vmem:[%s1029 + $0x70] sm:$0xf]
  %v1059 = vld [vmem:[%s1029 + $0x74] sm:$0xf]
  %v1060 = vld [vmem:[%s1029 + $0x78] sm:$0xf]
  %v1061 = vld [vmem:[%s1029 + $0x7c] sm:$0xf]
  %s1062 = scalar_lea.vmem %s6, 1
  %v1063 = vld [vmem:[%s1062] sm:$0x1]
  %v1065 = vlaneseq
  %v1066 = vshrl.u32 %v1065, 7
  %v1067 = vsub.s32 0, %v1066
  %v1068 = vrot.slane %v1063, %v1067
  %v1102 = vunpack.c.l.b16 %v1030
  %v1103 = vunpack.c.l.b16 %v1031
  %v1104 = vunpack.c.l.b16 %v1032
  %v1105 = vunpack.c.l.b16 %v1033
  %v1106 = vunpack.c.l.b16 %v1034
  %v1107 = vunpack.c.l.b16 %v1035
  %v1108 = vunpack.c.l.b16 %v1036
  %v1109 = vunpack.c.l.b16 %v1037
  %v1110 = vunpack.c.l.b16 %v1038
  %v1111 = vunpack.c.l.b16 %v1039
  %v1112 = vunpack.c.l.b16 %v1040
  %v1113 = vunpack.c.l.b16 %v1041
  %v1114 = vunpack.c.l.b16 %v1042
  %v1115 = vunpack.c.l.b16 %v1043
  %v1116 = vunpack.c.l.b16 %v1044
  %v1117 = vunpack.c.l.b16 %v1045
  %v1118 = vunpack.c.l.b16 %v1046
  %v1119 = vunpack.c.l.b16 %v1047
  %v1120 = vunpack.c.l.b16 %v1048
  %v1121 = vunpack.c.l.b16 %v1049
  %v1122 = vunpack.c.l.b16 %v1050
  %v1123 = vunpack.c.l.b16 %v1051
  %v1124 = vunpack.c.l.b16 %v1052
  %v1125 = vunpack.c.l.b16 %v1053
  %v1126 = vunpack.c.l.b16 %v1054
  %v1127 = vunpack.c.l.b16 %v1055
  %v1128 = vunpack.c.l.b16 %v1056
  %v1129 = vunpack.c.l.b16 %v1057
  %v1130 = vunpack.c.l.b16 %v1058
  %v1131 = vunpack.c.l.b16 %v1059
  %v1132 = vunpack.c.l.b16 %v1060
  %v1133 = vunpack.c.l.b16 %v1061
  %v1134 = vpack.c.b16 %v1103, %v1102
  %v1135 = vpack.c.b16 %v1105, %v1104
  %v1136 = vpack.c.b16 %v1107, %v1106
  %v1137 = vpack.c.b16 %v1109, %v1108
  %v1138 = vpack.c.b16 %v1111, %v1110
  %v1139 = vpack.c.b16 %v1113, %v1112
  %v1140 = vpack.c.b16 %v1115, %v1114
  %v1141 = vpack.c.b16 %v1117, %v1116
  %v1142 = vpack.c.b16 %v1119, %v1118
  %v1143 = vpack.c.b16 %v1121, %v1120
  %v1144 = vpack.c.b16 %v1123, %v1122
  %v1145 = vpack.c.b16 %v1125, %v1124
  %v1146 = vpack.c.b16 %v1127, %v1126
  %v1147 = vpack.c.b16 %v1129, %v1128
  %v1148 = vpack.c.b16 %v1131, %v1130
  %v1149 = vpack.c.b16 %v1133, %v1132
  %1166 = vmatprep.subr.bf16.mxu0 0
  %1167 = vmatpush1.bf16.msra.mxu0 %v1141
  %1168 = vmatprep.subr.bf16.mxu0 0
  %1169 = vmatpush1.bf16.msra.mxu0 %v1140
  %1170 = vmatprep.subr.bf16.mxu0 0
  %1171 = vmatpush1.bf16.msra.mxu0 %v1139
  %1172 = vmatprep.subr.bf16.mxu0 0
  %1173 = vmatpush1.bf16.msra.mxu0 %v1138
  %1174 = vmatprep.subr.bf16.mxu0 0
  %1175 = vmatpush1.bf16.msra.mxu0 %v1137
  %1176 = vmatprep.subr.bf16.mxu0 0
  %1177 = vmatpush1.bf16.msra.mxu0 %v1136
  %1178 = vmatprep.subr.bf16.mxu0 0
  %1179 = vmatpush1.bf16.msra.mxu0 %v1135
  %1180 = vmatprep.subr.bf16.mxu0 0
  %1181 = vmatpush1.bf16.msra.mxu0 %v1134
  %1182 = vmatprep.subr.bf16.mxu0 0
  %1183 = vmatpush2.bf16.msra.mxu0 %v1149
  %1184 = vmatprep.subr.bf16.mxu0 0
  %1185 = vmatpush2.bf16.msra.mxu0 %v1148
  %1186 = vmatprep.subr.bf16.mxu0 0
  %1187 = vmatpush2.bf16.msra.mxu0 %v1147
  %1188 = vmatprep.subr.bf16.mxu0 0
  %1189 = vmatpush2.bf16.msra.mxu0 %v1146
  %1190 = vmatprep.subr.bf16.mxu0 0
  %1191 = vmatpush2.bf16.msra.mxu0 %v1145
  %1192 = vmatprep.subr.bf16.mxu0 0
  %1193 = vmatpush2.bf16.msra.mxu0 %v1144
  %1194 = vmatprep.subr.bf16.mxu0 0
  %1195 = vmatpush2.bf16.msra.mxu0 %v1143
  %1196 = vmatprep.subr.bf16.mxu0 0
  %1197 = vmatpush2.bf16.msra.mxu0 %v1142
  %1198 = vmatprep.mubr.bf16.mxu0 %v1028
  %1199 = vmatmul.mubr.bf16.gmra.mxu0 %v1027
  %v1200 = vpop.f32.mrf.mxu0
  %v1201 = vadd.f32 %v1068, %v1200
  %v1202 = vpop.f32.mrf.mxu0
  %v1203 = vpop.f32.mrf.mxu0
  %v1204 = vpop.f32.mrf.mxu0
  %1205 = vdwg.mxu0
  %s1206 = scalar_lea.vmem %s7, 128
  %v1207 = vld [vmem:[%s1206] sm:$0xf]
  %v1208 = vld [vmem:[%s1206 + $0x4] sm:$0xf]
  %v1209 = vld [vmem:[%s1206 + $0x8] sm:$0xf]
  %v1210 = vld [vmem:[%s1206 + $0xc] sm:$0xf]
  %v1211 = vld [vmem:[%s1206 + $0x10] sm:$0xf]
  %v1212 = vld [vmem:[%s1206 + $0x14] sm:$0xf]
  %v1213 = vld [vmem:[%s1206 + $0x18] sm:$0xf]
  %v1214 = vld [vmem:[%s1206 + $0x1c] sm:$0xf]
  %v1215 = vld [vmem:[%s1206 + $0x20] sm:$0xf]
  %v1216 = vld [vmem:[%s1206 + $0x24] sm:$0xf]
  %v1217 = vld [vmem:[%s1206 + $0x28] sm:$0xf]
  %v1218 = vld [vmem:[%s1206 + $0x2c] sm:$0xf]
  %v1219 = vld [vmem:[%s1206 + $0x30] sm:$0xf]
  %v1220 = vld [vmem:[%s1206 + $0x34] sm:$0xf]
  %v1221 = vld [vmem:[%s1206 + $0x38] sm:$0xf]
  %v1222 = vld [vmem:[%s1206 + $0x3c] sm:$0xf]
  %v1223 = vld [vmem:[%s1206 + $0x40] sm:$0xf]
  %v1224 = vld [vmem:[%s1206 + $0x44] sm:$0xf]
  %v1225 = vld [vmem:[%s1206 + $0x48] sm:$0xf]
  %v1226 = vld [vmem:[%s1206 + $0x4c] sm:$0xf]
  %v1227 = vld [vmem:[%s1206 + $0x50] sm:$0xf]
  %v1228 = vld [vmem:[%s1206 + $0x54] sm:$0xf]
  %v1229 = vld [vmem:[%s1206 + $0x58] sm:$0xf]
  %v1230 = vld [vmem:[%s1206 + $0x5c] sm:$0xf]
  %v1231 = vld [vmem:[%s1206 + $0x60] sm:$0xf]
  %v1232 = vld [vmem:[%s1206 + $0x64] sm:$0xf]
  %v1233 = vld [vmem:[%s1206 + $0x68] sm:$0xf]
  %v1234 = vld [vmem:[%s1206 + $0x6c] sm:$0xf]
  %v1235 = vld [vmem:[%s1206 + $0x70] sm:$0xf]
  %v1236 = vld [vmem:[%s1206 + $0x74] sm:$0xf]
  %v1237 = vld [vmem:[%s1206 + $0x78] sm:$0xf]
  %v1238 = vld [vmem:[%s1206 + $0x7c] sm:$0xf]
  %s1239 = scalar_lea.vmem %s8, 1
  %v1240 = vld [vmem:[%s1239] sm:$0x1]
  %v1242 = vlaneseq
  %v1243 = vshrl.u32 %v1242, 7
  %v1244 = vsub.s32 0, %v1243
  %v1245 = vrot.slane %v1240, %v1244
  %v1279 = vunpack.c.l.b16 %v1207
  %v1280 = vunpack.c.l.b16 %v1208
  %v1281 = vunpack.c.l.b16 %v1209
  %v1282 = vunpack.c.l.b16 %v1210
  %v1283 = vunpack.c.l.b16 %v1211
  %v1284 = vunpack.c.l.b16 %v1212
  %v1285 = vunpack.c.l.b16 %v1213
  %v1286 = vunpack.c.l.b16 %v1214
  %v1287 = vunpack.c.l.b16 %v1215
  %v1288 = vunpack.c.l.b16 %v1216
  %v1289 = vunpack.c.l.b16 %v1217
  %v1290 = vunpack.c.l.b16 %v1218
  %v1291 = vunpack.c.l.b16 %v1219
  %v1292 = vunpack.c.l.b16 %v1220
  %v1293 = vunpack.c.l.b16 %v1221
  %v1294 = vunpack.c.l.b16 %v1222
  %v1295 = vunpack.c.l.b16 %v1223
  %v1296 = vunpack.c.l.b16 %v1224
  %v1297 = vunpack.c.l.b16 %v1225
  %v1298 = vunpack.c.l.b16 %v1226
  %v1299 = vunpack.c.l.b16 %v1227
  %v1300 = vunpack.c.l.b16 %v1228
  %v1301 = vunpack.c.l.b16 %v1229
  %v1302 = vunpack.c.l.b16 %v1230
  %v1303 = vunpack.c.l.b16 %v1231
  %v1304 = vunpack.c.l.b16 %v1232
  %v1305 = vunpack.c.l.b16 %v1233
  %v1306 = vunpack.c.l.b16 %v1234
  %v1307 = vunpack.c.l.b16 %v1235
  %v1308 = vunpack.c.l.b16 %v1236
  %v1309 = vunpack.c.l.b16 %v1237
  %v1310 = vunpack.c.l.b16 %v1238
  %v1311 = vpack.c.b16 %v1280, %v1279
  %v1312 = vpack.c.b16 %v1282, %v1281
  %v1313 = vpack.c.b16 %v1284, %v1283
  %v1314 = vpack.c.b16 %v1286, %v1285
  %v1315 = vpack.c.b16 %v1288, %v1287
  %v1316 = vpack.c.b16 %v1290, %v1289
  %v1317 = vpack.c.b16 %v1292, %v1291
  %v1318 = vpack.c.b16 %v1294, %v1293
  %v1319 = vpack.c.b16 %v1296, %v1295
  %v1320 = vpack.c.b16 %v1298, %v1297
  %v1321 = vpack.c.b16 %v1300, %v1299
  %v1322 = vpack.c.b16 %v1302, %v1301
  %v1323 = vpack.c.b16 %v1304, %v1303
  %v1324 = vpack.c.b16 %v1306, %v1305
  %v1325 = vpack.c.b16 %v1308, %v1307
  %v1326 = vpack.c.b16 %v1310, %v1309
  %1343 = vmatprep.subr.bf16.mxu0 0
  %1344 = vmatpush1.bf16.msra.mxu0 %v1318
  %1345 = vmatprep.subr.bf16.mxu0 0
  %1346 = vmatpush1.bf16.msra.mxu0 %v1317
  %1347 = vmatprep.subr.bf16.mxu0 0
  %1348 = vmatpush1.bf16.msra.mxu0 %v1316
  %1349 = vmatprep.subr.bf16.mxu0 0
  %1350 = vmatpush1.bf16.msra.mxu0 %v1315
  %1351 = vmatprep.subr.bf16.mxu0 0
  %1352 = vmatpush1.bf16.msra.mxu0 %v1314
  %1353 = vmatprep.subr.bf16.mxu0 0
  %1354 = vmatpush1.bf16.msra.mxu0 %v1313
  %1355 = vmatprep.subr.bf16.mxu0 0
  %1356 = vmatpush1.bf16.msra.mxu0 %v1312
  %1357 = vmatprep.subr.bf16.mxu0 0
  %1358 = vmatpush1.bf16.msra.mxu0 %v1311
  %1359 = vmatprep.subr.bf16.mxu0 0
  %1360 = vmatpush2.bf16.msra.mxu0 %v1326
  %1361 = vmatprep.subr.bf16.mxu0 0
  %1362 = vmatpush2.bf16.msra.mxu0 %v1325
  %1363 = vmatprep.subr.bf16.mxu0 0
  %1364 = vmatpush2.bf16.msra.mxu0 %v1324
  %1365 = vmatprep.subr.bf16.mxu0 0
  %1366 = vmatpush2.bf16.msra.mxu0 %v1323
  %1367 = vmatprep.subr.bf16.mxu0 0
  %1368 = vmatpush2.bf16.msra.mxu0 %v1322
  %1369 = vmatprep.subr.bf16.mxu0 0
  %1370 = vmatpush2.bf16.msra.mxu0 %v1321
  %1371 = vmatprep.subr.bf16.mxu0 0
  %1372 = vmatpush2.bf16.msra.mxu0 %v1320
  %1373 = vmatprep.subr.bf16.mxu0 0
  %1374 = vmatpush2.bf16.msra.mxu0 %v1319
  %1375 = vmatprep.mubr.bf16.mxu0 %v1028
  %1376 = vmatmul.mubr.bf16.gmra.mxu0 %v1027
  %v1377 = vpop.f32.mrf.mxu0
  %v1378 = vadd.f32 %v1245, %v1377
  %v1379 = vpop.f32.mrf.mxu0
  %v1380 = vpop.f32.mrf.mxu0
  %v1381 = vpop.f32.mrf.mxu0
  %1382 = vdwg.mxu0
  %v1384 = vlaneseq
  %v1385 = vshrl.u32 %v1384, 7
  %v1386 = vsub.s32 0, %v1385
  %v1387 = vrot.slane %v722, %v1386
  %v1389 = vmul.f32 %v1201, %v1387
  %v1390 = vtanh.pop %v1389
  %v1391 = vmul.f32 %v1378, %v1387
  %v1393 = vlaneseq
  %v1394 = vshrl.u32 %v1393, 7
  %v1395 = vsub.s32 0, %v1394
  %v1396 = vrot.slane %v721, %v1395
  %v1398 = vmul.f32 %v714, %v1396
  %v1399 = vmul.f32 %v1390, 1.442695
  %v1400 = vpow.pop %v1399
  %v1401 = vmul.f32 %v714, %v1400
  %v1402 = vadd.f32 %v1401, %v1391
  %v1403 = vmul.f32 %v1387, %v1402
  %v1404 = vadd.f32 %v1398, %v1403
  %v1405 = vsel %vm715, %v1390, 0.0
  %1406 = vadd.xlane.f32.xlu0 %v1405
  %v1407 = vpop.xlane.xlu0 %1406
  %v1408 = vadd.f32 %v719, %v1407
  %s1409 = scalar_lea.vmem %s9, 2
  %v1410 = vld [vmem:[%s1409] sm:$0x1]
  %v1411 = vsub.f32 1.0, %v1410
  %s1412 = scalar_lea.vmem %s1, 8
  %v1413 = vld [vmem:[%s1412] sm:$0xf]
  %s1414 = scalar_lea.vmem %s2, 4
  %v1415 = vld [vmem:[%s1414] sm:$0x3]
  %1417 = vset.pattern.permute.xlu0 1
  %1418 = vperm.xlu0 %1417, %v1404
  %v1419 = vpop.permute.xlu0 %1418
  %v1422 = vlaneseq
  %v1423 = vshrl.u32 %v1422, 7
  %v1424 = vsub.s32 1, %v1423
  %v1425 = vrot.slane %v1413, %v1424
  %v1426 = vlaneseq
  %v1427 = vshrl.u32 %v1426, 7
  %v1428 = vsub.s32 3, %v1427
  %v1429 = vrot.slane %v1413, %v1428
  %v1432 = vlaneseq
  %v1433 = vshrl.u32 %v1432, 7
  %v1434 = vsub.s32 1, %v1433
  %v1435 = vrot.slane %v1425, %v1434
  %v1436 = vlaneseq
  %v1437 = vshrl.u32 %v1436, 7
  %v1438 = vsub.s32 1, %v1437
  %v1439 = vrot.slane %v1429, %v1438
  %v1440 = vmul.f32 %v1419, %v1435
  %v1441 = vmul.f32 %v1419, %v1439
  %v1443 = vlaneseq
  %v1444 = vshrl.u32 %v1443, 7
  %v1445 = vsub.s32 0, %v1444
  %v1446 = vrot.slane %v1415, %v1445
  %v1447 = vlaneseq
  %v1448 = vshrl.u32 %v1447, 7
  %v1449 = vsub.s32 1, %v1448
  %v1450 = vrot.slane %v1415, %v1449
  %v1453 = vadd.f32 %v1446, %v1440
  %v1454 = vadd.f32 %v1450, %v1441
  %vm1455 = vcmp.gt.f32.partialorder %v1453, 0.0
  %vm1456 = vcmp.gt.f32.partialorder %v1454, 0.0
  %v1457 = vmul.f32 %v1453, 0.01
  %v1458 = vmul.f32 %v1454, 0.01
  %v1459 = vsel %vm1455, %v1453, %v1457
  %v1460 = vsel %vm1456, %v1454, %v1458
  %v1461 = vpack.c.bf16 %v1459, %v1459
  %v1462 = vpack.c.bf16 %v1460, %v1460
  %s1463 = scalar_lea.vmem %s3, 512
  %v1464 = vld [vmem:[%s1463] sm:$0xff]
  %v1465 = vld [vmem:[%s1463 + $0x8] sm:$0xff]
  %v1466 = vld [vmem:[%s1463 + $0x10] sm:$0xff]
  %v1467 = vld [vmem:[%s1463 + $0x18] sm:$0xff]
  %v1468 = vld [vmem:[%s1463 + $0x20] sm:$0xff]
  %v1469 = vld [vmem:[%s1463 + $0x28] sm:$0xff]
  %v1470 = vld [vmem:[%s1463 + $0x30] sm:$0xff]
  %v1471 = vld [vmem:[%s1463 + $0x38] sm:$0xff]
  %v1472 = vld [vmem:[%s1463 + $0x40] sm:$0xff]
  %v1473 = vld [vmem:[%s1463 + $0x48] sm:$0xff]
  %v1474 = vld [vmem:[%s1463 + $0x50] sm:$0xff]
  %v1475 = vld [vmem:[%s1463 + $0x58] sm:$0xff]
  %v1476 = vld [vmem:[%s1463 + $0x60] sm:$0xff]
  %v1477 = vld [vmem:[%s1463 + $0x68] sm:$0xff]
  %v1478 = vld [vmem:[%s1463 + $0x70] sm:$0xff]
  %v1479 = vld [vmem:[%s1463 + $0x78] sm:$0xff]
  %v1480 = vld [vmem:[%s1463 + $0x80] sm:$0xff]
  %v1481 = vld [vmem:[%s1463 + $0x88] sm:$0xff]
  %v1482 = vld [vmem:[%s1463 + $0x90] sm:$0xff]
  %v1483 = vld [vmem:[%s1463 + $0x98] sm:$0xff]
  %v1484 = vld [vmem:[%s1463 + $0xa0] sm:$0xff]
  %v1485 = vld [vmem:[%s1463 + $0xa8] sm:$0xff]
  %v1486 = vld [vmem:[%s1463 + $0xb0] sm:$0xff]
  %v1487 = vld [vmem:[%s1463 + $0xb8] sm:$0xff]
  %v1488 = vld [vmem:[%s1463 + $0xc0] sm:$0xff]
  %v1489 = vld [vmem:[%s1463 + $0xc8] sm:$0xff]
  %v1490 = vld [vmem:[%s1463 + $0xd0] sm:$0xff]
  %v1491 = vld [vmem:[%s1463 + $0xd8] sm:$0xff]
  %v1492 = vld [vmem:[%s1463 + $0xe0] sm:$0xff]
  %v1493 = vld [vmem:[%s1463 + $0xe8] sm:$0xff]
  %v1494 = vld [vmem:[%s1463 + $0xf0] sm:$0xff]
  %v1495 = vld [vmem:[%s1463 + $0xf8] sm:$0xff]
  %s1496 = scalar_lea.vmem %s4, 4
  %v1497 = vld [vmem:[%s1496] sm:$0x3]
  %v1499 = vlaneseq
  %v1500 = vshrl.u32 %v1499, 7
  %v1501 = vsub.s32 0, %v1500
  %v1502 = vrot.slane %v1497, %v1501
  %v1503 = vlaneseq
  %v1504 = vshrl.u32 %v1503, 7
  %v1505 = vsub.s32 1, %v1504
  %v1506 = vrot.slane %v1497, %v1505
  %v1541 = vunpack.c.l.b16 %v1464
  %v1542 = vunpack.c.h.b16 %v1464
  %v1543 = vunpack.c.l.b16 %v1465
  %v1544 = vunpack.c.h.b16 %v1465
  %v1545 = vunpack.c.l.b16 %v1466
  %v1546 = vunpack.c.h.b16 %v1466
  %v1547 = vunpack.c.l.b16 %v1467
  %v1548 = vunpack.c.h.b16 %v1467
  %v1549 = vunpack.c.l.b16 %v1468
  %v1550 = vunpack.c.h.b16 %v1468
  %v1551 = vunpack.c.l.b16 %v1469
  %v1552 = vunpack.c.h.b16 %v1469
  %v1553 = vunpack.c.l.b16 %v1470
  %v1554 = vunpack.c.h.b16 %v1470
  %v1555 = vunpack.c.l.b16 %v1471
  %v1556 = vunpack.c.h.b16 %v1471
  %v1557 = vunpack.c.l.b16 %v1472
  %v1558 = vunpack.c.h.b16 %v1472
  %v1559 = vunpack.c.l.b16 %v1473
  %v1560 = vunpack.c.h.b16 %v1473
  %v1561 = vunpack.c.l.b16 %v1474
  %v1562 = vunpack.c.h.b16 %v1474
  %v1563 = vunpack.c.l.b16 %v1475
  %v1564 = vunpack.c.h.b16 %v1475
  %v1565 = vunpack.c.l.b16 %v1476
  %v1566 = vunpack.c.h.b16 %v1476
  %v1567 = vunpack.c.l.b16 %v1477
  %v1568 = vunpack.c.h.b16 %v1477
  %v1569 = vunpack.c.l.b16 %v1478
  %v1570 = vunpack.c.h.b16 %v1478
  %v1571 = vunpack.c.l.b16 %v1479
  %v1572 = vunpack.c.h.b16 %v1479
  %v1573 = vunpack.c.l.b16 %v1480
  %v1574 = vunpack.c.h.b16 %v1480
  %v1575 = vunpack.c.l.b16 %v1481
  %v1576 = vunpack.c.h.b16 %v1481
  %v1577 = vunpack.c.l.b16 %v1482
  %v1578 = vunpack.c.h.b16 %v1482
  %v1579 = vunpack.c.l.b16 %v1483
  %v1580 = vunpack.c.h.b16 %v1483
  %v1581 = vunpack.c.l.b16 %v1484
  %v1582 = vunpack.c.h.b16 %v1484
  %v1583 = vunpack.c.l.b16 %v1485
  %v1584 = vunpack.c.h.b16 %v1485
  %v1585 = vunpack.c.l.b16 %v1486
  %v1586 = vunpack.c.h.b16 %v1486
  %v1587 = vunpack.c.l.b16 %v1487
  %v1588 = vunpack.c.h.b16 %v1487
  %v1589 = vunpack.c.l.b16 %v1488
  %v1590 = vunpack.c.h.b16 %v1488
  %v1591 = vunpack.c.l.b16 %v1489
  %v1592 = vunpack.c.h.b16 %v1489
  %v1593 = vunpack.c.l.b16 %v1490
  %v1594 = vunpack.c.h.b16 %v1490
  %v1595 = vunpack.c.l.b16 %v1491
  %v1596 = vunpack.c.h.b16 %v1491
  %v1597 = vunpack.c.l.b16 %v1492
  %v1598 = vunpack.c.h.b16 %v1492
  %v1599 = vunpack.c.l.b16 %v1493
  %v1600 = vunpack.c.h.b16 %v1493
  %v1601 = vunpack.c.l.b16 %v1494
  %v1602 = vunpack.c.h.b16 %v1494
  %v1603 = vunpack.c.l.b16 %v1495
  %v1604 = vunpack.c.h.b16 %v1495
  %v1605 = vpack.c.b16 %v1543, %v1541
  %v1606 = vpack.c.b16 %v1544, %v1542
  %v1607 = vpack.c.b16 %v1547, %v1545
  %v1608 = vpack.c.b16 %v1548, %v1546
  %v1609 = vpack.c.b16 %v1551, %v1549
  %v1610 = vpack.c.b16 %v1552, %v1550
  %v1611 = vpack.c.b16 %v1555, %v1553
  %v1612 = vpack.c.b16 %v1556, %v1554
  %v1613 = vpack.c.b16 %v1559, %v1557
  %v1614 = vpack.c.b16 %v1560, %v1558
  %v1615 = vpack.c.b16 %v1563, %v1561
  %v1616 = vpack.c.b16 %v1564, %v1562
  %v1617 = vpack.c.b16 %v1567, %v1565
  %v1618 = vpack.c.b16 %v1568, %v1566
  %v1619 = vpack.c.b16 %v1571, %v1569
  %v1620 = vpack.c.b16 %v1572, %v1570
  %v1621 = vpack.c.b16 %v1575, %v1573
  %v1622 = vpack.c.b16 %v1576, %v1574
  %v1623 = vpack.c.b16 %v1579, %v1577
  %v1624 = vpack.c.b16 %v1580, %v1578
  %v1625 = vpack.c.b16 %v1583, %v1581
  %v1626 = vpack.c.b16 %v1584, %v1582
  %v1627 = vpack.c.b16 %v1587, %v1585
  %v1628 = vpack.c.b16 %v1588, %v1586
  %v1629 = vpack.c.b16 %v1591, %v1589
  %v1630 = vpack.c.b16 %v1592, %v1590
  %v1631 = vpack.c.b16 %v1595, %v1593
  %v1632 = vpack.c.b16 %v1596, %v1594
  %v1633 = vpack.c.b16 %v1599, %v1597
  %v1634 = vpack.c.b16 %v1600, %v1598
  %v1635 = vpack.c.b16 %v1603, %v1601
  %v1636 = vpack.c.b16 %v1604, %v1602
  %1669 = vmatprep.subr.bf16.mxu0 %v1620
  %1670 = vmatpush1.bf16.msra.mxu0 %v1619
  %1671 = vmatprep.subr.bf16.mxu0 %v1618
  %1672 = vmatpush1.bf16.msra.mxu0 %v1617
  %1673 = vmatprep.subr.bf16.mxu0 %v1616
  %1674 = vmatpush1.bf16.msra.mxu0 %v1615
  %1675 = vmatprep.subr.bf16.mxu0 %v1614
  %1676 = vmatpush1.bf16.msra.mxu0 %v1613
  %1677 = vmatprep.subr.bf16.mxu0 %v1612
  %1678 = vmatpush1.bf16.msra.mxu0 %v1611
  %1679 = vmatprep.subr.bf16.mxu0 %v1610
  %1680 = vmatpush1.bf16.msra.mxu0 %v1609
  %1681 = vmatprep.subr.bf16.mxu0 %v1608
  %1682 = vmatpush1.bf16.msra.mxu0 %v1607
  %1683 = vmatprep.subr.bf16.mxu0 %v1606
  %1684 = vmatpush1.bf16.msra.mxu0 %v1605
  %1685 = vmatprep.subr.bf16.mxu0 %v1636
  %1686 = vmatpush2.bf16.msra.mxu0 %v1635
  %1687 = vmatprep.subr.bf16.mxu0 %v1634
  %1688 = vmatpush2.bf16.msra.mxu0 %v1633
  %1689 = vmatprep.subr.bf16.mxu0 %v1632
  %1690 = vmatpush2.bf16.msra.mxu0 %v1631
  %1691 = vmatprep.subr.bf16.mxu0 %v1630
  %1692 = vmatpush2.bf16.msra.mxu0 %v1629
  %1693 = vmatprep.subr.bf16.mxu0 %v1628
  %1694 = vmatpush2.bf16.msra.mxu0 %v1627
  %1695 = vmatprep.subr.bf16.mxu0 %v1626
  %1696 = vmatpush2.bf16.msra.mxu0 %v1625
  %1697 = vmatprep.subr.bf16.mxu0 %v1624
  %1698 = vmatpush2.bf16.msra.mxu0 %v1623
  %1699 = vmatprep.subr.bf16.mxu0 %v1622
  %1700 = vmatpush2.bf16.msra.mxu0 %v1621
  %1701 = vmatprep.mubr.bf16.mxu0 %v1462
  %1702 = vmatmul.mubr.bf16.gmra.mxu0 %v1461
  %v1703 = vpop.f32.mrf.mxu0
  %v1704 = vadd.f32 %v1502, %v1703
  %v1705 = vpop.f32.mrf.mxu0
  %v1706 = vadd.f32 %v1506, %v1705
  %v1707 = vpop.f32.mrf.mxu0
  %v1708 = vpop.f32.mrf.mxu0
  %1709 = vdwg.mxu0
  %vm1710 = vcmp.gt.f32.partialorder %v1704, 0.0
  %vm1711 = vcmp.gt.f32.partialorder %v1706, 0.0
  %v1712 = vmul.f32 %v1704, 0.01
  %v1713 = vmul.f32 %v1706, 0.01
  %v1714 = vsel %vm1710, %v1704, %v1712
  %v1715 = vsel %vm1711, %v1706, %v1713
  %v1716 = vpack.c.bf16 %v1714, %v1714
  %v1717 = vpack.c.bf16 %v1715, %v1715
  %s1718 = scalar_lea.vmem %s5, 256
  %v1719 = vld [vmem:[%s1718] sm:$0xf]
  %v1720 = vld [vmem:[%s1718 + $0x4] sm:$0xf]
  %v1721 = vld [vmem:[%s1718 + $0x8] sm:$0xf]
  %v1722 = vld [vmem:[%s1718 + $0xc] sm:$0xf]
  %v1723 = vld [vmem:[%s1718 + $0x10] sm:$0xf]
  %v1724 = vld [vmem:[%s1718 + $0x14] sm:$0xf]
  %v1725 = vld [vmem:[%s1718 + $0x18] sm:$0xf]
  %v1726 = vld [vmem:[%s1718 + $0x1c] sm:$0xf]
  %v1727 = vld [vmem:[%s1718 + $0x20] sm:$0xf]
  %v1728 = vld [vmem:[%s1718 + $0x24] sm:$0xf]
  %v1729 = vld [vmem:[%s1718 + $0x28] sm:$0xf]
  %v1730 = vld [vmem:[%s1718 + $0x2c] sm:$0xf]
  %v1731 = vld [vmem:[%s1718 + $0x30] sm:$0xf]
  %v1732 = vld [vmem:[%s1718 + $0x34] sm:$0xf]
  %v1733 = vld [vmem:[%s1718 + $0x38] sm:$0xf]
  %v1734 = vld [vmem:[%s1718 + $0x3c] sm:$0xf]
  %v1735 = vld [vmem:[%s1718 + $0x40] sm:$0xf]
  %v1736 = vld [vmem:[%s1718 + $0x44] sm:$0xf]
  %v1737 = vld [vmem:[%s1718 + $0x48] sm:$0xf]
  %v1738 = vld [vmem:[%s1718 + $0x4c] sm:$0xf]
  %v1739 = vld [vmem:[%s1718 + $0x50] sm:$0xf]
  %v1740 = vld [vmem:[%s1718 + $0x54] sm:$0xf]
  %v1741 = vld [vmem:[%s1718 + $0x58] sm:$0xf]
  %v1742 = vld [vmem:[%s1718 + $0x5c] sm:$0xf]
  %v1743 = vld [vmem:[%s1718 + $0x60] sm:$0xf]
  %v1744 = vld [vmem:[%s1718 + $0x64] sm:$0xf]
  %v1745 = vld [vmem:[%s1718 + $0x68] sm:$0xf]
  %v1746 = vld [vmem:[%s1718 + $0x6c] sm:$0xf]
  %v1747 = vld [vmem:[%s1718 + $0x70] sm:$0xf]
  %v1748 = vld [vmem:[%s1718 + $0x74] sm:$0xf]
  %v1749 = vld [vmem:[%s1718 + $0x78] sm:$0xf]
  %v1750 = vld [vmem:[%s1718 + $0x7c] sm:$0xf]
  %s1751 = scalar_lea.vmem %s6, 2
  %v1752 = vld [vmem:[%s1751] sm:$0x1]
  %v1754 = vlaneseq
  %v1755 = vshrl.u32 %v1754, 7
  %v1756 = vsub.s32 0, %v1755
  %v1757 = vrot.slane %v1752, %v1756
  %v1791 = vunpack.c.l.b16 %v1719
  %v1792 = vunpack.c.l.b16 %v1720
  %v1793 = vunpack.c.l.b16 %v1721
  %v1794 = vunpack.c.l.b16 %v1722
  %v1795 = vunpack.c.l.b16 %v1723
  %v1796 = vunpack.c.l.b16 %v1724
  %v1797 = vunpack.c.l.b16 %v1725
  %v1798 = vunpack.c.l.b16 %v1726
  %v1799 = vunpack.c.l.b16 %v1727
  %v1800 = vunpack.c.l.b16 %v1728
  %v1801 = vunpack.c.l.b16 %v1729
  %v1802 = vunpack.c.l.b16 %v1730
  %v1803 = vunpack.c.l.b16 %v1731
  %v1804 = vunpack.c.l.b16 %v1732
  %v1805 = vunpack.c.l.b16 %v1733
  %v1806 = vunpack.c.l.b16 %v1734
  %v1807 = vunpack.c.l.b16 %v1735
  %v1808 = vunpack.c.l.b16 %v1736
  %v1809 = vunpack.c.l.b16 %v1737
  %v1810 = vunpack.c.l.b16 %v1738
  %v1811 = vunpack.c.l.b16 %v1739
  %v1812 = vunpack.c.l.b16 %v1740
  %v1813 = vunpack.c.l.b16 %v1741
  %v1814 = vunpack.c.l.b16 %v1742
  %v1815 = vunpack.c.l.b16 %v1743
  %v1816 = vunpack.c.l.b16 %v1744
  %v1817 = vunpack.c.l.b16 %v1745
  %v1818 = vunpack.c.l.b16 %v1746
  %v1819 = vunpack.c.l.b16 %v1747
  %v1820 = vunpack.c.l.b16 %v1748
  %v1821 = vunpack.c.l.b16 %v1749
  %v1822 = vunpack.c.l.b16 %v1750
  %v1823 = vpack.c.b16 %v1792, %v1791
  %v1824 = vpack.c.b16 %v1794, %v1793
  %v1825 = vpack.c.b16 %v1796, %v1795
  %v1826 = vpack.c.b16 %v1798, %v1797
  %v1827 = vpack.c.b16 %v1800, %v1799
  %v1828 = vpack.c.b16 %v1802, %v1801
  %v1829 = vpack.c.b16 %v1804, %v1803
  %v1830 = vpack.c.b16 %v1806, %v1805
  %v1831 = vpack.c.b16 %v1808, %v1807
  %v1832 = vpack.c.b16 %v1810, %v1809
  %v1833 = vpack.c.b16 %v1812, %v1811
  %v1834 = vpack.c.b16 %v1814, %v1813
  %v1835 = vpack.c.b16 %v1816, %v1815
  %v1836 = vpack.c.b16 %v1818, %v1817
  %v1837 = vpack.c.b16 %v1820, %v1819
  %v1838 = vpack.c.b16 %v1822, %v1821
  %1855 = vmatprep.subr.bf16.mxu0 0
  %1856 = vmatpush1.bf16.msra.mxu0 %v1830
  %1857 = vmatprep.subr.bf16.mxu0 0
  %1858 = vmatpush1.bf16.msra.mxu0 %v1829
  %1859 = vmatprep.subr.bf16.mxu0 0
  %1860 = vmatpush1.bf16.msra.mxu0 %v1828
  %1861 = vmatprep.subr.bf16.mxu0 0
  %1862 = vmatpush1.bf16.msra.mxu0 %v1827
  %1863 = vmatprep.subr.bf16.mxu0 0
  %1864 = vmatpush1.bf16.msra.mxu0 %v1826
  %1865 = vmatprep.subr.bf16.mxu0 0
  %1866 = vmatpush1.bf16.msra.mxu0 %v1825
  %1867 = vmatprep.subr.bf16.mxu0 0
  %1868 = vmatpush1.bf16.msra.mxu0 %v1824
  %1869 = vmatprep.subr.bf16.mxu0 0
  %1870 = vmatpush1.bf16.msra.mxu0 %v1823
  %1871 = vmatprep.subr.bf16.mxu0 0
  %1872 = vmatpush2.bf16.msra.mxu0 %v1838
  %1873 = vmatprep.subr.bf16.mxu0 0
  %1874 = vmatpush2.bf16.msra.mxu0 %v1837
  %1875 = vmatprep.subr.bf16.mxu0 0
  %1876 = vmatpush2.bf16.msra.mxu0 %v1836
  %1877 = vmatprep.subr.bf16.mxu0 0
  %1878 = vmatpush2.bf16.msra.mxu0 %v1835
  %1879 = vmatprep.subr.bf16.mxu0 0
  %1880 = vmatpush2.bf16.msra.mxu0 %v1834
  %1881 = vmatprep.subr.bf16.mxu0 0
  %1882 = vmatpush2.bf16.msra.mxu0 %v1833
  %1883 = vmatprep.subr.bf16.mxu0 0
  %1884 = vmatpush2.bf16.msra.mxu0 %v1832
  %1885 = vmatprep.subr.bf16.mxu0 0
  %1886 = vmatpush2.bf16.msra.mxu0 %v1831
  %1887 = vmatprep.mubr.bf16.mxu0 %v1717
  %1888 = vmatmul.mubr.bf16.gmra.mxu0 %v1716
  %v1889 = vpop.f32.mrf.mxu0
  %v1890 = vadd.f32 %v1757, %v1889
  %v1891 = vpop.f32.mrf.mxu0
  %v1892 = vpop.f32.mrf.mxu0
  %v1893 = vpop.f32.mrf.mxu0
  %1894 = vdwg.mxu0
  %s1895 = scalar_lea.vmem %s7, 256
  %v1896 = vld [vmem:[%s1895] sm:$0xf]
  %v1897 = vld [vmem:[%s1895 + $0x4] sm:$0xf]
  %v1898 = vld [vmem:[%s1895 + $0x8] sm:$0xf]
  %v1899 = vld [vmem:[%s1895 + $0xc] sm:$0xf]
  %v1900 = vld [vmem:[%s1895 + $0x10] sm:$0xf]
  %v1901 = vld [vmem:[%s1895 + $0x14] sm:$0xf]
  %v1902 = vld [vmem:[%s1895 + $0x18] sm:$0xf]
  %v1903 = vld [vmem:[%s1895 + $0x1c] sm:$0xf]
  %v1904 = vld [vmem:[%s1895 + $0x20] sm:$0xf]
  %v1905 = vld [vmem:[%s1895 + $0x24] sm:$0xf]
  %v1906 = vld [vmem:[%s1895 + $0x28] sm:$0xf]
  %v1907 = vld [vmem:[%s1895 + $0x2c] sm:$0xf]
  %v1908 = vld [vmem:[%s1895 + $0x30] sm:$0xf]
  %v1909 = vld [vmem:[%s1895 + $0x34] sm:$0xf]
  %v1910 = vld [vmem:[%s1895 + $0x38] sm:$0xf]
  %v1911 = vld [vmem:[%s1895 + $0x3c] sm:$0xf]
  %v1912 = vld [vmem:[%s1895 + $0x40] sm:$0xf]
  %v1913 = vld [vmem:[%s1895 + $0x44] sm:$0xf]
  %v1914 = vld [vmem:[%s1895 + $0x48] sm:$0xf]
  %v1915 = vld [vmem:[%s1895 + $0x4c] sm:$0xf]
  %v1916 = vld [vmem:[%s1895 + $0x50] sm:$0xf]
  %v1917 = vld [vmem:[%s1895 + $0x54] sm:$0xf]
  %v1918 = vld [vmem:[%s1895 + $0x58] sm:$0xf]
  %v1919 = vld [vmem:[%s1895 + $0x5c] sm:$0xf]
  %v1920 = vld [vmem:[%s1895 + $0x60] sm:$0xf]
  %v1921 = vld [vmem:[%s1895 + $0x64] sm:$0xf]
  %v1922 = vld [vmem:[%s1895 + $0x68] sm:$0xf]
  %v1923 = vld [vmem:[%s1895 + $0x6c] sm:$0xf]
  %v1924 = vld [vmem:[%s1895 + $0x70] sm:$0xf]
  %v1925 = vld [vmem:[%s1895 + $0x74] sm:$0xf]
  %v1926 = vld [vmem:[%s1895 + $0x78] sm:$0xf]
  %v1927 = vld [vmem:[%s1895 + $0x7c] sm:$0xf]
  %s1928 = scalar_lea.vmem %s8, 2
  %v1929 = vld [vmem:[%s1928] sm:$0x1]
  %v1931 = vlaneseq
  %v1932 = vshrl.u32 %v1931, 7
  %v1933 = vsub.s32 0, %v1932
  %v1934 = vrot.slane %v1929, %v1933
  %v1968 = vunpack.c.l.b16 %v1896
  %v1969 = vunpack.c.l.b16 %v1897
  %v1970 = vunpack.c.l.b16 %v1898
  %v1971 = vunpack.c.l.b16 %v1899
  %v1972 = vunpack.c.l.b16 %v1900
  %v1973 = vunpack.c.l.b16 %v1901
  %v1974 = vunpack.c.l.b16 %v1902
  %v1975 = vunpack.c.l.b16 %v1903
  %v1976 = vunpack.c.l.b16 %v1904
  %v1977 = vunpack.c.l.b16 %v1905
  %v1978 = vunpack.c.l.b16 %v1906
  %v1979 = vunpack.c.l.b16 %v1907
  %v1980 = vunpack.c.l.b16 %v1908
  %v1981 = vunpack.c.l.b16 %v1909
  %v1982 = vunpack.c.l.b16 %v1910
  %v1983 = vunpack.c.l.b16 %v1911
  %v1984 = vunpack.c.l.b16 %v1912
  %v1985 = vunpack.c.l.b16 %v1913
  %v1986 = vunpack.c.l.b16 %v1914
  %v1987 = vunpack.c.l.b16 %v1915
  %v1988 = vunpack.c.l.b16 %v1916
  %v1989 = vunpack.c.l.b16 %v1917
  %v1990 = vunpack.c.l.b16 %v1918
  %v1991 = vunpack.c.l.b16 %v1919
  %v1992 = vunpack.c.l.b16 %v1920
  %v1993 = vunpack.c.l.b16 %v1921
  %v1994 = vunpack.c.l.b16 %v1922
  %v1995 = vunpack.c.l.b16 %v1923
  %v1996 = vunpack.c.l.b16 %v1924
  %v1997 = vunpack.c.l.b16 %v1925
  %v1998 = vunpack.c.l.b16 %v1926
  %v1999 = vunpack.c.l.b16 %v1927
  %v2000 = vpack.c.b16 %v1969, %v1968
  %v2001 = vpack.c.b16 %v1971, %v1970
  %v2002 = vpack.c.b16 %v1973, %v1972
  %v2003 = vpack.c.b16 %v1975, %v1974
  %v2004 = vpack.c.b16 %v1977, %v1976
  %v2005 = vpack.c.b16 %v1979, %v1978
  %v2006 = vpack.c.b16 %v1981, %v1980
  %v2007 = vpack.c.b16 %v1983, %v1982
  %v2008 = vpack.c.b16 %v1985, %v1984
  %v2009 = vpack.c.b16 %v1987, %v1986
  %v2010 = vpack.c.b16 %v1989, %v1988
  %v2011 = vpack.c.b16 %v1991, %v1990
  %v2012 = vpack.c.b16 %v1993, %v1992
  %v2013 = vpack.c.b16 %v1995, %v1994
  %v2014 = vpack.c.b16 %v1997, %v1996
  %v2015 = vpack.c.b16 %v1999, %v1998
  %2032 = vmatprep.subr.bf16.mxu0 0
  %2033 = vmatpush1.bf16.msra.mxu0 %v2007
  %2034 = vmatprep.subr.bf16.mxu0 0
  %2035 = vmatpush1.bf16.msra.mxu0 %v2006
  %2036 = vmatprep.subr.bf16.mxu0 0
  %2037 = vmatpush1.bf16.msra.mxu0 %v2005
  %2038 = vmatprep.subr.bf16.mxu0 0
  %2039 = vmatpush1.bf16.msra.mxu0 %v2004
  %2040 = vmatprep.subr.bf16.mxu0 0
  %2041 = vmatpush1.bf16.msra.mxu0 %v2003
  %2042 = vmatprep.subr.bf16.mxu0 0
  %2043 = vmatpush1.bf16.msra.mxu0 %v2002
  %2044 = vmatprep.subr.bf16.mxu0 0
  %2045 = vmatpush1.bf16.msra.mxu0 %v2001
  %2046 = vmatprep.subr.bf16.mxu0 0
  %2047 = vmatpush1.bf16.msra.mxu0 %v2000
  %2048 = vmatprep.subr.bf16.mxu0 0
  %2049 = vmatpush2.bf16.msra.mxu0 %v2015
  %2050 = vmatprep.subr.bf16.mxu0 0
  %2051 = vmatpush2.bf16.msra.mxu0 %v2014
  %2052 = vmatprep.subr.bf16.mxu0 0
  %2053 = vmatpush2.bf16.msra.mxu0 %v2013
  %2054 = vmatprep.subr.bf16.mxu0 0
  %2055 = vmatpush2.bf16.msra.mxu0 %v2012
  %2056 = vmatprep.subr.bf16.mxu0 0
  %2057 = vmatpush2.bf16.msra.mxu0 %v2011
  %2058 = vmatprep.subr.bf16.mxu0 0
  %2059 = vmatpush2.bf16.msra.mxu0 %v2010
  %2060 = vmatprep.subr.bf16.mxu0 0
  %2061 = vmatpush2.bf16.msra.mxu0 %v2009
  %2062 = vmatprep.subr.bf16.mxu0 0
  %2063 = vmatpush2.bf16.msra.mxu0 %v2008
  %2064 = vmatprep.mubr.bf16.mxu0 %v1717
  %2065 = vmatmul.mubr.bf16.gmra.mxu0 %v1716
  %v2066 = vpop.f32.mrf.mxu0
  %v2067 = vadd.f32 %v1934, %v2066
  %v2068 = vpop.f32.mrf.mxu0
  %v2069 = vpop.f32.mrf.mxu0
  %v2070 = vpop.f32.mrf.mxu0
  %2071 = vdwg.mxu0
  %v2073 = vlaneseq
  %v2074 = vshrl.u32 %v2073, 7
  %v2075 = vsub.s32 0, %v2074
  %v2076 = vrot.slane %v1411, %v2075
  %v2078 = vmul.f32 %v1890, %v2076
  %v2079 = vtanh.pop %v2078
  %v2080 = vmul.f32 %v2067, %v2076
  %v2082 = vlaneseq
  %v2083 = vshrl.u32 %v2082, 7
  %v2084 = vsub.s32 0, %v2083
  %v2085 = vrot.slane %v1410, %v2084
  %v2087 = vmul.f32 %v1404, %v2085
  %v2088 = vmul.f32 %v2079, 1.442695
  %v2089 = vpow.pop %v2088
  %v2090 = vmul.f32 %v1404, %v2089
  %v2091 = vadd.f32 %v2090, %v2080
  %v2092 = vmul.f32 %v2076, %v2091
  %v2093 = vadd.f32 %v2087, %v2092
  %v2094 = vsel %vm715, %v2079, 0.0
  %2095 = vadd.xlane.f32.xlu0 %v2094
  %v2096 = vpop.xlane.xlu0 %2095
  %v2097 = vadd.f32 %v1408, %v2096
  %s2098 = scalar_lea.vmem %s9, 3
  %v2099 = vld [vmem:[%s2098] sm:$0x1]
  %v2100 = vsub.f32 1.0, %v2099
  %s2101 = scalar_lea.vmem %s1, 12
  %v2102 = vld [vmem:[%s2101] sm:$0xf]
  %s2103 = scalar_lea.vmem %s2, 6
  %v2104 = vld [vmem:[%s2103] sm:$0x3]
  %2106 = vset.pattern.permute.xlu0 0
  %2107 = vperm.xlu0 %2106, %v2093
  %v2108 = vpop.permute.xlu0 %2107
  %v2111 = vlaneseq
  %v2112 = vshrl.u32 %v2111, 7
  %v2113 = vsub.s32 0, %v2112
  %v2114 = vrot.slane %v2102, %v2113
  %v2115 = vlaneseq
  %v2116 = vshrl.u32 %v2115, 7
  %v2117 = vsub.s32 2, %v2116
  %v2118 = vrot.slane %v2102, %v2117
  %v2121 = vlaneseq
  %v2122 = vshrl.u32 %v2121, 7
  %v2123 = vsub.s32 0, %v2122
  %v2124 = vrot.slane %v2114, %v2123
  %v2125 = vlaneseq
  %v2126 = vshrl.u32 %v2125, 7
  %v2127 = vsub.s32 0, %v2126
  %v2128 = vrot.slane %v2118, %v2127
  %v2129 = vmul.f32 %v2108, %v2124
  %v2130 = vmul.f32 %v2108, %v2128
  %v2132 = vlaneseq
  %v2133 = vshrl.u32 %v2132, 7
  %v2134 = vsub.s32 0, %v2133
  %v2135 = vrot.slane %v2104, %v2134
  %v2136 = vlaneseq
  %v2137 = vshrl.u32 %v2136, 7
  %v2138 = vsub.s32 1, %v2137
  %v2139 = vrot.slane %v2104, %v2138
  %v2142 = vadd.f32 %v2135, %v2129
  %v2143 = vadd.f32 %v2139, %v2130
  %vm2144 = vcmp.gt.f32.partialorder %v2142, 0.0
  %vm2145 = vcmp.gt.f32.partialorder %v2143, 0.0
  %v2146 = vmul.f32 %v2142, 0.01
  %v2147 = vmul.f32 %v2143, 0.01
  %v2148 = vsel %vm2144, %v2142, %v2146
  %v2149 = vsel %vm2145, %v2143, %v2147
  %v2150 = vpack.c.bf16 %v2148, %v2148
  %v2151 = vpack.c.bf16 %v2149, %v2149
  %s2152 = scalar_lea.vmem %s3, 768
  %v2153 = vld [vmem:[%s2152] sm:$0xff]
  %v2154 = vld [vmem:[%s2152 + $0x8] sm:$0xff]
  %v2155 = vld [vmem:[%s2152 + $0x10] sm:$0xff]
  %v2156 = vld [vmem:[%s2152 + $0x18] sm:$0xff]
  %v2157 = vld [vmem:[%s2152 + $0x20] sm:$0xff]
  %v2158 = vld [vmem:[%s2152 + $0x28] sm:$0xff]
  %v2159 = vld [vmem:[%s2152 + $0x30] sm:$0xff]
  %v2160 = vld [vmem:[%s2152 + $0x38] sm:$0xff]
  %v2161 = vld [vmem:[%s2152 + $0x40] sm:$0xff]
  %v2162 = vld [vmem:[%s2152 + $0x48] sm:$0xff]
  %v2163 = vld [vmem:[%s2152 + $0x50] sm:$0xff]
  %v2164 = vld [vmem:[%s2152 + $0x58] sm:$0xff]
  %v2165 = vld [vmem:[%s2152 + $0x60] sm:$0xff]
  %v2166 = vld [vmem:[%s2152 + $0x68] sm:$0xff]
  %v2167 = vld [vmem:[%s2152 + $0x70] sm:$0xff]
  %v2168 = vld [vmem:[%s2152 + $0x78] sm:$0xff]
  %v2169 = vld [vmem:[%s2152 + $0x80] sm:$0xff]
  %v2170 = vld [vmem:[%s2152 + $0x88] sm:$0xff]
  %v2171 = vld [vmem:[%s2152 + $0x90] sm:$0xff]
  %v2172 = vld [vmem:[%s2152 + $0x98] sm:$0xff]
  %v2173 = vld [vmem:[%s2152 + $0xa0] sm:$0xff]
  %v2174 = vld [vmem:[%s2152 + $0xa8] sm:$0xff]
  %v2175 = vld [vmem:[%s2152 + $0xb0] sm:$0xff]
  %v2176 = vld [vmem:[%s2152 + $0xb8] sm:$0xff]
  %v2177 = vld [vmem:[%s2152 + $0xc0] sm:$0xff]
  %v2178 = vld [vmem:[%s2152 + $0xc8] sm:$0xff]
  %v2179 = vld [vmem:[%s2152 + $0xd0] sm:$0xff]
  %v2180 = vld [vmem:[%s2152 + $0xd8] sm:$0xff]
  %v2181 = vld [vmem:[%s2152 + $0xe0] sm:$0xff]
  %v2182 = vld [vmem:[%s2152 + $0xe8] sm:$0xff]
  %v2183 = vld [vmem:[%s2152 + $0xf0] sm:$0xff]
  %v2184 = vld [vmem:[%s2152 + $0xf8] sm:$0xff]
  %s2185 = scalar_lea.vmem %s4, 6
  %v2186 = vld [vmem:[%s2185] sm:$0x3]
  %v2188 = vlaneseq
  %v2189 = vshrl.u32 %v2188, 7
  %v2190 = vsub.s32 0, %v2189
  %v2191 = vrot.slane %v2186, %v2190
  %v2192 = vlaneseq
  %v2193 = vshrl.u32 %v2192, 7
  %v2194 = vsub.s32 1, %v2193
  %v2195 = vrot.slane %v2186, %v2194
  %v2230 = vunpack.c.l.b16 %v2153
  %v2231 = vunpack.c.h.b16 %v2153
  %v2232 = vunpack.c.l.b16 %v2154
  %v2233 = vunpack.c.h.b16 %v2154
  %v2234 = vunpack.c.l.b16 %v2155
  %v2235 = vunpack.c.h.b16 %v2155
  %v2236 = vunpack.c.l.b16 %v2156
  %v2237 = vunpack.c.h.b16 %v2156
  %v2238 = vunpack.c.l.b16 %v2157
  %v2239 = vunpack.c.h.b16 %v2157
  %v2240 = vunpack.c.l.b16 %v2158
  %v2241 = vunpack.c.h.b16 %v2158
  %v2242 = vunpack.c.l.b16 %v2159
  %v2243 = vunpack.c.h.b16 %v2159
  %v2244 = vunpack.c.l.b16 %v2160
  %v2245 = vunpack.c.h.b16 %v2160
  %v2246 = vunpack.c.l.b16 %v2161
  %v2247 = vunpack.c.h.b16 %v2161
  %v2248 = vunpack.c.l.b16 %v2162
  %v2249 = vunpack.c.h.b16 %v2162
  %v2250 = vunpack.c.l.b16 %v2163
  %v2251 = vunpack.c.h.b16 %v2163
  %v2252 = vunpack.c.l.b16 %v2164
  %v2253 = vunpack.c.h.b16 %v2164
  %v2254 = vunpack.c.l.b16 %v2165
  %v2255 = vunpack.c.h.b16 %v2165
  %v2256 = vunpack.c.l.b16 %v2166
  %v2257 = vunpack.c.h.b16 %v2166
  %v2258 = vunpack.c.l.b16 %v2167
  %v2259 = vunpack.c.h.b16 %v2167
  %v2260 = vunpack.c.l.b16 %v2168
  %v2261 = vunpack.c.h.b16 %v2168
  %v2262 = vunpack.c.l.b16 %v2169
  %v2263 = vunpack.c.h.b16 %v2169
  %v2264 = vunpack.c.l.b16 %v2170
  %v2265 = vunpack.c.h.b16 %v2170
  %v2266 = vunpack.c.l.b16 %v2171
  %v2267 = vunpack.c.h.b16 %v2171
  %v2268 = vunpack.c.l.b16 %v2172
  %v2269 = vunpack.c.h.b16 %v2172
  %v2270 = vunpack.c.l.b16 %v2173
  %v2271 = vunpack.c.h.b16 %v2173
  %v2272 = vunpack.c.l.b16 %v2174
  %v2273 = vunpack.c.h.b16 %v2174
  %v2274 = vunpack.c.l.b16 %v2175
  %v2275 = vunpack.c.h.b16 %v2175
  %v2276 = vunpack.c.l.b16 %v2176
  %v2277 = vunpack.c.h.b16 %v2176
  %v2278 = vunpack.c.l.b16 %v2177
  %v2279 = vunpack.c.h.b16 %v2177
  %v2280 = vunpack.c.l.b16 %v2178
  %v2281 = vunpack.c.h.b16 %v2178
  %v2282 = vunpack.c.l.b16 %v2179
  %v2283 = vunpack.c.h.b16 %v2179
  %v2284 = vunpack.c.l.b16 %v2180
  %v2285 = vunpack.c.h.b16 %v2180
  %v2286 = vunpack.c.l.b16 %v2181
  %v2287 = vunpack.c.h.b16 %v2181
  %v2288 = vunpack.c.l.b16 %v2182
  %v2289 = vunpack.c.h.b16 %v2182
  %v2290 = vunpack.c.l.b16 %v2183
  %v2291 = vunpack.c.h.b16 %v2183
  %v2292 = vunpack.c.l.b16 %v2184
  %v2293 = vunpack.c.h.b16 %v2184
  %v2294 = vpack.c.b16 %v2232, %v2230
  %v2295 = vpack.c.b16 %v2233, %v2231
  %v2296 = vpack.c.b16 %v2236, %v2234
  %v2297 = vpack.c.b16 %v2237, %v2235
  %v2298 = vpack.c.b16 %v2240, %v2238
  %v2299 = vpack.c.b16 %v2241, %v2239
  %v2300 = vpack.c.b16 %v2244, %v2242
  %v2301 = vpack.c.b16 %v2245, %v2243
  %v2302 = vpack.c.b16 %v2248, %v2246
  %v2303 = vpack.c.b16 %v2249, %v2247
  %v2304 = vpack.c.b16 %v2252, %v2250
  %v2305 = vpack.c.b16 %v2253, %v2251
  %v2306 = vpack.c.b16 %v2256, %v2254
  %v2307 = vpack.c.b16 %v2257, %v2255
  %v2308 = vpack.c.b16 %v2260, %v2258
  %v2309 = vpack.c.b16 %v2261, %v2259
  %v2310 = vpack.c.b16 %v2264, %v2262
  %v2311 = vpack.c.b16 %v2265, %v2263
  %v2312 = vpack.c.b16 %v2268, %v2266
  %v2313 = vpack.c.b16 %v2269, %v2267
  %v2314 = vpack.c.b16 %v2272, %v2270
  %v2315 = vpack.c.b16 %v2273, %v2271
  %v2316 = vpack.c.b16 %v2276, %v2274
  %v2317 = vpack.c.b16 %v2277, %v2275
  %v2318 = vpack.c.b16 %v2280, %v2278
  %v2319 = vpack.c.b16 %v2281, %v2279
  %v2320 = vpack.c.b16 %v2284, %v2282
  %v2321 = vpack.c.b16 %v2285, %v2283
  %v2322 = vpack.c.b16 %v2288, %v2286
  %v2323 = vpack.c.b16 %v2289, %v2287
  %v2324 = vpack.c.b16 %v2292, %v2290
  %v2325 = vpack.c.b16 %v2293, %v2291
  %2358 = vmatprep.subr.bf16.mxu0 %v2309
  %2359 = vmatpush1.bf16.msra.mxu0 %v2308
  %2360 = vmatprep.subr.bf16.mxu0 %v2307
  %2361 = vmatpush1.bf16.msra.mxu0 %v2306
  %2362 = vmatprep.subr.bf16.mxu0 %v2305
  %2363 = vmatpush1.bf16.msra.mxu0 %v2304
  %2364 = vmatprep.subr.bf16.mxu0 %v2303
  %2365 = vmatpush1.bf16.msra.mxu0 %v2302
  %2366 = vmatprep.subr.bf16.mxu0 %v2301
  %2367 = vmatpush1.bf16.msra.mxu0 %v2300
  %2368 = vmatprep.subr.bf16.mxu0 %v2299
  %2369 = vmatpush1.bf16.msra.mxu0 %v2298
  %2370 = vmatprep.subr.bf16.mxu0 %v2297
  %2371 = vmatpush1.bf16.msra.mxu0 %v2296
  %2372 = vmatprep.subr.bf16.mxu0 %v2295
  %2373 = vmatpush1.bf16.msra.mxu0 %v2294
  %2374 = vmatprep.subr.bf16.mxu0 %v2325
  %2375 = vmatpush2.bf16.msra.mxu0 %v2324
  %2376 = vmatprep.subr.bf16.mxu0 %v2323
  %2377 = vmatpush2.bf16.msra.mxu0 %v2322
  %2378 = vmatprep.subr.bf16.mxu0 %v2321
  %2379 = vmatpush2.bf16.msra.mxu0 %v2320
  %2380 = vmatprep.subr.bf16.mxu0 %v2319
  %2381 = vmatpush2.bf16.msra.mxu0 %v2318
  %2382 = vmatprep.subr.bf16.mxu0 %v2317
  %2383 = vmatpush2.bf16.msra.mxu0 %v2316
  %2384 = vmatprep.subr.bf16.mxu0 %v2315
  %2385 = vmatpush2.bf16.msra.mxu0 %v2314
  %2386 = vmatprep.subr.bf16.mxu0 %v2313
  %2387 = vmatpush2.bf16.msra.mxu0 %v2312
  %2388 = vmatprep.subr.bf16.mxu0 %v2311
  %2389 = vmatpush2.bf16.msra.mxu0 %v2310
  %2390 = vmatprep.mubr.bf16.mxu0 %v2151
  %2391 = vmatmul.mubr.bf16.gmra.mxu0 %v2150
  %v2392 = vpop.f32.mrf.mxu0
  %v2393 = vadd.f32 %v2191, %v2392
  %v2394 = vpop.f32.mrf.mxu0
  %v2395 = vadd.f32 %v2195, %v2394
  %v2396 = vpop.f32.mrf.mxu0
  %v2397 = vpop.f32.mrf.mxu0
  %2398 = vdwg.mxu0
  %vm2399 = vcmp.gt.f32.partialorder %v2393, 0.0
  %vm2400 = vcmp.gt.f32.partialorder %v2395, 0.0
  %v2401 = vmul.f32 %v2393, 0.01
  %v2402 = vmul.f32 %v2395, 0.01
  %v2403 = vsel %vm2399, %v2393, %v2401
  %v2404 = vsel %vm2400, %v2395, %v2402
  %v2405 = vpack.c.bf16 %v2403, %v2403
  %v2406 = vpack.c.bf16 %v2404, %v2404
  %s2407 = scalar_lea.vmem %s5, 384
  %v2408 = vld [vmem:[%s2407] sm:$0xf]
  %v2409 = vld [vmem:[%s2407 + $0x4] sm:$0xf]
  %v2410 = vld [vmem:[%s2407 + $0x8] sm:$0xf]
  %v2411 = vld [vmem:[%s2407 + $0xc] sm:$0xf]
  %v2412 = vld [vmem:[%s2407 + $0x10] sm:$0xf]
  %v2413 = vld [vmem:[%s2407 + $0x14] sm:$0xf]
  %v2414 = vld [vmem:[%s2407 + $0x18] sm:$0xf]
  %v2415 = vld [vmem:[%s2407 + $0x1c] sm:$0xf]
  %v2416 = vld [vmem:[%s2407 + $0x20] sm:$0xf]
  %v2417 = vld [vmem:[%s2407 + $0x24] sm:$0xf]
  %v2418 = vld [vmem:[%s2407 + $0x28] sm:$0xf]
  %v2419 = vld [vmem:[%s2407 + $0x2c] sm:$0xf]
  %v2420 = vld [vmem:[%s2407 + $0x30] sm:$0xf]
  %v2421 = vld [vmem:[%s2407 + $0x34] sm:$0xf]
  %v2422 = vld [vmem:[%s2407 + $0x38] sm:$0xf]
  %v2423 = vld [vmem:[%s2407 + $0x3c] sm:$0xf]
  %v2424 = vld [vmem:[%s2407 + $0x40] sm:$0xf]
  %v2425 = vld [vmem:[%s2407 + $0x44] sm:$0xf]
  %v2426 = vld [vmem:[%s2407 + $0x48] sm:$0xf]
  %v2427 = vld [vmem:[%s2407 + $0x4c] sm:$0xf]
  %v2428 = vld [vmem:[%s2407 + $0x50] sm:$0xf]
  %v2429 = vld [vmem:[%s2407 + $0x54] sm:$0xf]
  %v2430 = vld [vmem:[%s2407 + $0x58] sm:$0xf]
  %v2431 = vld [vmem:[%s2407 + $0x5c] sm:$0xf]
  %v2432 = vld [vmem:[%s2407 + $0x60] sm:$0xf]
  %v2433 = vld [vmem:[%s2407 + $0x64] sm:$0xf]
  %v2434 = vld [vmem:[%s2407 + $0x68] sm:$0xf]
  %v2435 = vld [vmem:[%s2407 + $0x6c] sm:$0xf]
  %v2436 = vld [vmem:[%s2407 + $0x70] sm:$0xf]
  %v2437 = vld [vmem:[%s2407 + $0x74] sm:$0xf]
  %v2438 = vld [vmem:[%s2407 + $0x78] sm:$0xf]
  %v2439 = vld [vmem:[%s2407 + $0x7c] sm:$0xf]
  %s2440 = scalar_lea.vmem %s6, 3
  %v2441 = vld [vmem:[%s2440] sm:$0x1]
  %v2443 = vlaneseq
  %v2444 = vshrl.u32 %v2443, 7
  %v2445 = vsub.s32 0, %v2444
  %v2446 = vrot.slane %v2441, %v2445
  %v2480 = vunpack.c.l.b16 %v2408
  %v2481 = vunpack.c.l.b16 %v2409
  %v2482 = vunpack.c.l.b16 %v2410
  %v2483 = vunpack.c.l.b16 %v2411
  %v2484 = vunpack.c.l.b16 %v2412
  %v2485 = vunpack.c.l.b16 %v2413
  %v2486 = vunpack.c.l.b16 %v2414
  %v2487 = vunpack.c.l.b16 %v2415
  %v2488 = vunpack.c.l.b16 %v2416
  %v2489 = vunpack.c.l.b16 %v2417
  %v2490 = vunpack.c.l.b16 %v2418
  %v2491 = vunpack.c.l.b16 %v2419
  %v2492 = vunpack.c.l.b16 %v2420
  %v2493 = vunpack.c.l.b16 %v2421
  %v2494 = vunpack.c.l.b16 %v2422
  %v2495 = vunpack.c.l.b16 %v2423
  %v2496 = vunpack.c.l.b16 %v2424
  %v2497 = vunpack.c.l.b16 %v2425
  %v2498 = vunpack.c.l.b16 %v2426
  %v2499 = vunpack.c.l.b16 %v2427
  %v2500 = vunpack.c.l.b16 %v2428
  %v2501 = vunpack.c.l.b16 %v2429
  %v2502 = vunpack.c.l.b16 %v2430
  %v2503 = vunpack.c.l.b16 %v2431
  %v2504 = vunpack.c.l.b16 %v2432
  %v2505 = vunpack.c.l.b16 %v2433
  %v2506 = vunpack.c.l.b16 %v2434
  %v2507 = vunpack.c.l.b16 %v2435
  %v2508 = vunpack.c.l.b16 %v2436
  %v2509 = vunpack.c.l.b16 %v2437
  %v2510 = vunpack.c.l.b16 %v2438
  %v2511 = vunpack.c.l.b16 %v2439
  %v2512 = vpack.c.b16 %v2481, %v2480
  %v2513 = vpack.c.b16 %v2483, %v2482
  %v2514 = vpack.c.b16 %v2485, %v2484
  %v2515 = vpack.c.b16 %v2487, %v2486
  %v2516 = vpack.c.b16 %v2489, %v2488
  %v2517 = vpack.c.b16 %v2491, %v2490
  %v2518 = vpack.c.b16 %v2493, %v2492
  %v2519 = vpack.c.b16 %v2495, %v2494
  %v2520 = vpack.c.b16 %v2497, %v2496
  %v2521 = vpack.c.b16 %v2499, %v2498
  %v2522 = vpack.c.b16 %v2501, %v2500
  %v2523 = vpack.c.b16 %v2503, %v2502
  %v2524 = vpack.c.b16 %v2505, %v2504
  %v2525 = vpack.c.b16 %v2507, %v2506
  %v2526 = vpack.c.b16 %v2509, %v2508
  %v2527 = vpack.c.b16 %v2511, %v2510
  %2544 = vmatprep.subr.bf16.mxu0 0
  %2545 = vmatpush1.bf16.msra.mxu0 %v2519
  %2546 = vmatprep.subr.bf16.mxu0 0
  %2547 = vmatpush1.bf16.msra.mxu0 %v2518
  %2548 = vmatprep.subr.bf16.mxu0 0
  %2549 = vmatpush1.bf16.msra.mxu0 %v2517
  %2550 = vmatprep.subr.bf16.mxu0 0
  %2551 = vmatpush1.bf16.msra.mxu0 %v2516
  %2552 = vmatprep.subr.bf16.mxu0 0
  %2553 = vmatpush1.bf16.msra.mxu0 %v2515
  %2554 = vmatprep.subr.bf16.mxu0 0
  %2555 = vmatpush1.bf16.msra.mxu0 %v2514
  %2556 = vmatprep.subr.bf16.mxu0 0
  %2557 = vmatpush1.bf16.msra.mxu0 %v2513
  %2558 = vmatprep.subr.bf16.mxu0 0
  %2559 = vmatpush1.bf16.msra.mxu0 %v2512
  %2560 = vmatprep.subr.bf16.mxu0 0
  %2561 = vmatpush2.bf16.msra.mxu0 %v2527
  %2562 = vmatprep.subr.bf16.mxu0 0
  %2563 = vmatpush2.bf16.msra.mxu0 %v2526
  %2564 = vmatprep.subr.bf16.mxu0 0
  %2565 = vmatpush2.bf16.msra.mxu0 %v2525
  %2566 = vmatprep.subr.bf16.mxu0 0
  %2567 = vmatpush2.bf16.msra.mxu0 %v2524
  %2568 = vmatprep.subr.bf16.mxu0 0
  %2569 = vmatpush2.bf16.msra.mxu0 %v2523
  %2570 = vmatprep.subr.bf16.mxu0 0
  %2571 = vmatpush2.bf16.msra.mxu0 %v2522
  %2572 = vmatprep.subr.bf16.mxu0 0
  %2573 = vmatpush2.bf16.msra.mxu0 %v2521
  %2574 = vmatprep.subr.bf16.mxu0 0
  %2575 = vmatpush2.bf16.msra.mxu0 %v2520
  %2576 = vmatprep.mubr.bf16.mxu0 %v2406
  %2577 = vmatmul.mubr.bf16.gmra.mxu0 %v2405
  %v2578 = vpop.f32.mrf.mxu0
  %v2579 = vadd.f32 %v2446, %v2578
  %v2580 = vpop.f32.mrf.mxu0
  %v2581 = vpop.f32.mrf.mxu0
  %v2582 = vpop.f32.mrf.mxu0
  %2583 = vdwg.mxu0
  %s2584 = scalar_lea.vmem %s7, 384
  %v2585 = vld [vmem:[%s2584] sm:$0xf]
  %v2586 = vld [vmem:[%s2584 + $0x4] sm:$0xf]
  %v2587 = vld [vmem:[%s2584 + $0x8] sm:$0xf]
  %v2588 = vld [vmem:[%s2584 + $0xc] sm:$0xf]
  %v2589 = vld [vmem:[%s2584 + $0x10] sm:$0xf]
  %v2590 = vld [vmem:[%s2584 + $0x14] sm:$0xf]
  %v2591 = vld [vmem:[%s2584 + $0x18] sm:$0xf]
  %v2592 = vld [vmem:[%s2584 + $0x1c] sm:$0xf]
  %v2593 = vld [vmem:[%s2584 + $0x20] sm:$0xf]
  %v2594 = vld [vmem:[%s2584 + $0x24] sm:$0xf]
  %v2595 = vld [vmem:[%s2584 + $0x28] sm:$0xf]
  %v2596 = vld [vmem:[%s2584 + $0x2c] sm:$0xf]
  %v2597 = vld [vmem:[%s2584 + $0x30] sm:$0xf]
  %v2598 = vld [vmem:[%s2584 + $0x34] sm:$0xf]
  %v2599 = vld [vmem:[%s2584 + $0x38] sm:$0xf]
  %v2600 = vld [vmem:[%s2584 + $0x3c] sm:$0xf]
  %v2601 = vld [vmem:[%s2584 + $0x40] sm:$0xf]
  %v2602 = vld [vmem:[%s2584 + $0x44] sm:$0xf]
  %v2603 = vld [vmem:[%s2584 + $0x48] sm:$0xf]
  %v2604 = vld [vmem:[%s2584 + $0x4c] sm:$0xf]
  %v2605 = vld [vmem:[%s2584 + $0x50] sm:$0xf]
  %v2606 = vld [vmem:[%s2584 + $0x54] sm:$0xf]
  %v2607 = vld [vmem:[%s2584 + $0x58] sm:$0xf]
  %v2608 = vld [vmem:[%s2584 + $0x5c] sm:$0xf]
  %v2609 = vld [vmem:[%s2584 + $0x60] sm:$0xf]
  %v2610 = vld [vmem:[%s2584 + $0x64] sm:$0xf]
  %v2611 = vld [vmem:[%s2584 + $0x68] sm:$0xf]
  %v2612 = vld [vmem:[%s2584 + $0x6c] sm:$0xf]
  %v2613 = vld [vmem:[%s2584 + $0x70] sm:$0xf]
  %v2614 = vld [vmem:[%s2584 + $0x74] sm:$0xf]
  %v2615 = vld [vmem:[%s2584 + $0x78] sm:$0xf]
  %v2616 = vld [vmem:[%s2584 + $0x7c] sm:$0xf]
  %s2617 = scalar_lea.vmem %s8, 3
  %v2618 = vld [vmem:[%s2617] sm:$0x1]
  %v2620 = vlaneseq
  %v2621 = vshrl.u32 %v2620, 7
  %v2622 = vsub.s32 0, %v2621
  %v2623 = vrot.slane %v2618, %v2622
  %v2657 = vunpack.c.l.b16 %v2585
  %v2658 = vunpack.c.l.b16 %v2586
  %v2659 = vunpack.c.l.b16 %v2587
  %v2660 = vunpack.c.l.b16 %v2588
  %v2661 = vunpack.c.l.b16 %v2589
  %v2662 = vunpack.c.l.b16 %v2590
  %v2663 = vunpack.c.l.b16 %v2591
  %v2664 = vunpack.c.l.b16 %v2592
  %v2665 = vunpack.c.l.b16 %v2593
  %v2666 = vunpack.c.l.b16 %v2594
  %v2667 = vunpack.c.l.b16 %v2595
  %v2668 = vunpack.c.l.b16 %v2596
  %v2669 = vunpack.c.l.b16 %v2597
  %v2670 = vunpack.c.l.b16 %v2598
  %v2671 = vunpack.c.l.b16 %v2599
  %v2672 = vunpack.c.l.b16 %v2600
  %v2673 = vunpack.c.l.b16 %v2601
  %v2674 = vunpack.c.l.b16 %v2602
  %v2675 = vunpack.c.l.b16 %v2603
  %v2676 = vunpack.c.l.b16 %v2604
  %v2677 = vunpack.c.l.b16 %v2605
  %v2678 = vunpack.c.l.b16 %v2606
  %v2679 = vunpack.c.l.b16 %v2607
  %v2680 = vunpack.c.l.b16 %v2608
  %v2681 = vunpack.c.l.b16 %v2609
  %v2682 = vunpack.c.l.b16 %v2610
  %v2683 = vunpack.c.l.b16 %v2611
  %v2684 = vunpack.c.l.b16 %v2612
  %v2685 = vunpack.c.l.b16 %v2613
  %v2686 = vunpack.c.l.b16 %v2614
  %v2687 = vunpack.c.l.b16 %v2615
  %v2688 = vunpack.c.l.b16 %v2616
  %v2689 = vpack.c.b16 %v2658, %v2657
  %v2690 = vpack.c.b16 %v2660, %v2659
  %v2691 = vpack.c.b16 %v2662, %v2661
  %v2692 = vpack.c.b16 %v2664, %v2663
  %v2693 = vpack.c.b16 %v2666, %v2665
  %v2694 = vpack.c.b16 %v2668, %v2667
  %v2695 = vpack.c.b16 %v2670, %v2669
  %v2696 = vpack.c.b16 %v2672, %v2671
  %v2697 = vpack.c.b16 %v2674, %v2673
  %v2698 = vpack.c.b16 %v2676, %v2675
  %v2699 = vpack.c.b16 %v2678, %v2677
  %v2700 = vpack.c.b16 %v2680, %v2679
  %v2701 = vpack.c.b16 %v2682, %v2681
  %v2702 = vpack.c.b16 %v2684, %v2683
  %v2703 = vpack.c.b16 %v2686, %v2685
  %v2704 = vpack.c.b16 %v2688, %v2687
  %2721 = vmatprep.subr.bf16.mxu0 0
  %2722 = vmatpush1.bf16.msra.mxu0 %v2696
  %2723 = vmatprep.subr.bf16.mxu0 0
  %2724 = vmatpush1.bf16.msra.mxu0 %v2695
  %2725 = vmatprep.subr.bf16.mxu0 0
  %2726 = vmatpush1.bf16.msra.mxu0 %v2694
  %2727 = vmatprep.subr.bf16.mxu0 0
  %2728 = vmatpush1.bf16.msra.mxu0 %v2693
  %2729 = vmatprep.subr.bf16.mxu0 0
  %2730 = vmatpush1.bf16.msra.mxu0 %v2692
  %2731 = vmatprep.subr.bf16.mxu0 0
  %2732 = vmatpush1.bf16.msra.mxu0 %v2691
  %2733 = vmatprep.subr.bf16.mxu0 0
  %2734 = vmatpush1.bf16.msra.mxu0 %v2690
  %2735 = vmatprep.subr.bf16.mxu0 0
  %2736 = vmatpush1.bf16.msra.mxu0 %v2689
  %2737 = vmatprep.subr.bf16.mxu0 0
  %2738 = vmatpush2.bf16.msra.mxu0 %v2704
  %2739 = vmatprep.subr.bf16.mxu0 0
  %2740 = vmatpush2.bf16.msra.mxu0 %v2703
  %2741 = vmatprep.subr.bf16.mxu0 0
  %2742 = vmatpush2.bf16.msra.mxu0 %v2702
  %2743 = vmatprep.subr.bf16.mxu0 0
  %2744 = vmatpush2.bf16.msra.mxu0 %v2701
  %2745 = vmatprep.subr.bf16.mxu0 0
  %2746 = vmatpush2.bf16.msra.mxu0 %v2700
  %2747 = vmatprep.subr.bf16.mxu0 0
  %2748 = vmatpush2.bf16.msra.mxu0 %v2699
  %2749 = vmatprep.subr.bf16.mxu0 0
  %2750 = vmatpush2.bf16.msra.mxu0 %v2698
  %2751 = vmatprep.subr.bf16.mxu0 0
  %2752 = vmatpush2.bf16.msra.mxu0 %v2697
  %2753 = vmatprep.mubr.bf16.mxu0 %v2406
  %2754 = vmatmul.mubr.bf16.gmra.mxu0 %v2405
  %v2755 = vpop.f32.mrf.mxu0
  %v2756 = vadd.f32 %v2623, %v2755
  %v2757 = vpop.f32.mrf.mxu0
  %v2758 = vpop.f32.mrf.mxu0
  %v2759 = vpop.f32.mrf.mxu0
  %2760 = vdwg.mxu0
  %v2762 = vlaneseq
  %v2763 = vshrl.u32 %v2762, 7
  %v2764 = vsub.s32 0, %v2763
  %v2765 = vrot.slane %v2100, %v2764
  %v2767 = vmul.f32 %v2579, %v2765
  %v2768 = vtanh.pop %v2767
  %v2769 = vmul.f32 %v2756, %v2765
  %v2771 = vlaneseq
  %v2772 = vshrl.u32 %v2771, 7
  %v2773 = vsub.s32 0, %v2772
  %v2774 = vrot.slane %v2099, %v2773
  %v2776 = vmul.f32 %v2093, %v2774
  %v2777 = vmul.f32 %v2768, 1.442695
  %v2778 = vpow.pop %v2777
  %v2779 = vmul.f32 %v2093, %v2778
  %v2780 = vadd.f32 %v2779, %v2769
  %v2781 = vmul.f32 %v2765, %v2780
  %v2782 = vadd.f32 %v2776, %v2781
  %v2783 = vsel %vm715, %v2768, 0.0
  %2784 = vadd.xlane.f32.xlu0 %v2783
  %v2785 = vpop.xlane.xlu0 %2784
  %v2786 = vadd.f32 %v2097, %v2785
  %s2787 = scalar_lea.vmem %s9, 4
  %v2788 = vld [vmem:[%s2787] sm:$0x1]
  %v2789 = vsub.f32 1.0, %v2788
  %s2790 = scalar_lea.vmem %s1, 16
  %v2791 = vld [vmem:[%s2790] sm:$0xf]
  %s2792 = scalar_lea.vmem %s2, 8
  %v2793 = vld [vmem:[%s2792] sm:$0x3]
  %2795 = vset.pattern.permute.xlu0 1
  %2796 = vperm.xlu0 %2795, %v2782
  %v2797 = vpop.permute.xlu0 %2796
  %v2800 = vlaneseq
  %v2801 = vshrl.u32 %v2800, 7
  %v2802 = vsub.s32 1, %v2801
  %v2803 = vrot.slane %v2791, %v2802
  %v2804 = vlaneseq
  %v2805 = vshrl.u32 %v2804, 7
  %v2806 = vsub.s32 3, %v2805
  %v2807 = vrot.slane %v2791, %v2806
  %v2810 = vlaneseq
  %v2811 = vshrl.u32 %v2810, 7
  %v2812 = vsub.s32 1, %v2811
  %v2813 = vrot.slane %v2803, %v2812
  %v2814 = vlaneseq
  %v2815 = vshrl.u32 %v2814, 7
  %v2816 = vsub.s32 1, %v2815
  %v2817 = vrot.slane %v2807, %v2816
  %v2818 = vmul.f32 %v2797, %v2813
  %v2819 = vmul.f32 %v2797, %v2817
  %v2821 = vlaneseq
  %v2822 = vshrl.u32 %v2821, 7
  %v2823 = vsub.s32 0, %v2822
  %v2824 = vrot.slane %v2793, %v2823
  %v2825 = vlaneseq
  %v2826 = vshrl.u32 %v2825, 7
  %v2827 = vsub.s32 1, %v2826
  %v2828 = vrot.slane %v2793, %v2827
  %v2831 = vadd.f32 %v2824, %v2818
  %v2832 = vadd.f32 %v2828, %v2819
  %vm2833 = vcmp.gt.f32.partialorder %v2831, 0.0
  %vm2834 = vcmp.gt.f32.partialorder %v2832, 0.0
  %v2835 = vmul.f32 %v2831, 0.01
  %v2836 = vmul.f32 %v2832, 0.01
  %v2837 = vsel %vm2833, %v2831, %v2835
  %v2838 = vsel %vm2834, %v2832, %v2836
  %v2839 = vpack.c.bf16 %v2837, %v2837
  %v2840 = vpack.c.bf16 %v2838, %v2838
  %s2841 = scalar_lea.vmem %s3, 1024
  %v2842 = vld [vmem:[%s2841] sm:$0xff]
  %v2843 = vld [vmem:[%s2841 + $0x8] sm:$0xff]
  %v2844 = vld [vmem:[%s2841 + $0x10] sm:$0xff]
  %v2845 = vld [vmem:[%s2841 + $0x18] sm:$0xff]
  %v2846 = vld [vmem:[%s2841 + $0x20] sm:$0xff]
  %v2847 = vld [vmem:[%s2841 + $0x28] sm:$0xff]
  %v2848 = vld [vmem:[%s2841 + $0x30] sm:$0xff]
  %v2849 = vld [vmem:[%s2841 + $0x38] sm:$0xff]
  %v2850 = vld [vmem:[%s2841 + $0x40] sm:$0xff]
  %v2851 = vld [vmem:[%s2841 + $0x48] sm:$0xff]
  %v2852 = vld [vmem:[%s2841 + $0x50] sm:$0xff]
  %v2853 = vld [vmem:[%s2841 + $0x58] sm:$0xff]
  %v2854 = vld [vmem:[%s2841 + $0x60] sm:$0xff]
  %v2855 = vld [vmem:[%s2841 + $0x68] sm:$0xff]
  %v2856 = vld [vmem:[%s2841 + $0x70] sm:$0xff]
  %v2857 = vld [vmem:[%s2841 + $0x78] sm:$0xff]
  %v2858 = vld [vmem:[%s2841 + $0x80] sm:$0xff]
  %v2859 = vld [vmem:[%s2841 + $0x88] sm:$0xff]
  %v2860 = vld [vmem:[%s2841 + $0x90] sm:$0xff]
  %v2861 = vld [vmem:[%s2841 + $0x98] sm:$0xff]
  %v2862 = vld [vmem:[%s2841 + $0xa0] sm:$0xff]
  %v2863 = vld [vmem:[%s2841 + $0xa8] sm:$0xff]
  %v2864 = vld [vmem:[%s2841 + $0xb0] sm:$0xff]
  %v2865 = vld [vmem:[%s2841 + $0xb8] sm:$0xff]
  %v2866 = vld [vmem:[%s2841 + $0xc0] sm:$0xff]
  %v2867 = vld [vmem:[%s2841 + $0xc8] sm:$0xff]
  %v2868 = vld [vmem:[%s2841 + $0xd0] sm:$0xff]
  %v2869 = vld [vmem:[%s2841 + $0xd8] sm:$0xff]
  %v2870 = vld [vmem:[%s2841 + $0xe0] sm:$0xff]
  %v2871 = vld [vmem:[%s2841 + $0xe8] sm:$0xff]
  %v2872 = vld [vmem:[%s2841 + $0xf0] sm:$0xff]
  %v2873 = vld [vmem:[%s2841 + $0xf8] sm:$0xff]
  %s2874 = scalar_lea.vmem %s4, 8
  %v2875 = vld [vmem:[%s2874] sm:$0x3]
  %v2877 = vlaneseq
  %v2878 = vshrl.u32 %v2877, 7
  %v2879 = vsub.s32 0, %v2878
  %v2880 = vrot.slane %v2875, %v2879
  %v2881 = vlaneseq
  %v2882 = vshrl.u32 %v2881, 7
  %v2883 = vsub.s32 1, %v2882
  %v2884 = vrot.slane %v2875, %v2883
  %v2919 = vunpack.c.l.b16 %v2842
  %v2920 = vunpack.c.h.b16 %v2842
  %v2921 = vunpack.c.l.b16 %v2843
  %v2922 = vunpack.c.h.b16 %v2843
  %v2923 = vunpack.c.l.b16 %v2844
  %v2924 = vunpack.c.h.b16 %v2844
  %v2925 = vunpack.c.l.b16 %v2845
  %v2926 = vunpack.c.h.b16 %v2845
  %v2927 = vunpack.c.l.b16 %v2846
  %v2928 = vunpack.c.h.b16 %v2846
  %v2929 = vunpack.c.l.b16 %v2847
  %v2930 = vunpack.c.h.b16 %v2847
  %v2931 = vunpack.c.l.b16 %v2848
  %v2932 = vunpack.c.h.b16 %v2848
  %v2933 = vunpack.c.l.b16 %v2849
  %v2934 = vunpack.c.h.b16 %v2849
  %v2935 = vunpack.c.l.b16 %v2850
  %v2936 = vunpack.c.h.b16 %v2850
  %v2937 = vunpack.c.l.b16 %v2851
  %v2938 = vunpack.c.h.b16 %v2851
  %v2939 = vunpack.c.l.b16 %v2852
  %v2940 = vunpack.c.h.b16 %v2852
  %v2941 = vunpack.c.l.b16 %v2853
  %v2942 = vunpack.c.h.b16 %v2853
  %v2943 = vunpack.c.l.b16 %v2854
  %v2944 = vunpack.c.h.b16 %v2854
  %v2945 = vunpack.c.l.b16 %v2855
  %v2946 = vunpack.c.h.b16 %v2855
  %v2947 = vunpack.c.l.b16 %v2856
  %v2948 = vunpack.c.h.b16 %v2856
  %v2949 = vunpack.c.l.b16 %v2857
  %v2950 = vunpack.c.h.b16 %v2857
  %v2951 = vunpack.c.l.b16 %v2858
  %v2952 = vunpack.c.h.b16 %v2858
  %v2953 = vunpack.c.l.b16 %v2859
  %v2954 = vunpack.c.h.b16 %v2859
  %v2955 = vunpack.c.l.b16 %v2860
  %v2956 = vunpack.c.h.b16 %v2860
  %v2957 = vunpack.c.l.b16 %v2861
  %v2958 = vunpack.c.h.b16 %v2861
  %v2959 = vunpack.c.l.b16 %v2862
  %v2960 = vunpack.c.h.b16 %v2862
  %v2961 = vunpack.c.l.b16 %v2863
  %v2962 = vunpack.c.h.b16 %v2863
  %v2963 = vunpack.c.l.b16 %v2864
  %v2964 = vunpack.c.h.b16 %v2864
  %v2965 = vunpack.c.l.b16 %v2865
  %v2966 = vunpack.c.h.b16 %v2865
  %v2967 = vunpack.c.l.b16 %v2866
  %v2968 = vunpack.c.h.b16 %v2866
  %v2969 = vunpack.c.l.b16 %v2867
  %v2970 = vunpack.c.h.b16 %v2867
  %v2971 = vunpack.c.l.b16 %v2868
  %v2972 = vunpack.c.h.b16 %v2868
  %v2973 = vunpack.c.l.b16 %v2869
  %v2974 = vunpack.c.h.b16 %v2869
  %v2975 = vunpack.c.l.b16 %v2870
  %v2976 = vunpack.c.h.b16 %v2870
  %v2977 = vunpack.c.l.b16 %v2871
  %v2978 = vunpack.c.h.b16 %v2871
  %v2979 = vunpack.c.l.b16 %v2872
  %v2980 = vunpack.c.h.b16 %v2872
  %v2981 = vunpack.c.l.b16 %v2873
  %v2982 = vunpack.c.h.b16 %v2873
  %v2983 = vpack.c.b16 %v2921, %v2919
  %v2984 = vpack.c.b16 %v2922, %v2920
  %v2985 = vpack.c.b16 %v2925, %v2923
  %v2986 = vpack.c.b16 %v2926, %v2924
  %v2987 = vpack.c.b16 %v2929, %v2927
  %v2988 = vpack.c.b16 %v2930, %v2928
  %v2989 = vpack.c.b16 %v2933, %v2931
  %v2990 = vpack.c.b16 %v2934, %v2932
  %v2991 = vpack.c.b16 %v2937, %v2935
  %v2992 = vpack.c.b16 %v2938, %v2936
  %v2993 = vpack.c.b16 %v2941, %v2939
  %v2994 = vpack.c.b16 %v2942, %v2940
  %v2995 = vpack.c.b16 %v2945, %v2943
  %v2996 = vpack.c.b16 %v2946, %v2944
  %v2997 = vpack.c.b16 %v2949, %v2947
  %v2998 = vpack.c.b16 %v2950, %v2948
  %v2999 = vpack.c.b16 %v2953, %v2951
  %v3000 = vpack.c.b16 %v2954, %v2952
  %v3001 = vpack.c.b16 %v2957, %v2955
  %v3002 = vpack.c.b16 %v2958, %v2956
  %v3003 = vpack.c.b16 %v2961, %v2959
  %v3004 = vpack.c.b16 %v2962, %v2960
  %v3005 = vpack.c.b16 %v2965, %v2963
  %v3006 = vpack.c.b16 %v2966, %v2964
  %v3007 = vpack.c.b16 %v2969, %v2967
  %v3008 = vpack.c.b16 %v2970, %v2968
  %v3009 = vpack.c.b16 %v2973, %v2971
  %v3010 = vpack.c.b16 %v2974, %v2972
  %v3011 = vpack.c.b16 %v2977, %v2975
  %v3012 = vpack.c.b16 %v2978, %v2976
  %v3013 = vpack.c.b16 %v2981, %v2979
  %v3014 = vpack.c.b16 %v2982, %v2980
  %3047 = vmatprep.subr.bf16.mxu0 %v2998
  %3048 = vmatpush1.bf16.msra.mxu0 %v2997
  %3049 = vmatprep.subr.bf16.mxu0 %v2996
  %3050 = vmatpush1.bf16.msra.mxu0 %v2995
  %3051 = vmatprep.subr.bf16.mxu0 %v2994
  %3052 = vmatpush1.bf16.msra.mxu0 %v2993
  %3053 = vmatprep.subr.bf16.mxu0 %v2992
  %3054 = vmatpush1.bf16.msra.mxu0 %v2991
  %3055 = vmatprep.subr.bf16.mxu0 %v2990
  %3056 = vmatpush1.bf16.msra.mxu0 %v2989
  %3057 = vmatprep.subr.bf16.mxu0 %v2988
  %3058 = vmatpush1.bf16.msra.mxu0 %v2987
  %3059 = vmatprep.subr.bf16.mxu0 %v2986
  %3060 = vmatpush1.bf16.msra.mxu0 %v2985
  %3061 = vmatprep.subr.bf16.mxu0 %v2984
  %3062 = vmatpush1.bf16.msra.mxu0 %v2983
  %3063 = vmatprep.subr.bf16.mxu0 %v3014
  %3064 = vmatpush2.bf16.msra.mxu0 %v3013
  %3065 = vmatprep.subr.bf16.mxu0 %v3012
  %3066 = vmatpush2.bf16.msra.mxu0 %v3011
  %3067 = vmatprep.subr.bf16.mxu0 %v3010
  %3068 = vmatpush2.bf16.msra.mxu0 %v3009
  %3069 = vmatprep.subr.bf16.mxu0 %v3008
  %3070 = vmatpush2.bf16.msra.mxu0 %v3007
  %3071 = vmatprep.subr.bf16.mxu0 %v3006
  %3072 = vmatpush2.bf16.msra.mxu0 %v3005
  %3073 = vmatprep.subr.bf16.mxu0 %v3004
  %3074 = vmatpush2.bf16.msra.mxu0 %v3003
  %3075 = vmatprep.subr.bf16.mxu0 %v3002
  %3076 = vmatpush2.bf16.msra.mxu0 %v3001
  %3077 = vmatprep.subr.bf16.mxu0 %v3000
  %3078 = vmatpush2.bf16.msra.mxu0 %v2999
  %3079 = vmatprep.mubr.bf16.mxu0 %v2840
  %3080 = vmatmul.mubr.bf16.gmra.mxu0 %v2839
  %v3081 = vpop.f32.mrf.mxu0
  %v3082 = vadd.f32 %v2880, %v3081
  %v3083 = vpop.f32.mrf.mxu0
  %v3084 = vadd.f32 %v2884, %v3083
  %v3085 = vpop.f32.mrf.mxu0
  %v3086 = vpop.f32.mrf.mxu0
  %3087 = vdwg.mxu0
  %vm3088 = vcmp.gt.f32.partialorder %v3082, 0.0
  %vm3089 = vcmp.gt.f32.partialorder %v3084, 0.0
  %v3090 = vmul.f32 %v3082, 0.01
  %v3091 = vmul.f32 %v3084, 0.01
  %v3092 = vsel %vm3088, %v3082, %v3090
  %v3093 = vsel %vm3089, %v3084, %v3091
  %v3094 = vpack.c.bf16 %v3092, %v3092
  %v3095 = vpack.c.bf16 %v3093, %v3093
  %s3096 = scalar_lea.vmem %s5, 512
  %v3097 = vld [vmem:[%s3096] sm:$0xf]
  %v3098 = vld [vmem:[%s3096 + $0x4] sm:$0xf]
  %v3099 = vld [vmem:[%s3096 + $0x8] sm:$0xf]
  %v3100 = vld [vmem:[%s3096 + $0xc] sm:$0xf]
  %v3101 = vld [vmem:[%s3096 + $0x10] sm:$0xf]
  %v3102 = vld [vmem:[%s3096 + $0x14] sm:$0xf]
  %v3103 = vld [vmem:[%s3096 + $0x18] sm:$0xf]
  %v3104 = vld [vmem:[%s3096 + $0x1c] sm:$0xf]
  %v3105 = vld [vmem:[%s3096 + $0x20] sm:$0xf]
  %v3106 = vld [vmem:[%s3096 + $0x24] sm:$0xf]
  %v3107 = vld [vmem:[%s3096 + $0x28] sm:$0xf]
  %v3108 = vld [vmem:[%s3096 + $0x2c] sm:$0xf]
  %v3109 = vld [vmem:[%s3096 + $0x30] sm:$0xf]
  %v3110 = vld [vmem:[%s3096 + $0x34] sm:$0xf]
  %v3111 = vld [vmem:[%s3096 + $0x38] sm:$0xf]
  %v3112 = vld [vmem:[%s3096 + $0x3c] sm:$0xf]
  %v3113 = vld [vmem:[%s3096 + $0x40] sm:$0xf]
  %v3114 = vld [vmem:[%s3096 + $0x44] sm:$0xf]
  %v3115 = vld [vmem:[%s3096 + $0x48] sm:$0xf]
  %v3116 = vld [vmem:[%s3096 + $0x4c] sm:$0xf]
  %v3117 = vld [vmem:[%s3096 + $0x50] sm:$0xf]
  %v3118 = vld [vmem:[%s3096 + $0x54] sm:$0xf]
  %v3119 = vld [vmem:[%s3096 + $0x58] sm:$0xf]
  %v3120 = vld [vmem:[%s3096 + $0x5c] sm:$0xf]
  %v3121 = vld [vmem:[%s3096 + $0x60] sm:$0xf]
  %v3122 = vld [vmem:[%s3096 + $0x64] sm:$0xf]
  %v3123 = vld [vmem:[%s3096 + $0x68] sm:$0xf]
  %v3124 = vld [vmem:[%s3096 + $0x6c] sm:$0xf]
  %v3125 = vld [vmem:[%s3096 + $0x70] sm:$0xf]
  %v3126 = vld [vmem:[%s3096 + $0x74] sm:$0xf]
  %v3127 = vld [vmem:[%s3096 + $0x78] sm:$0xf]
  %v3128 = vld [vmem:[%s3096 + $0x7c] sm:$0xf]
  %s3129 = scalar_lea.vmem %s6, 4
  %v3130 = vld [vmem:[%s3129] sm:$0x1]
  %v3132 = vlaneseq
  %v3133 = vshrl.u32 %v3132, 7
  %v3134 = vsub.s32 0, %v3133
  %v3135 = vrot.slane %v3130, %v3134
  %v3169 = vunpack.c.l.b16 %v3097
  %v3170 = vunpack.c.l.b16 %v3098
  %v3171 = vunpack.c.l.b16 %v3099
  %v3172 = vunpack.c.l.b16 %v3100
  %v3173 = vunpack.c.l.b16 %v3101
  %v3174 = vunpack.c.l.b16 %v3102
  %v3175 = vunpack.c.l.b16 %v3103
  %v3176 = vunpack.c.l.b16 %v3104
  %v3177 = vunpack.c.l.b16 %v3105
  %v3178 = vunpack.c.l.b16 %v3106
  %v3179 = vunpack.c.l.b16 %v3107
  %v3180 = vunpack.c.l.b16 %v3108
  %v3181 = vunpack.c.l.b16 %v3109
  %v3182 = vunpack.c.l.b16 %v3110
  %v3183 = vunpack.c.l.b16 %v3111
  %v3184 = vunpack.c.l.b16 %v3112
  %v3185 = vunpack.c.l.b16 %v3113
  %v3186 = vunpack.c.l.b16 %v3114
  %v3187 = vunpack.c.l.b16 %v3115
  %v3188 = vunpack.c.l.b16 %v3116
  %v3189 = vunpack.c.l.b16 %v3117
  %v3190 = vunpack.c.l.b16 %v3118
  %v3191 = vunpack.c.l.b16 %v3119
  %v3192 = vunpack.c.l.b16 %v3120
  %v3193 = vunpack.c.l.b16 %v3121
  %v3194 = vunpack.c.l.b16 %v3122
  %v3195 = vunpack.c.l.b16 %v3123
  %v3196 = vunpack.c.l.b16 %v3124
  %v3197 = vunpack.c.l.b16 %v3125
  %v3198 = vunpack.c.l.b16 %v3126
  %v3199 = vunpack.c.l.b16 %v3127
  %v3200 = vunpack.c.l.b16 %v3128
  %v3201 = vpack.c.b16 %v3170, %v3169
  %v3202 = vpack.c.b16 %v3172, %v3171
  %v3203 = vpack.c.b16 %v3174, %v3173
  %v3204 = vpack.c.b16 %v3176, %v3175
  %v3205 = vpack.c.b16 %v3178, %v3177
  %v3206 = vpack.c.b16 %v3180, %v3179
  %v3207 = vpack.c.b16 %v3182, %v3181
  %v3208 = vpack.c.b16 %v3184, %v3183
  %v3209 = vpack.c.b16 %v3186, %v3185
  %v3210 = vpack.c.b16 %v3188, %v3187
  %v3211 = vpack.c.b16 %v3190, %v3189
  %v3212 = vpack.c.b16 %v3192, %v3191
  %v3213 = vpack.c.b16 %v3194, %v3193
  %v3214 = vpack.c.b16 %v3196, %v3195
  %v3215 = vpack.c.b16 %v3198, %v3197
  %v3216 = vpack.c.b16 %v3200, %v3199
  %3233 = vmatprep.subr.bf16.mxu0 0
  %3234 = vmatpush1.bf16.msra.mxu0 %v3208
  %3235 = vmatprep.subr.bf16.mxu0 0
  %3236 = vmatpush1.bf16.msra.mxu0 %v3207
  %3237 = vmatprep.subr.bf16.mxu0 0
  %3238 = vmatpush1.bf16.msra.mxu0 %v3206
  %3239 = vmatprep.subr.bf16.mxu0 0
  %3240 = vmatpush1.bf16.msra.mxu0 %v3205
  %3241 = vmatprep.subr.bf16.mxu0 0
  %3242 = vmatpush1.bf16.msra.mxu0 %v3204
  %3243 = vmatprep.subr.bf16.mxu0 0
  %3244 = vmatpush1.bf16.msra.mxu0 %v3203
  %3245 = vmatprep.subr.bf16.mxu0 0
  %3246 = vmatpush1.bf16.msra.mxu0 %v3202
  %3247 = vmatprep.subr.bf16.mxu0 0
  %3248 = vmatpush1.bf16.msra.mxu0 %v3201
  %3249 = vmatprep.subr.bf16.mxu0 0
  %3250 = vmatpush2.bf16.msra.mxu0 %v3216
  %3251 = vmatprep.subr.bf16.mxu0 0
  %3252 = vmatpush2.bf16.msra.mxu0 %v3215
  %3253 = vmatprep.subr.bf16.mxu0 0
  %3254 = vmatpush2.bf16.msra.mxu0 %v3214
  %3255 = vmatprep.subr.bf16.mxu0 0
  %3256 = vmatpush2.bf16.msra.mxu0 %v3213
  %3257 = vmatprep.subr.bf16.mxu0 0
  %3258 = vmatpush2.bf16.msra.mxu0 %v3212
  %3259 = vmatprep.subr.bf16.mxu0 0
  %3260 = vmatpush2.bf16.msra.mxu0 %v3211
  %3261 = vmatprep.subr.bf16.mxu0 0
  %3262 = vmatpush2.bf16.msra.mxu0 %v3210
  %3263 = vmatprep.subr.bf16.mxu0 0
  %3264 = vmatpush2.bf16.msra.mxu0 %v3209
  %3265 = vmatprep.mubr.bf16.mxu0 %v3095
  %3266 = vmatmul.mubr.bf16.gmra.mxu0 %v3094
  %v3267 = vpop.f32.mrf.mxu0
  %v3268 = vadd.f32 %v3135, %v3267
  %v3269 = vpop.f32.mrf.mxu0
  %v3270 = vpop.f32.mrf.mxu0
  %v3271 = vpop.f32.mrf.mxu0
  %3272 = vdwg.mxu0
  %s3273 = scalar_lea.vmem %s7, 512
  %v3274 = vld [vmem:[%s3273] sm:$0xf]
  %v3275 = vld [vmem:[%s3273 + $0x4] sm:$0xf]
  %v3276 = vld [vmem:[%s3273 + $0x8] sm:$0xf]
  %v3277 = vld [vmem:[%s3273 + $0xc] sm:$0xf]
  %v3278 = vld [vmem:[%s3273 + $0x10] sm:$0xf]
  %v3279 = vld [vmem:[%s3273 + $0x14] sm:$0xf]
  %v3280 = vld [vmem:[%s3273 + $0x18] sm:$0xf]
  %v3281 = vld [vmem:[%s3273 + $0x1c] sm:$0xf]
  %v3282 = vld [vmem:[%s3273 + $0x20] sm:$0xf]
  %v3283 = vld [vmem:[%s3273 + $0x24] sm:$0xf]
  %v3284 = vld [vmem:[%s3273 + $0x28] sm:$0xf]
  %v3285 = vld [vmem:[%s3273 + $0x2c] sm:$0xf]
  %v3286 = vld [vmem:[%s3273 + $0x30] sm:$0xf]
  %v3287 = vld [vmem:[%s3273 + $0x34] sm:$0xf]
  %v3288 = vld [vmem:[%s3273 + $0x38] sm:$0xf]
  %v3289 = vld [vmem:[%s3273 + $0x3c] sm:$0xf]
  %v3290 = vld [vmem:[%s3273 + $0x40] sm:$0xf]
  %v3291 = vld [vmem:[%s3273 + $0x44] sm:$0xf]
  %v3292 = vld [vmem:[%s3273 + $0x48] sm:$0xf]
  %v3293 = vld [vmem:[%s3273 + $0x4c] sm:$0xf]
  %v3294 = vld [vmem:[%s3273 + $0x50] sm:$0xf]
  %v3295 = vld [vmem:[%s3273 + $0x54] sm:$0xf]
  %v3296 = vld [vmem:[%s3273 + $0x58] sm:$0xf]
  %v3297 = vld [vmem:[%s3273 + $0x5c] sm:$0xf]
  %v3298 = vld [vmem:[%s3273 + $0x60] sm:$0xf]
  %v3299 = vld [vmem:[%s3273 + $0x64] sm:$0xf]
  %v3300 = vld [vmem:[%s3273 + $0x68] sm:$0xf]
  %v3301 = vld [vmem:[%s3273 + $0x6c] sm:$0xf]
  %v3302 = vld [vmem:[%s3273 + $0x70] sm:$0xf]
  %v3303 = vld [vmem:[%s3273 + $0x74] sm:$0xf]
  %v3304 = vld [vmem:[%s3273 + $0x78] sm:$0xf]
  %v3305 = vld [vmem:[%s3273 + $0x7c] sm:$0xf]
  %s3306 = scalar_lea.vmem %s8, 4
  %v3307 = vld [vmem:[%s3306] sm:$0x1]
  %v3309 = vlaneseq
  %v3310 = vshrl.u32 %v3309, 7
  %v3311 = vsub.s32 0, %v3310
  %v3312 = vrot.slane %v3307, %v3311
  %v3346 = vunpack.c.l.b16 %v3274
  %v3347 = vunpack.c.l.b16 %v3275
  %v3348 = vunpack.c.l.b16 %v3276
  %v3349 = vunpack.c.l.b16 %v3277
  %v3350 = vunpack.c.l.b16 %v3278
  %v3351 = vunpack.c.l.b16 %v3279
  %v3352 = vunpack.c.l.b16 %v3280
  %v3353 = vunpack.c.l.b16 %v3281
  %v3354 = vunpack.c.l.b16 %v3282
  %v3355 = vunpack.c.l.b16 %v3283
  %v3356 = vunpack.c.l.b16 %v3284
  %v3357 = vunpack.c.l.b16 %v3285
  %v3358 = vunpack.c.l.b16 %v3286
  %v3359 = vunpack.c.l.b16 %v3287
  %v3360 = vunpack.c.l.b16 %v3288
  %v3361 = vunpack.c.l.b16 %v3289
  %v3362 = vunpack.c.l.b16 %v3290
  %v3363 = vunpack.c.l.b16 %v3291
  %v3364 = vunpack.c.l.b16 %v3292
  %v3365 = vunpack.c.l.b16 %v3293
  %v3366 = vunpack.c.l.b16 %v3294
  %v3367 = vunpack.c.l.b16 %v3295
  %v3368 = vunpack.c.l.b16 %v3296
  %v3369 = vunpack.c.l.b16 %v3297
  %v3370 = vunpack.c.l.b16 %v3298
  %v3371 = vunpack.c.l.b16 %v3299
  %v3372 = vunpack.c.l.b16 %v3300
  %v3373 = vunpack.c.l.b16 %v3301
  %v3374 = vunpack.c.l.b16 %v3302
  %v3375 = vunpack.c.l.b16 %v3303
  %v3376 = vunpack.c.l.b16 %v3304
  %v3377 = vunpack.c.l.b16 %v3305
  %v3378 = vpack.c.b16 %v3347, %v3346
  %v3379 = vpack.c.b16 %v3349, %v3348
  %v3380 = vpack.c.b16 %v3351, %v3350
  %v3381 = vpack.c.b16 %v3353, %v3352
  %v3382 = vpack.c.b16 %v3355, %v3354
  %v3383 = vpack.c.b16 %v3357, %v3356
  %v3384 = vpack.c.b16 %v3359, %v3358
  %v3385 = vpack.c.b16 %v3361, %v3360
  %v3386 = vpack.c.b16 %v3363, %v3362
  %v3387 = vpack.c.b16 %v3365, %v3364
  %v3388 = vpack.c.b16 %v3367, %v3366
  %v3389 = vpack.c.b16 %v3369, %v3368
  %v3390 = vpack.c.b16 %v3371, %v3370
  %v3391 = vpack.c.b16 %v3373, %v3372
  %v3392 = vpack.c.b16 %v3375, %v3374
  %v3393 = vpack.c.b16 %v3377, %v3376
  %3410 = vmatprep.subr.bf16.mxu0 0
  %3411 = vmatpush1.bf16.msra.mxu0 %v3385
  %3412 = vmatprep.subr.bf16.mxu0 0
  %3413 = vmatpush1.bf16.msra.mxu0 %v3384
  %3414 = vmatprep.subr.bf16.mxu0 0
  %3415 = vmatpush1.bf16.msra.mxu0 %v3383
  %3416 = vmatprep.subr.bf16.mxu0 0
  %3417 = vmatpush1.bf16.msra.mxu0 %v3382
  %3418 = vmatprep.subr.bf16.mxu0 0
  %3419 = vmatpush1.bf16.msra.mxu0 %v3381
  %3420 = vmatprep.subr.bf16.mxu0 0
  %3421 = vmatpush1.bf16.msra.mxu0 %v3380
  %3422 = vmatprep.subr.bf16.mxu0 0
  %3423 = vmatpush1.bf16.msra.mxu0 %v3379
  %3424 = vmatprep.subr.bf16.mxu0 0
  %3425 = vmatpush1.bf16.msra.mxu0 %v3378
  %3426 = vmatprep.subr.bf16.mxu0 0
  %3427 = vmatpush2.bf16.msra.mxu0 %v3393
  %3428 = vmatprep.subr.bf16.mxu0 0
  %3429 = vmatpush2.bf16.msra.mxu0 %v3392
  %3430 = vmatprep.subr.bf16.mxu0 0
  %3431 = vmatpush2.bf16.msra.mxu0 %v3391
  %3432 = vmatprep.subr.bf16.mxu0 0
  %3433 = vmatpush2.bf16.msra.mxu0 %v3390
  %3434 = vmatprep.subr.bf16.mxu0 0
  %3435 = vmatpush2.bf16.msra.mxu0 %v3389
  %3436 = vmatprep.subr.bf16.mxu0 0
  %3437 = vmatpush2.bf16.msra.mxu0 %v3388
  %3438 = vmatprep.subr.bf16.mxu0 0
  %3439 = vmatpush2.bf16.msra.mxu0 %v3387
  %3440 = vmatprep.subr.bf16.mxu0 0
  %3441 = vmatpush2.bf16.msra.mxu0 %v3386
  %3442 = vmatprep.mubr.bf16.mxu0 %v3095
  %3443 = vmatmul.mubr.bf16.gmra.mxu0 %v3094
  %v3444 = vpop.f32.mrf.mxu0
  %v3445 = vadd.f32 %v3312, %v3444
  %v3446 = vpop.f32.mrf.mxu0
  %v3447 = vpop.f32.mrf.mxu0
  %v3448 = vpop.f32.mrf.mxu0
  %3449 = vdwg.mxu0
  %v3451 = vlaneseq
  %v3452 = vshrl.u32 %v3451, 7
  %v3453 = vsub.s32 0, %v3452
  %v3454 = vrot.slane %v2789, %v3453
  %v3456 = vmul.f32 %v3268, %v3454
  %v3457 = vtanh.pop %v3456
  %v3458 = vmul.f32 %v3445, %v3454
  %v3460 = vlaneseq
  %v3461 = vshrl.u32 %v3460, 7
  %v3462 = vsub.s32 0, %v3461
  %v3463 = vrot.slane %v2788, %v3462
  %v3465 = vmul.f32 %v2782, %v3463
  %v3466 = vmul.f32 %v3457, 1.442695
  %v3467 = vpow.pop %v3466
  %v3468 = vmul.f32 %v2782, %v3467
  %v3469 = vadd.f32 %v3468, %v3458
  %v3470 = vmul.f32 %v3454, %v3469
  %v3471 = vadd.f32 %v3465, %v3470
  %v3472 = vsel %vm715, %v3457, 0.0
  %3473 = vadd.xlane.f32.xlu0 %v3472
  %v3474 = vpop.xlane.xlu0 %3473
  %v3475 = vadd.f32 %v2786, %v3474
  %s3476 = scalar_lea.vmem %s9, 5
  %v3477 = vld [vmem:[%s3476] sm:$0x1]
  %v3478 = vsub.f32 1.0, %v3477
  %s3479 = scalar_lea.vmem %s1, 20
  %v3480 = vld [vmem:[%s3479] sm:$0xf]
  %s3481 = scalar_lea.vmem %s2, 10
  %v3482 = vld [vmem:[%s3481] sm:$0x3]
  %3484 = vset.pattern.permute.xlu0 0
  %3485 = vperm.xlu0 %3484, %v3471
  %v3486 = vpop.permute.xlu0 %3485
  %v3489 = vlaneseq
  %v3490 = vshrl.u32 %v3489, 7
  %v3491 = vsub.s32 0, %v3490
  %v3492 = vrot.slane %v3480, %v3491
  %v3493 = vlaneseq
  %v3494 = vshrl.u32 %v3493, 7
  %v3495 = vsub.s32 2, %v3494
  %v3496 = vrot.slane %v3480, %v3495
  %v3499 = vlaneseq
  %v3500 = vshrl.u32 %v3499, 7
  %v3501 = vsub.s32 0, %v3500
  %v3502 = vrot.slane %v3492, %v3501
  %v3503 = vlaneseq
  %v3504 = vshrl.u32 %v3503, 7
  %v3505 = vsub.s32 0, %v3504
  %v3506 = vrot.slane %v3496, %v3505
  %v3507 = vmul.f32 %v3486, %v3502
  %v3508 = vmul.f32 %v3486, %v3506
  %v3510 = vlaneseq
  %v3511 = vshrl.u32 %v3510, 7
  %v3512 = vsub.s32 0, %v3511
  %v3513 = vrot.slane %v3482, %v3512
  %v3514 = vlaneseq
  %v3515 = vshrl.u32 %v3514, 7
  %v3516 = vsub.s32 1, %v3515
  %v3517 = vrot.slane %v3482, %v3516
  %v3520 = vadd.f32 %v3513, %v3507
  %v3521 = vadd.f32 %v3517, %v3508
  %vm3522 = vcmp.gt.f32.partialorder %v3520, 0.0
  %vm3523 = vcmp.gt.f32.partialorder %v3521, 0.0
  %v3524 = vmul.f32 %v3520, 0.01
  %v3525 = vmul.f32 %v3521, 0.01
  %v3526 = vsel %vm3522, %v3520, %v3524
  %v3527 = vsel %vm3523, %v3521, %v3525
  %v3528 = vpack.c.bf16 %v3526, %v3526
  %v3529 = vpack.c.bf16 %v3527, %v3527
  %s3530 = scalar_lea.vmem %s3, 1280
  %v3531 = vld [vmem:[%s3530] sm:$0xff]
  %v3532 = vld [vmem:[%s3530 + $0x8] sm:$0xff]
  %v3533 = vld [vmem:[%s3530 + $0x10] sm:$0xff]
  %v3534 = vld [vmem:[%s3530 + $0x18] sm:$0xff]
  %v3535 = vld [vmem:[%s3530 + $0x20] sm:$0xff]
  %v3536 = vld [vmem:[%s3530 + $0x28] sm:$0xff]
  %v3537 = vld [vmem:[%s3530 + $0x30] sm:$0xff]
  %v3538 = vld [vmem:[%s3530 + $0x38] sm:$0xff]
  %v3539 = vld [vmem:[%s3530 + $0x40] sm:$0xff]
  %v3540 = vld [vmem:[%s3530 + $0x48] sm:$0xff]
  %v3541 = vld [vmem:[%s3530 + $0x50] sm:$0xff]
  %v3542 = vld [vmem:[%s3530 + $0x58] sm:$0xff]
  %v3543 = vld [vmem:[%s3530 + $0x60] sm:$0xff]
  %v3544 = vld [vmem:[%s3530 + $0x68] sm:$0xff]
  %v3545 = vld [vmem:[%s3530 + $0x70] sm:$0xff]
  %v3546 = vld [vmem:[%s3530 + $0x78] sm:$0xff]
  %v3547 = vld [vmem:[%s3530 + $0x80] sm:$0xff]
  %v3548 = vld [vmem:[%s3530 + $0x88] sm:$0xff]
  %v3549 = vld [vmem:[%s3530 + $0x90] sm:$0xff]
  %v3550 = vld [vmem:[%s3530 + $0x98] sm:$0xff]
  %v3551 = vld [vmem:[%s3530 + $0xa0] sm:$0xff]
  %v3552 = vld [vmem:[%s3530 + $0xa8] sm:$0xff]
  %v3553 = vld [vmem:[%s3530 + $0xb0] sm:$0xff]
  %v3554 = vld [vmem:[%s3530 + $0xb8] sm:$0xff]
  %v3555 = vld [vmem:[%s3530 + $0xc0] sm:$0xff]
  %v3556 = vld [vmem:[%s3530 + $0xc8] sm:$0xff]
  %v3557 = vld [vmem:[%s3530 + $0xd0] sm:$0xff]
  %v3558 = vld [vmem:[%s3530 + $0xd8] sm:$0xff]
  %v3559 = vld [vmem:[%s3530 + $0xe0] sm:$0xff]
  %v3560 = vld [vmem:[%s3530 + $0xe8] sm:$0xff]
  %v3561 = vld [vmem:[%s3530 + $0xf0] sm:$0xff]
  %v3562 = vld [vmem:[%s3530 + $0xf8] sm:$0xff]
  %s3563 = scalar_lea.vmem %s4, 10
  %v3564 = vld [vmem:[%s3563] sm:$0x3]
  %v3566 = vlaneseq
  %v3567 = vshrl.u32 %v3566, 7
  %v3568 = vsub.s32 0, %v3567
  %v3569 = vrot.slane %v3564, %v3568
  %v3570 = vlaneseq
  %v3571 = vshrl.u32 %v3570, 7
  %v3572 = vsub.s32 1, %v3571
  %v3573 = vrot.slane %v3564, %v3572
  %v3608 = vunpack.c.l.b16 %v3531
  %v3609 = vunpack.c.h.b16 %v3531
  %v3610 = vunpack.c.l.b16 %v3532
  %v3611 = vunpack.c.h.b16 %v3532
  %v3612 = vunpack.c.l.b16 %v3533
  %v3613 = vunpack.c.h.b16 %v3533
  %v3614 = vunpack.c.l.b16 %v3534
  %v3615 = vunpack.c.h.b16 %v3534
  %v3616 = vunpack.c.l.b16 %v3535
  %v3617 = vunpack.c.h.b16 %v3535
  %v3618 = vunpack.c.l.b16 %v3536
  %v3619 = vunpack.c.h.b16 %v3536
  %v3620 = vunpack.c.l.b16 %v3537
  %v3621 = vunpack.c.h.b16 %v3537
  %v3622 = vunpack.c.l.b16 %v3538
  %v3623 = vunpack.c.h.b16 %v3538
  %v3624 = vunpack.c.l.b16 %v3539
  %v3625 = vunpack.c.h.b16 %v3539
  %v3626 = vunpack.c.l.b16 %v3540
  %v3627 = vunpack.c.h.b16 %v3540
  %v3628 = vunpack.c.l.b16 %v3541
  %v3629 = vunpack.c.h.b16 %v3541
  %v3630 = vunpack.c.l.b16 %v3542
  %v3631 = vunpack.c.h.b16 %v3542
  %v3632 = vunpack.c.l.b16 %v3543
  %v3633 = vunpack.c.h.b16 %v3543
  %v3634 = vunpack.c.l.b16 %v3544
  %v3635 = vunpack.c.h.b16 %v3544
  %v3636 = vunpack.c.l.b16 %v3545
  %v3637 = vunpack.c.h.b16 %v3545
  %v3638 = vunpack.c.l.b16 %v3546
  %v3639 = vunpack.c.h.b16 %v3546
  %v3640 = vunpack.c.l.b16 %v3547
  %v3641 = vunpack.c.h.b16 %v3547
  %v3642 = vunpack.c.l.b16 %v3548
  %v3643 = vunpack.c.h.b16 %v3548
  %v3644 = vunpack.c.l.b16 %v3549
  %v3645 = vunpack.c.h.b16 %v3549
  %v3646 = vunpack.c.l.b16 %v3550
  %v3647 = vunpack.c.h.b16 %v3550
  %v3648 = vunpack.c.l.b16 %v3551
  %v3649 = vunpack.c.h.b16 %v3551
  %v3650 = vunpack.c.l.b16 %v3552
  %v3651 = vunpack.c.h.b16 %v3552
  %v3652 = vunpack.c.l.b16 %v3553
  %v3653 = vunpack.c.h.b16 %v3553
  %v3654 = vunpack.c.l.b16 %v3554
  %v3655 = vunpack.c.h.b16 %v3554
  %v3656 = vunpack.c.l.b16 %v3555
  %v3657 = vunpack.c.h.b16 %v3555
  %v3658 = vunpack.c.l.b16 %v3556
  %v3659 = vunpack.c.h.b16 %v3556
  %v3660 = vunpack.c.l.b16 %v3557
  %v3661 = vunpack.c.h.b16 %v3557
  %v3662 = vunpack.c.l.b16 %v3558
  %v3663 = vunpack.c.h.b16 %v3558
  %v3664 = vunpack.c.l.b16 %v3559
  %v3665 = vunpack.c.h.b16 %v3559
  %v3666 = vunpack.c.l.b16 %v3560
  %v3667 = vunpack.c.h.b16 %v3560
  %v3668 = vunpack.c.l.b16 %v3561
  %v3669 = vunpack.c.h.b16 %v3561
  %v3670 = vunpack.c.l.b16 %v3562
  %v3671 = vunpack.c.h.b16 %v3562
  %v3672 = vpack.c.b16 %v3610, %v3608
  %v3673 = vpack.c.b16 %v3611, %v3609
  %v3674 = vpack.c.b16 %v3614, %v3612
  %v3675 = vpack.c.b16 %v3615, %v3613
  %v3676 = vpack.c.b16 %v3618, %v3616
  %v3677 = vpack.c.b16 %v3619, %v3617
  %v3678 = vpack.c.b16 %v3622, %v3620
  %v3679 = vpack.c.b16 %v3623, %v3621
  %v3680 = vpack.c.b16 %v3626, %v3624
  %v3681 = vpack.c.b16 %v3627, %v3625
  %v3682 = vpack.c.b16 %v3630, %v3628
  %v3683 = vpack.c.b16 %v3631, %v3629
  %v3684 = vpack.c.b16 %v3634, %v3632
  %v3685 = vpack.c.b16 %v3635, %v3633
  %v3686 = vpack.c.b16 %v3638, %v3636
  %v3687 = vpack.c.b16 %v3639, %v3637
  %v3688 = vpack.c.b16 %v3642, %v3640
  %v3689 = vpack.c.b16 %v3643, %v3641
  %v3690 = vpack.c.b16 %v3646, %v3644
  %v3691 = vpack.c.b16 %v3647, %v3645
  %v3692 = vpack.c.b16 %v3650, %v3648
  %v3693 = vpack.c.b16 %v3651, %v3649
  %v3694 = vpack.c.b16 %v3654, %v3652
  %v3695 = vpack.c.b16 %v3655, %v3653
  %v3696 = vpack.c.b16 %v3658, %v3656
  %v3697 = vpack.c.b16 %v3659, %v3657
  %v3698 = vpack.c.b16 %v3662, %v3660
  %v3699 = vpack.c.b16 %v3663, %v3661
  %v3700 = vpack.c.b16 %v3666, %v3664
  %v3701 = vpack.c.b16 %v3667, %v3665
  %v3702 = vpack.c.b16 %v3670, %v3668
  %v3703 = vpack.c.b16 %v3671, %v3669
  %3736 = vmatprep.subr.bf16.mxu0 %v3687
  %3737 = vmatpush1.bf16.msra.mxu0 %v3686
  %3738 = vmatprep.subr.bf16.mxu0 %v3685
  %3739 = vmatpush1.bf16.msra.mxu0 %v3684
  %3740 = vmatprep.subr.bf16.mxu0 %v3683
  %3741 = vmatpush1.bf16.msra.mxu0 %v3682
  %3742 = vmatprep.subr.bf16.mxu0 %v3681
  %3743 = vmatpush1.bf16.msra.mxu0 %v3680
  %3744 = vmatprep.subr.bf16.mxu0 %v3679
  %3745 = vmatpush1.bf16.msra.mxu0 %v3678
  %3746 = vmatprep.subr.bf16.mxu0 %v3677
  %3747 = vmatpush1.bf16.msra.mxu0 %v3676
  %3748 = vmatprep.subr.bf16.mxu0 %v3675
  %3749 = vmatpush1.bf16.msra.mxu0 %v3674
  %3750 = vmatprep.subr.bf16.mxu0 %v3673
  %3751 = vmatpush1.bf16.msra.mxu0 %v3672
  %3752 = vmatprep.subr.bf16.mxu0 %v3703
  %3753 = vmatpush2.bf16.msra.mxu0 %v3702
  %3754 = vmatprep.subr.bf16.mxu0 %v3701
  %3755 = vmatpush2.bf16.msra.mxu0 %v3700
  %3756 = vmatprep.subr.bf16.mxu0 %v3699
  %3757 = vmatpush2.bf16.msra.mxu0 %v3698
  %3758 = vmatprep.subr.bf16.mxu0 %v3697
  %3759 = vmatpush2.bf16.msra.mxu0 %v3696
  %3760 = vmatprep.subr.bf16.mxu0 %v3695
  %3761 = vmatpush2.bf16.msra.mxu0 %v3694
  %3762 = vmatprep.subr.bf16.mxu0 %v3693
  %3763 = vmatpush2.bf16.msra.mxu0 %v3692
  %3764 = vmatprep.subr.bf16.mxu0 %v3691
  %3765 = vmatpush2.bf16.msra.mxu0 %v3690
  %3766 = vmatprep.subr.bf16.mxu0 %v3689
  %3767 = vmatpush2.bf16.msra.mxu0 %v3688
  %3768 = vmatprep.mubr.bf16.mxu0 %v3529
  %3769 = vmatmul.mubr.bf16.gmra.mxu0 %v3528
  %v3770 = vpop.f32.mrf.mxu0
  %v3771 = vadd.f32 %v3569, %v3770
  %v3772 = vpop.f32.mrf.mxu0
  %v3773 = vadd.f32 %v3573, %v3772
  %v3774 = vpop.f32.mrf.mxu0
  %v3775 = vpop.f32.mrf.mxu0
  %3776 = vdwg.mxu0
  %vm3777 = vcmp.gt.f32.partialorder %v3771, 0.0
  %vm3778 = vcmp.gt.f32.partialorder %v3773, 0.0
  %v3779 = vmul.f32 %v3771, 0.01
  %v3780 = vmul.f32 %v3773, 0.01
  %v3781 = vsel %vm3777, %v3771, %v3779
  %v3782 = vsel %vm3778, %v3773, %v3780
  %v3783 = vpack.c.bf16 %v3781, %v3781
  %v3784 = vpack.c.bf16 %v3782, %v3782
  %s3785 = scalar_lea.vmem %s5, 640
  %v3786 = vld [vmem:[%s3785] sm:$0xf]
  %v3787 = vld [vmem:[%s3785 + $0x4] sm:$0xf]
  %v3788 = vld [vmem:[%s3785 + $0x8] sm:$0xf]
  %v3789 = vld [vmem:[%s3785 + $0xc] sm:$0xf]
  %v3790 = vld [vmem:[%s3785 + $0x10] sm:$0xf]
  %v3791 = vld [vmem:[%s3785 + $0x14] sm:$0xf]
  %v3792 = vld [vmem:[%s3785 + $0x18] sm:$0xf]
  %v3793 = vld [vmem:[%s3785 + $0x1c] sm:$0xf]
  %v3794 = vld [vmem:[%s3785 + $0x20] sm:$0xf]
  %v3795 = vld [vmem:[%s3785 + $0x24] sm:$0xf]
  %v3796 = vld [vmem:[%s3785 + $0x28] sm:$0xf]
  %v3797 = vld [vmem:[%s3785 + $0x2c] sm:$0xf]
  %v3798 = vld [vmem:[%s3785 + $0x30] sm:$0xf]
  %v3799 = vld [vmem:[%s3785 + $0x34] sm:$0xf]
  %v3800 = vld [vmem:[%s3785 + $0x38] sm:$0xf]
  %v3801 = vld [vmem:[%s3785 + $0x3c] sm:$0xf]
  %v3802 = vld [vmem:[%s3785 + $0x40] sm:$0xf]
  %v3803 = vld [vmem:[%s3785 + $0x44] sm:$0xf]
  %v3804 = vld [vmem:[%s3785 + $0x48] sm:$0xf]
  %v3805 = vld [vmem:[%s3785 + $0x4c] sm:$0xf]
  %v3806 = vld [vmem:[%s3785 + $0x50] sm:$0xf]
  %v3807 = vld [vmem:[%s3785 + $0x54] sm:$0xf]
  %v3808 = vld [vmem:[%s3785 + $0x58] sm:$0xf]
  %v3809 = vld [vmem:[%s3785 + $0x5c] sm:$0xf]
  %v3810 = vld [vmem:[%s3785 + $0x60] sm:$0xf]
  %v3811 = vld [vmem:[%s3785 + $0x64] sm:$0xf]
  %v3812 = vld [vmem:[%s3785 + $0x68] sm:$0xf]
  %v3813 = vld [vmem:[%s3785 + $0x6c] sm:$0xf]
  %v3814 = vld [vmem:[%s3785 + $0x70] sm:$0xf]
  %v3815 = vld [vmem:[%s3785 + $0x74] sm:$0xf]
  %v3816 = vld [vmem:[%s3785 + $0x78] sm:$0xf]
  %v3817 = vld [vmem:[%s3785 + $0x7c] sm:$0xf]
  %s3818 = scalar_lea.vmem %s6, 5
  %v3819 = vld [vmem:[%s3818] sm:$0x1]
  %v3821 = vlaneseq
  %v3822 = vshrl.u32 %v3821, 7
  %v3823 = vsub.s32 0, %v3822
  %v3824 = vrot.slane %v3819, %v3823
  %v3858 = vunpack.c.l.b16 %v3786
  %v3859 = vunpack.c.l.b16 %v3787
  %v3860 = vunpack.c.l.b16 %v3788
  %v3861 = vunpack.c.l.b16 %v3789
  %v3862 = vunpack.c.l.b16 %v3790
  %v3863 = vunpack.c.l.b16 %v3791
  %v3864 = vunpack.c.l.b16 %v3792
  %v3865 = vunpack.c.l.b16 %v3793
  %v3866 = vunpack.c.l.b16 %v3794
  %v3867 = vunpack.c.l.b16 %v3795
  %v3868 = vunpack.c.l.b16 %v3796
  %v3869 = vunpack.c.l.b16 %v3797
  %v3870 = vunpack.c.l.b16 %v3798
  %v3871 = vunpack.c.l.b16 %v3799
  %v3872 = vunpack.c.l.b16 %v3800
  %v3873 = vunpack.c.l.b16 %v3801
  %v3874 = vunpack.c.l.b16 %v3802
  %v3875 = vunpack.c.l.b16 %v3803
  %v3876 = vunpack.c.l.b16 %v3804
  %v3877 = vunpack.c.l.b16 %v3805
  %v3878 = vunpack.c.l.b16 %v3806
  %v3879 = vunpack.c.l.b16 %v3807
  %v3880 = vunpack.c.l.b16 %v3808
  %v3881 = vunpack.c.l.b16 %v3809
  %v3882 = vunpack.c.l.b16 %v3810
  %v3883 = vunpack.c.l.b16 %v3811
  %v3884 = vunpack.c.l.b16 %v3812
  %v3885 = vunpack.c.l.b16 %v3813
  %v3886 = vunpack.c.l.b16 %v3814
  %v3887 = vunpack.c.l.b16 %v3815
  %v3888 = vunpack.c.l.b16 %v3816
  %v3889 = vunpack.c.l.b16 %v3817
  %v3890 = vpack.c.b16 %v3859, %v3858
  %v3891 = vpack.c.b16 %v3861, %v3860
  %v3892 = vpack.c.b16 %v3863, %v3862
  %v3893 = vpack.c.b16 %v3865, %v3864
  %v3894 = vpack.c.b16 %v3867, %v3866
  %v3895 = vpack.c.b16 %v3869, %v3868
  %v3896 = vpack.c.b16 %v3871, %v3870
  %v3897 = vpack.c.b16 %v3873, %v3872
  %v3898 = vpack.c.b16 %v3875, %v3874
  %v3899 = vpack.c.b16 %v3877, %v3876
  %v3900 = vpack.c.b16 %v3879, %v3878
  %v3901 = vpack.c.b16 %v3881, %v3880
  %v3902 = vpack.c.b16 %v3883, %v3882
  %v3903 = vpack.c.b16 %v3885, %v3884
  %v3904 = vpack.c.b16 %v3887, %v3886
  %v3905 = vpack.c.b16 %v3889, %v3888
  %3922 = vmatprep.subr.bf16.mxu0 0
  %3923 = vmatpush1.bf16.msra.mxu0 %v3897
  %3924 = vmatprep.subr.bf16.mxu0 0
  %3925 = vmatpush1.bf16.msra.mxu0 %v3896
  %3926 = vmatprep.subr.bf16.mxu0 0
  %3927 = vmatpush1.bf16.msra.mxu0 %v3895
  %3928 = vmatprep.subr.bf16.mxu0 0
  %3929 = vmatpush1.bf16.msra.mxu0 %v3894
  %3930 = vmatprep.subr.bf16.mxu0 0
  %3931 = vmatpush1.bf16.msra.mxu0 %v3893
  %3932 = vmatprep.subr.bf16.mxu0 0
  %3933 = vmatpush1.bf16.msra.mxu0 %v3892
  %3934 = vmatprep.subr.bf16.mxu0 0
  %3935 = vmatpush1.bf16.msra.mxu0 %v3891
  %3936 = vmatprep.subr.bf16.mxu0 0
  %3937 = vmatpush1.bf16.msra.mxu0 %v3890
  %3938 = vmatprep.subr.bf16.mxu0 0
  %3939 = vmatpush2.bf16.msra.mxu0 %v3905
  %3940 = vmatprep.subr.bf16.mxu0 0
  %3941 = vmatpush2.bf16.msra.mxu0 %v3904
  %3942 = vmatprep.subr.bf16.mxu0 0
  %3943 = vmatpush2.bf16.msra.mxu0 %v3903
  %3944 = vmatprep.subr.bf16.mxu0 0
  %3945 = vmatpush2.bf16.msra.mxu0 %v3902
  %3946 = vmatprep.subr.bf16.mxu0 0
  %3947 = vmatpush2.bf16.msra.mxu0 %v3901
  %3948 = vmatprep.subr.bf16.mxu0 0
  %3949 = vmatpush2.bf16.msra.mxu0 %v3900
  %3950 = vmatprep.subr.bf16.mxu0 0
  %3951 = vmatpush2.bf16.msra.mxu0 %v3899
  %3952 = vmatprep.subr.bf16.mxu0 0
  %3953 = vmatpush2.bf16.msra.mxu0 %v3898
  %3954 = vmatprep.mubr.bf16.mxu0 %v3784
  %3955 = vmatmul.mubr.bf16.gmra.mxu0 %v3783
  %v3956 = vpop.f32.mrf.mxu0
  %v3957 = vadd.f32 %v3824, %v3956
  %v3958 = vpop.f32.mrf.mxu0
  %v3959 = vpop.f32.mrf.mxu0
  %v3960 = vpop.f32.mrf.mxu0
  %3961 = vdwg.mxu0
  %s3962 = scalar_lea.vmem %s7, 640
  %v3963 = vld [vmem:[%s3962] sm:$0xf]
  %v3964 = vld [vmem:[%s3962 + $0x4] sm:$0xf]
  %v3965 = vld [vmem:[%s3962 + $0x8] sm:$0xf]
  %v3966 = vld [vmem:[%s3962 + $0xc] sm:$0xf]
  %v3967 = vld [vmem:[%s3962 + $0x10] sm:$0xf]
  %v3968 = vld [vmem:[%s3962 + $0x14] sm:$0xf]
  %v3969 = vld [vmem:[%s3962 + $0x18] sm:$0xf]
  %v3970 = vld [vmem:[%s3962 + $0x1c] sm:$0xf]
  %v3971 = vld [vmem:[%s3962 + $0x20] sm:$0xf]
  %v3972 = vld [vmem:[%s3962 + $0x24] sm:$0xf]
  %v3973 = vld [vmem:[%s3962 + $0x28] sm:$0xf]
  %v3974 = vld [vmem:[%s3962 + $0x2c] sm:$0xf]
  %v3975 = vld [vmem:[%s3962 + $0x30] sm:$0xf]
  %v3976 = vld [vmem:[%s3962 + $0x34] sm:$0xf]
  %v3977 = vld [vmem:[%s3962 + $0x38] sm:$0xf]
  %v3978 = vld [vmem:[%s3962 + $0x3c] sm:$0xf]
  %v3979 = vld [vmem:[%s3962 + $0x40] sm:$0xf]
  %v3980 = vld [vmem:[%s3962 + $0x44] sm:$0xf]
  %v3981 = vld [vmem:[%s3962 + $0x48] sm:$0xf]
  %v3982 = vld [vmem:[%s3962 + $0x4c] sm:$0xf]
  %v3983 = vld [vmem:[%s3962 + $0x50] sm:$0xf]
  %v3984 = vld [vmem:[%s3962 + $0x54] sm:$0xf]
  %v3985 = vld [vmem:[%s3962 + $0x58] sm:$0xf]
  %v3986 = vld [vmem:[%s3962 + $0x5c] sm:$0xf]
  %v3987 = vld [vmem:[%s3962 + $0x60] sm:$0xf]
  %v3988 = vld [vmem:[%s3962 + $0x64] sm:$0xf]
  %v3989 = vld [vmem:[%s3962 + $0x68] sm:$0xf]
  %v3990 = vld [vmem:[%s3962 + $0x6c] sm:$0xf]
  %v3991 = vld [vmem:[%s3962 + $0x70] sm:$0xf]
  %v3992 = vld [vmem:[%s3962 + $0x74] sm:$0xf]
  %v3993 = vld [vmem:[%s3962 + $0x78] sm:$0xf]
  %v3994 = vld [vmem:[%s3962 + $0x7c] sm:$0xf]
  %s3995 = scalar_lea.vmem %s8, 5
  %v3996 = vld [vmem:[%s3995] sm:$0x1]
  %v3998 = vlaneseq
  %v3999 = vshrl.u32 %v3998, 7
  %v4000 = vsub.s32 0, %v3999
  %v4001 = vrot.slane %v3996, %v4000
  %v4035 = vunpack.c.l.b16 %v3963
  %v4036 = vunpack.c.l.b16 %v3964
  %v4037 = vunpack.c.l.b16 %v3965
  %v4038 = vunpack.c.l.b16 %v3966
  %v4039 = vunpack.c.l.b16 %v3967
  %v4040 = vunpack.c.l.b16 %v3968
  %v4041 = vunpack.c.l.b16 %v3969
  %v4042 = vunpack.c.l.b16 %v3970
  %v4043 = vunpack.c.l.b16 %v3971
  %v4044 = vunpack.c.l.b16 %v3972
  %v4045 = vunpack.c.l.b16 %v3973
  %v4046 = vunpack.c.l.b16 %v3974
  %v4047 = vunpack.c.l.b16 %v3975
  %v4048 = vunpack.c.l.b16 %v3976
  %v4049 = vunpack.c.l.b16 %v3977
  %v4050 = vunpack.c.l.b16 %v3978
  %v4051 = vunpack.c.l.b16 %v3979
  %v4052 = vunpack.c.l.b16 %v3980
  %v4053 = vunpack.c.l.b16 %v3981
  %v4054 = vunpack.c.l.b16 %v3982
  %v4055 = vunpack.c.l.b16 %v3983
  %v4056 = vunpack.c.l.b16 %v3984
  %v4057 = vunpack.c.l.b16 %v3985
  %v4058 = vunpack.c.l.b16 %v3986
  %v4059 = vunpack.c.l.b16 %v3987
  %v4060 = vunpack.c.l.b16 %v3988
  %v4061 = vunpack.c.l.b16 %v3989
  %v4062 = vunpack.c.l.b16 %v3990
  %v4063 = vunpack.c.l.b16 %v3991
  %v4064 = vunpack.c.l.b16 %v3992
  %v4065 = vunpack.c.l.b16 %v3993
  %v4066 = vunpack.c.l.b16 %v3994
  %v4067 = vpack.c.b16 %v4036, %v4035
  %v4068 = vpack.c.b16 %v4038, %v4037
  %v4069 = vpack.c.b16 %v4040, %v4039
  %v4070 = vpack.c.b16 %v4042, %v4041
  %v4071 = vpack.c.b16 %v4044, %v4043
  %v4072 = vpack.c.b16 %v4046, %v4045
  %v4073 = vpack.c.b16 %v4048, %v4047
  %v4074 = vpack.c.b16 %v4050, %v4049
  %v4075 = vpack.c.b16 %v4052, %v4051
  %v4076 = vpack.c.b16 %v4054, %v4053
  %v4077 = vpack.c.b16 %v4056, %v4055
  %v4078 = vpack.c.b16 %v4058, %v4057
  %v4079 = vpack.c.b16 %v4060, %v4059
  %v4080 = vpack.c.b16 %v4062, %v4061
  %v4081 = vpack.c.b16 %v4064, %v4063
  %v4082 = vpack.c.b16 %v4066, %v4065
  %4099 = vmatprep.subr.bf16.mxu0 0
  %4100 = vmatpush1.bf16.msra.mxu0 %v4074
  %4101 = vmatprep.subr.bf16.mxu0 0
  %4102 = vmatpush1.bf16.msra.mxu0 %v4073
  %4103 = vmatprep.subr.bf16.mxu0 0
  %4104 = vmatpush1.bf16.msra.mxu0 %v4072
  %4105 = vmatprep.subr.bf16.mxu0 0
  %4106 = vmatpush1.bf16.msra.mxu0 %v4071
  %4107 = vmatprep.subr.bf16.mxu0 0
  %4108 = vmatpush1.bf16.msra.mxu0 %v4070
  %4109 = vmatprep.subr.bf16.mxu0 0
  %4110 = vmatpush1.bf16.msra.mxu0 %v4069
  %4111 = vmatprep.subr.bf16.mxu0 0
  %4112 = vmatpush1.bf16.msra.mxu0 %v4068
  %4113 = vmatprep.subr.bf16.mxu0 0
  %4114 = vmatpush1.bf16.msra.mxu0 %v4067
  %4115 = vmatprep.subr.bf16.mxu0 0
  %4116 = vmatpush2.bf16.msra.mxu0 %v4082
  %4117 = vmatprep.subr.bf16.mxu0 0
  %4118 = vmatpush2.bf16.msra.mxu0 %v4081
  %4119 = vmatprep.subr.bf16.mxu0 0
  %4120 = vmatpush2.bf16.msra.mxu0 %v4080
  %4121 = vmatprep.subr.bf16.mxu0 0
  %4122 = vmatpush2.bf16.msra.mxu0 %v4079
  %4123 = vmatprep.subr.bf16.mxu0 0
  %4124 = vmatpush2.bf16.msra.mxu0 %v4078
  %4125 = vmatprep.subr.bf16.mxu0 0
  %4126 = vmatpush2.bf16.msra.mxu0 %v4077
  %4127 = vmatprep.subr.bf16.mxu0 0
  %4128 = vmatpush2.bf16.msra.mxu0 %v4076
  %4129 = vmatprep.subr.bf16.mxu0 0
  %4130 = vmatpush2.bf16.msra.mxu0 %v4075
  %4131 = vmatprep.mubr.bf16.mxu0 %v3784
  %4132 = vmatmul.mubr.bf16.gmra.mxu0 %v3783
  %v4133 = vpop.f32.mrf.mxu0
  %v4134 = vadd.f32 %v4001, %v4133
  %v4135 = vpop.f32.mrf.mxu0
  %v4136 = vpop.f32.mrf.mxu0
  %v4137 = vpop.f32.mrf.mxu0
  %4138 = vdwg.mxu0
  %v4140 = vlaneseq
  %v4141 = vshrl.u32 %v4140, 7
  %v4142 = vsub.s32 0, %v4141
  %v4143 = vrot.slane %v3478, %v4142
  %v4145 = vmul.f32 %v3957, %v4143
  %v4146 = vtanh.pop %v4145
  %v4147 = vmul.f32 %v4134, %v4143
  %v4149 = vlaneseq
  %v4150 = vshrl.u32 %v4149, 7
  %v4151 = vsub.s32 0, %v4150
  %v4152 = vrot.slane %v3477, %v4151
  %v4154 = vmul.f32 %v3471, %v4152
  %v4155 = vmul.f32 %v4146, 1.442695
  %v4156 = vpow.pop %v4155
  %v4157 = vmul.f32 %v3471, %v4156
  %v4158 = vadd.f32 %v4157, %v4147
  %v4159 = vmul.f32 %v4143, %v4158
  %v4160 = vadd.f32 %v4154, %v4159
  %v4161 = vsel %vm715, %v4146, 0.0
  %4162 = vadd.xlane.f32.xlu0 %v4161
  %v4163 = vpop.xlane.xlu0 %4162
  %v4164 = vadd.f32 %v3475, %v4163
  %4165 = vst.msk [vmem:[%s10] sm:$0xff] %vm715, %v4160
  %vm4166 = vcmask 7168
  %4167 = vst.msk [vmem:[%s11] sm:$0xff] %vm4166, %v4164
  // Predicated region
  $region42: #{tpu_custom_call.1} parent=0 // pred_check
    _
  $region43: #{tpu_custom_call.1} parent=0 // pred_check_branch
    %4169 = sbr.rel (0) target = $region45
  $region44: #{tpu_custom_call.1} parent=0 // pred_region
    _
  $region45: #{tpu_custom_call.1} parent=0 // pred_fallthru
    _
  // Predicated region
  $region46: #{tpu_custom_call.1} parent=0 // pred_check
    _
  $region47: #{tpu_custom_call.1} parent=0 // pred_check_branch
    %4171 = sbr.rel (0) target = $region49
  $region48: #{tpu_custom_call.1} parent=0 // pred_region
    _
  $region49: #{tpu_custom_call.1} parent=0 // pred_fallthru
    _
  // Predicated region
  $region50: #{tpu_custom_call.1} parent=0 // pred_check
    _
  $region51: #{tpu_custom_call.1} parent=0 // pred_check_branch
    %4173 = sbr.rel (0) target = $region53
  $region52: #{tpu_custom_call.1} parent=0 // pred_region
    _
  $region53: #{tpu_custom_call.1} parent=0 // pred_fallthru
    _
  // Predicated region
  $region54: #{tpu_custom_call.1} parent=0 // pred_check
    _
  $region55: #{tpu_custom_call.1} parent=0 // pred_check_branch
    %4175 = sbr.rel (0) target = $region57
  $region56: #{tpu_custom_call.1} parent=0 // pred_region
    _
  $region57: #{tpu_custom_call.1} parent=0 // pred_fallthru
    _

</llo_original>
